<compile_context>
chip_gen: v7x
topology: tpu7x:2x2x1
jax: 0.10.0
libtpu: 0.0.40
codegen_flags: <defaults>
</compile_context>

<pallas_src>
import jax
import jax.numpy as jnp
from jax.experimental import pallas as pl
from jax.experimental.pallas import tpu as pltpu


# ----------------------------------------------------------------------------
# Hyperparameters (the "param" object from the PyTorch module), small sizes.
# ----------------------------------------------------------------------------
class Param:
    input_layers = 4
    Conv1_output_layers = 8
    Conv2_output_layers = 16
    Conv3_output_layers = 32
    conv_filter_size = 3
    padding = 1
    maxp_filter_size = 2
    maxp_stride = 2
    # input spatial 16x16 -> pool -> 8 -> 4 -> 2 ; flat = 32 * 2 * 2
    conv_flat_output = 32 * 2 * 2
    Lin1_output_layers = 128
    Lin2_output_layers = 64
    Lin3_output_layers = 64
    Lin4_output_layers = 32
    Lin5_output_layers = 32
    dropout_prob = 0.5


OUTPUT_LENGTH = 16
BATCH = 2
SPATIAL = 16
KS = Param.conv_filter_size
# Samples processed per grid step.  Raise toward 64-128 on the serving path to fill the MXU M
# dimension; the weight operands keep constant block indices so they stay resident across steps.
TILE_BATCH = 2

# Per-stage geometry at conv input resolution: (H, W, Cin, Cout).
STAGES = (
    (16, 16, Param.input_layers, Param.Conv1_output_layers),
    (8, 8, Param.Conv1_output_layers, Param.Conv2_output_layers),
    (4, 4, Param.Conv2_output_layers, Param.Conv3_output_layers),
)


# ----------------------------------------------------------------------------
# The fused kernel: 3x (conv + pool + bias + ReLU) + MLP head, all in VMEM.
# ----------------------------------------------------------------------------
def fused_forward_kernel(
    x_ref,                                   # (1, TB*(16+2), 16*C0): row-padded, batch-stacked
    e1, b1, cs1, rs1,                        # stage 1: kw-folded taps, bias, col/row pool selectors
    e2, b2, cs2, rs2,                        # stage 2
    e3, b3, cs3, rs3,                        # stage 3
    fw1, fb1, fw2, fb2, fw3, fb3, fw4, fb4, fw5, fb5, fwo, fbo,
    o_ref,                                   # (1, TB, OUTPUT_LENGTH)
):
    f32 = jnp.float32

    def conv_relu_pool(A, e_ref, b_ref, cs_ref, rs_ref):
        # A: (R, W*Cin) row-padded, batch-stacked slab; rows = n*(H+2) + padded_h, cols = w*Cin + c.
        M = A.shape[0] - 2
        # kw-folded conv: 3 full-slab MXU matmuls (windows are sublane-shifted, lane-dense).
        acc = jnp.dot(A[0:M, :], e_ref[0], preferred_element_type=f32)
        acc = acc + jnp.dot(A[1:M + 1, :], e_ref[1], preferred_element_type=f32)
        acc = acc + jnp.dot(A[2:M + 2, :], e_ref[2], preferred_element_type=f32)
        # Fused even|odd column (w) max-pool: one matmul, max of the two lane halves.
        hc = cs_ref.shape[1] // 2
        t = jnp.dot(acc, cs_ref[...], preferred_element_type=f32)
        c = jnp.maximum(t[:, :hc], t[:, hc:])
        # Bias + ReLU on the pooled-width tile (per-channel bias / monotone ReLU commute with
        # the 0/1 selection max-pools, so this is exactly equivalent to bias/ReLU before pooling).
        y = jnp.maximum(c + b_ref[...], 0.0)
        # Fused even/odd row (h) max-pool: one matmul, max of the two sublane halves.
        # For stages 1-2 the selector also contains all-zero rows that emit the NEXT stage's
        # zero row-padding, so the result is directly the next stage's batch-stacked input slab.
        hr = rs_ref.shape[0] // 2
        u = jnp.dot(rs_ref[...], y, preferred_element_type=f32)
        return jnp.maximum(u[:hr, :], u[hr:, :])

    A = x_ref[0]                                         # (TB*18, 64)
    A = conv_relu_pool(A, e1, b1, cs1, rs1)              # (TB*10, 64)
    A = conv_relu_pool(A, e2, b2, cs2, rs2)              # (TB*6,  64)
    p3 = conv_relu_pool(A, e3, b3, cs3, rs3)             # (2*TB,  64), rows ordered (h, n)

    # Flatten to HWC per sample: feat[n] = [p3 row (h=0, n) | p3 row (h=1, n)].
    tb = p3.shape[0] // 2
    feat = jnp.concatenate([p3[:tb, :], p3[tb:, :]], axis=1)      # (TB, 128)

    def dense(h, w_ref, bias_ref):
        return jnp.dot(h, w_ref[...], preferred_element_type=f32) + bias_ref[...]

    h = jnp.maximum(dense(feat, fw1, fb1), 0.0)
    h = jnp.maximum(dense(h, fw2, fb2), 0.0)
    h = jnp.maximum(dense(h, fw3, fb3), 0.0)
    h = jnp.maximum(dense(h, fw4, fb4), 0.0)
    h = jnp.maximum(dense(h, fw5, fb5), 0.0)
    # TODO(synk): nn.Dropout is identity in eval/inference mode; training-mode random masking
    #             is intentionally not implemented here.
    o_ref[0] = dense(h, fwo, fbo).astype(o_ref.dtype)


# ----------------------------------------------------------------------------
# One-time host-side packing of PyTorch-convention params into kernel operands.
# ----------------------------------------------------------------------------
def pack_for_kernel(params, tile_batch=TILE_BATCH):
    TB = tile_batch
    packed = []
    for si, ((H, W, Cin, Cout), (w, b)) in enumerate(zip(STAGES, params["conv"])):
        w = w.astype(jnp.float32)                               # (Cout, Cin, 3, 3) PyTorch layout
        b = b.astype(jnp.float32)
        H2, W2 = H // 2, W // 2

        # kw-folded taps: one block-tridiagonal (W*Cin, W*Cout) weight per kh; out-of-range kw
        # contributions are simply absent (so no column zero-padding is needed anywhere).
        taps = []
        for kh in range(KS):
            e_kh = sum(jnp.kron(jnp.eye(W, k=1 - kw, dtype=jnp.float32), w[:, :, kh, kw].T)
                       for kw in range(KS))
            taps.append(e_kh)
        e = jnp.stack(taps)                                     # (3, W*Cin, W*Cout)
        bt = jnp.tile(b, W2)[None, :]                           # (1, W2*Cout): post-col-pool layout

        # Fused even|odd column (w) pool selector: left lane-half = even w, right = odd w.
        cidx = jnp.arange(W2 * Cout)
        cj, cc = cidx // Cout, cidx % Cout
        ce = jnp.zeros((W * Cout, W2 * Cout), jnp.float32).at[2 * cj * Cout + cc, cidx].set(1.0)
        co = jnp.zeros((W * Cout, W2 * Cout), jnp.float32).at[(2 * cj + 1) * Cout + cc, cidx].set(1.0)
        cs = jnp.concatenate([ce, co], axis=1)                  # (W*Cout, 2*W2*Cout)

        # Fused even/odd row (h) pool selector over the batch-stacked conv rows
        # (conv acc row for sample n, output row h sits at index n*(H+2) + h).
        Mrows = TB * (H + 2) - 2
        j = jnp.arange(TB * H2)
        n, jj = j // H2, j % H2
        ie = n * (H + 2) + 2 * jj
        if si < len(STAGES) - 1:
            # Output rows laid out as the NEXT stage's row-padded, batch-stacked input
            # (the untouched selector rows stay all-zero -> zero padding rows).
            Q = TB * (H2 + 2)
            q = n * (H2 + 2) + jj + 1
        else:
            # Last stage: (h, n)-major rows so the flatten is a cheap lane concat.
            Q = TB * H2
            q = jj * TB + n
        re = jnp.zeros((Q, Mrows), jnp.float32).at[q, ie].set(1.0)
        ro = jnp.zeros((Q, Mrows), jnp.float32).at[q, ie + 1].set(1.0)
        rs = jnp.concatenate([re, ro], axis=0)                  # (2Q, Mrows)

        packed += [e, bt, cs, rs]

    # FC layers: PyTorch (out, in) -> (in, out); permute fc1 input rows CHW -> HWC.
    for li, (w, b) in enumerate(params["fc"]):
        wt = w.T.astype(jnp.float32)
        if li == 0:
            C3, H3, W3 = Param.Conv3_output_layers, 2, 2
            i = jnp.arange(C3 * H3 * W3)
            hh, ww, ch = i // (W3 * C3), (i // C3) % W3, i % C3
            chw = ch * (H3 * W3) + hh * W3 + ww
            wt = wt[chw, :]          # row i (HWC index) <- PyTorch row (CHW index)
        packed += [wt, b.astype(jnp.float32)[None, :]]
    return packed


# ----------------------------------------------------------------------------
# Forward pass: layout glue (transpose/pad/reshape) + ONE fused pallas_call.
# ----------------------------------------------------------------------------
def _const_index_map(ndim):
    def imap(i):
        return (0,) * ndim
    return imap


@jax.jit
def circuit_frequency_response_forward(x_nchw, kernel_operands):
    N = x_nchw.shape[0]
    assert N % TILE_BATCH == 0, "batch must be a multiple of TILE_BATCH"
    TB, S, C0 = TILE_BATCH, SPATIAL, Param.input_layers
    num_tiles = N // TB

    # NCHW -> NHWC -> zero-pad rows only -> pack (w, c) into lanes -> stack batch along sublanes.
    x = jnp.transpose(x_nchw.astype(jnp.float32), (0, 2, 3, 1))       # (N, 16, 16, C0)
    x = jnp.pad(x, ((0, 0), (1, 1), (0, 0), (0, 0)))                  # (N, 18, 16, C0)
    x = x.reshape(N, S + 2, S * C0).reshape(num_tiles, TB * (S + 2), S * C0)

    out = pl.pallas_call(
        fused_forward_kernel,
        out_shape=jax.ShapeDtypeStruct((num_tiles, TB, OUTPUT_LENGTH), jnp.float32),
        grid=(num_tiles,),
        in_specs=[pl.BlockSpec((1, TB * (S + 2), S * C0), lambda i: (i, 0, 0))]
        + [pl.BlockSpec(op.shape, _const_index_map(op.ndim)) for op in kernel_operands],
        out_specs=pl.BlockSpec((1, TB, OUTPUT_LENGTH), lambda i: (i, 0, 0)),
        compiler_params=pltpu.CompilerParams(dimension_semantics=("parallel",)),
    )(x, *kernel_operands)
    return out.reshape(N, OUTPUT_LENGTH)


# ----------------------------------------------------------------------------
# Deterministic PyTorch-convention parameter init + pure-JAX reference.
# ----------------------------------------------------------------------------
def _uniform(key, shape, fan_in):
    bound = 1.0 / jnp.sqrt(jnp.float32(fan_in))
    return jax.random.uniform(key, shape, jnp.float32, -bound, bound)


def init_params(seed=0):
    p = Param
    keys = iter(jax.random.split(jax.random.PRNGKey(seed), 20))
    conv, cin = [], p.input_layers
    for cout in (p.Conv1_output_layers, p.Conv2_output_layers, p.Conv3_output_layers):
        fan_in = cin * KS * KS
        conv.append((_uniform(next(keys), (cout, cin, KS, KS), fan_in),   # (Cout, Cin, KH, KW)
                     _uniform(next(keys), (cout,), fan_in)))
        cin = cout
    dims = [p.conv_flat_output, p.Lin1_output_layers, p.Lin2_output_layers,
            p.Lin3_output_layers, p.Lin4_output_layers, p.Lin5_output_layers, OUTPUT_LENGTH]
    fc = [(_uniform(next(keys), (dout, din), din),                         # (out, in)
           _uniform(next(keys), (dout,), din)) for din, dout in zip(dims[:-1], dims[1:])]
    return {"conv": conv, "fc": fc}


@jax.jit
def reference_forward(x_nchw, params):
    x = x_nchw.astype(jnp.float32)
    for (w, b) in params["conv"]:
        x = jax.lax.conv_general_dilated(
            x, w.astype(jnp.float32), window_strides=(1, 1), padding=((1, 1), (1, 1)),
            dimension_numbers=("NCHW", "OIHW", "NCHW"),
            precision=jax.lax.Precision.HIGHEST)
        x = jnp.maximum(x + b.reshape(1, -1, 1, 1), 0.0)
        x = jax.lax.reduce_window(x, -jnp.inf, jax.lax.max,
                                  (1, 1, 2, 2), (1, 1, 2, 2), "VALID")
    x = x.reshape(x.shape[0], -1)                      # PyTorch x.view(N, -1): CHW order
    n_fc = len(params["fc"])
    for i, (w, b) in enumerate(params["fc"]):
        x = jnp.dot(x, w.T.astype(jnp.float32), precision=jax.lax.Precision.HIGHEST) + b
        if i < n_fc - 1:
            x = jnp.maximum(x, 0.0)
    return x


if __name__ == "__main__":
    key = jax.random.PRNGKey(0)
    x = jax.random.normal(key, (BATCH, Param.input_layers, SPATIAL, SPATIAL), jnp.float32)
    params = init_params(seed=0)
    operands = pack_for_kernel(params, tile_batch=TILE_BATCH)   # one-time host-side packing

    out = circuit_frequency_response_forward(x, operands)
    out = jax.block_until_ready(out)

    assert out.shape == (BATCH, OUTPUT_LENGTH), out.shape
    assert bool(jnp.all(jnp.isfinite(out)))

    ref = reference_forward(x, params)
    scale = 1.0 + float(jnp.max(jnp.abs(ref)))
    err = float(jnp.max(jnp.abs(out - ref)))
    assert err <= 5e-2 * scale, f"mismatch vs reference: max abs err {err} (scale {scale})"

    print("KERNEL_OK")
</pallas_src>

<mosaic_0001>
module attributes {stable_mosaic.version = 11 : i64} {
  func.func @fused_forward_kernel(%arg0: i32, %arg1: memref<1x36x64xf32, #tpu.memory_space<vmem>>, %arg2: memref<3x64x128xf32, #tpu.memory_space<vmem>>, %arg3: memref<1x64xf32, #tpu.memory_space<vmem>>, %arg4: memref<128x128xf32, #tpu.memory_space<vmem>>, %arg5: memref<40x34xf32, #tpu.memory_space<vmem>>, %arg6: memref<3x64x128xf32, #tpu.memory_space<vmem>>, %arg7: memref<1x64xf32, #tpu.memory_space<vmem>>, %arg8: memref<128x128xf32, #tpu.memory_space<vmem>>, %arg9: memref<24x18xf32, #tpu.memory_space<vmem>>, %arg10: memref<3x64x128xf32, #tpu.memory_space<vmem>>, %arg11: memref<1x64xf32, #tpu.memory_space<vmem>>, %arg12: memref<128x128xf32, #tpu.memory_space<vmem>>, %arg13: memref<8x10xf32, #tpu.memory_space<vmem>>, %arg14: memref<128x128xf32, #tpu.memory_space<vmem>>, %arg15: memref<1x128xf32, #tpu.memory_space<vmem>>, %arg16: memref<128x64xf32, #tpu.memory_space<vmem>>, %arg17: memref<1x64xf32, #tpu.memory_space<vmem>>, %arg18: memref<64x64xf32, #tpu.memory_space<vmem>>, %arg19: memref<1x64xf32, #tpu.memory_space<vmem>>, %arg20: memref<64x32xf32, #tpu.memory_space<vmem>>, %arg21: memref<1x32xf32, #tpu.memory_space<vmem>>, %arg22: memref<32x32xf32, #tpu.memory_space<vmem>>, %arg23: memref<1x32xf32, #tpu.memory_space<vmem>>, %arg24: memref<32x16xf32, #tpu.memory_space<vmem>>, %arg25: memref<1x16xf32, #tpu.memory_space<vmem>>, %arg26: memref<1x2x16xf32, #tpu.memory_space<vmem>>) attributes {dimension_semantics = [#tpu.dimension_semantics<parallel>], iteration_bounds = array<i64: 1>, scalar_prefetch = 0 : i64, scratch_operands = 0 : i64, tpu.core_type = #tpu.core_type<tc>, window_params = [{transform_indices = @transform_0, window_bounds = array<i64: 1, 36, 64>}, {pipeline_mode = #tpu.pipeline_mode<synchronous>, transform_indices = @transform_1, window_bounds = array<i64: 3, 64, 128>}, {pipeline_mode = #tpu.pipeline_mode<synchronous>, transform_indices = @transform_2, window_bounds = array<i64: 1, 64>}, {pipeline_mode = #tpu.pipeline_mode<synchronous>, transform_indices = @transform_3, window_bounds = array<i64: 128, 128>}, {pipeline_mode = #tpu.pipeline_mode<synchronous>, transform_indices = @transform_4, window_bounds = array<i64: 40, 34>}, {pipeline_mode = #tpu.pipeline_mode<synchronous>, transform_indices = @transform_5, window_bounds = array<i64: 3, 64, 128>}, {pipeline_mode = #tpu.pipeline_mode<synchronous>, transform_indices = @transform_6, window_bounds = array<i64: 1, 64>}, {pipeline_mode = #tpu.pipeline_mode<synchronous>, transform_indices = @transform_7, window_bounds = array<i64: 128, 128>}, {pipeline_mode = #tpu.pipeline_mode<synchronous>, transform_indices = @transform_8, window_bounds = array<i64: 24, 18>}, {pipeline_mode = #tpu.pipeline_mode<synchronous>, transform_indices = @transform_9, window_bounds = array<i64: 3, 64, 128>}, {pipeline_mode = #tpu.pipeline_mode<synchronous>, transform_indices = @transform_10, window_bounds = array<i64: 1, 64>}, {pipeline_mode = #tpu.pipeline_mode<synchronous>, transform_indices = @transform_11, window_bounds = array<i64: 128, 128>}, {pipeline_mode = #tpu.pipeline_mode<synchronous>, transform_indices = @transform_12, window_bounds = array<i64: 8, 10>}, {pipeline_mode = #tpu.pipeline_mode<synchronous>, transform_indices = @transform_13, window_bounds = array<i64: 128, 128>}, {pipeline_mode = #tpu.pipeline_mode<synchronous>, transform_indices = @transform_14, window_bounds = array<i64: 1, 128>}, {pipeline_mode = #tpu.pipeline_mode<synchronous>, transform_indices = @transform_15, window_bounds = array<i64: 128, 64>}, {pipeline_mode = #tpu.pipeline_mode<synchronous>, transform_indices = @transform_16, window_bounds = array<i64: 1, 64>}, {pipeline_mode = #tpu.pipeline_mode<synchronous>, transform_indices = @transform_17, window_bounds = array<i64: 64, 64>}, {pipeline_mode = #tpu.pipeline_mode<synchronous>, transform_indices = @transform_18, window_bounds = array<i64: 1, 64>}, {pipeline_mode = #tpu.pipeline_mode<synchronous>, transform_indices = @transform_19, window_bounds = array<i64: 64, 32>}, {pipeline_mode = #tpu.pipeline_mode<synchronous>, transform_indices = @transform_20, window_bounds = array<i64: 1, 32>}, {pipeline_mode = #tpu.pipeline_mode<synchronous>, transform_indices = @transform_21, window_bounds = array<i64: 32, 32>}, {pipeline_mode = #tpu.pipeline_mode<synchronous>, transform_indices = @transform_22, window_bounds = array<i64: 1, 32>}, {pipeline_mode = #tpu.pipeline_mode<synchronous>, transform_indices = @transform_23, window_bounds = array<i64: 32, 16>}, {pipeline_mode = #tpu.pipeline_mode<synchronous>, transform_indices = @transform_24, window_bounds = array<i64: 1, 16>}, {transform_indices = @transform_25, window_bounds = array<i64: 1, 2, 16>}]} {
    %c0 = arith.constant 0 : index
    %c0_0 = arith.constant 0 : index
    %c0_1 = arith.constant 0 : index
    %0 = vector.load %arg1[%c0, %c0_0, %c0_1] : memref<1x36x64xf32, #tpu.memory_space<vmem>>, vector<1x36x64xf32>
    %1 = vector.shape_cast %0 : vector<1x36x64xf32> to vector<36x64xf32>
    %2 = vector.extract_strided_slice %1 {offsets = [0, 0], sizes = [34, 64], strides = [1, 1]} : vector<36x64xf32> to vector<34x64xf32>
    %c0_2 = arith.constant 0 : index
    %c0_3 = arith.constant 0 : index
    %c0_4 = arith.constant 0 : index
    %3 = vector.load %arg2[%c0_2, %c0_3, %c0_4] : memref<3x64x128xf32, #tpu.memory_space<vmem>>, vector<1x64x128xf32>
    %4 = vector.shape_cast %3 : vector<1x64x128xf32> to vector<64x128xf32>
    %cst = arith.constant dense<0.000000e+00> : vector<34x128xf32>
    %5 = tpu.matmul %2, %4, %cst {dimension_numbers = #tpu.dot_dimension_numbers<[1], [0], [0], [1], [0, 0, 1, 1], [], []>} : vector<34x64xf32>, vector<64x128xf32>, vector<34x128xf32> -> vector<34x128xf32>
    %6 = vector.extract_strided_slice %1 {offsets = [1, 0], sizes = [34, 64], strides = [1, 1]} : vector<36x64xf32> to vector<34x64xf32>
    %c1 = arith.constant 1 : index
    %c0_5 = arith.constant 0 : index
    %c0_6 = arith.constant 0 : index
    %7 = vector.load %arg2[%c1, %c0_5, %c0_6] : memref<3x64x128xf32, #tpu.memory_space<vmem>>, vector<1x64x128xf32>
    %8 = vector.shape_cast %7 : vector<1x64x128xf32> to vector<64x128xf32>
    %cst_7 = arith.constant dense<0.000000e+00> : vector<34x128xf32>
    %9 = tpu.matmul %6, %8, %cst_7 {dimension_numbers = #tpu.dot_dimension_numbers<[1], [0], [0], [1], [0, 0, 1, 1], [], []>} : vector<34x64xf32>, vector<64x128xf32>, vector<34x128xf32> -> vector<34x128xf32>
    %10 = arith.addf %5, %9 : vector<34x128xf32>
    %11 = vector.extract_strided_slice %1 {offsets = [2, 0], sizes = [34, 64], strides = [1, 1]} : vector<36x64xf32> to vector<34x64xf32>
    %c2 = arith.constant 2 : index
    %c0_8 = arith.constant 0 : index
    %c0_9 = arith.constant 0 : index
    %12 = vector.load %arg2[%c2, %c0_8, %c0_9] : memref<3x64x128xf32, #tpu.memory_space<vmem>>, vector<1x64x128xf32>
    %13 = vector.shape_cast %12 : vector<1x64x128xf32> to vector<64x128xf32>
    %cst_10 = arith.constant dense<0.000000e+00> : vector<34x128xf32>
    %14 = tpu.matmul %11, %13, %cst_10 {dimension_numbers = #tpu.dot_dimension_numbers<[1], [0], [0], [1], [0, 0, 1, 1], [], []>} : vector<34x64xf32>, vector<64x128xf32>, vector<34x128xf32> -> vector<34x128xf32>
    %15 = arith.addf %10, %14 : vector<34x128xf32>
    %c0_11 = arith.constant 0 : index
    %c0_12 = arith.constant 0 : index
    %16 = vector.load %arg4[%c0_11, %c0_12] : memref<128x128xf32, #tpu.memory_space<vmem>>, vector<128x128xf32>
    %cst_13 = arith.constant dense<0.000000e+00> : vector<34x128xf32>
    %17 = tpu.matmul %15, %16, %cst_13 {dimension_numbers = #tpu.dot_dimension_numbers<[1], [0], [0], [1], [0, 0, 1, 1], [], []>} : vector<34x128xf32>, vector<128x128xf32>, vector<34x128xf32> -> vector<34x128xf32>
    %18 = vector.extract_strided_slice %17 {offsets = [0, 0], sizes = [34, 64], strides = [1, 1]} : vector<34x128xf32> to vector<34x64xf32>
    %19 = vector.extract_strided_slice %17 {offsets = [0, 64], sizes = [34, 64], strides = [1, 1]} : vector<34x128xf32> to vector<34x64xf32>
    %20 = arith.maximumf %18, %19 : vector<34x64xf32>
    %c0_14 = arith.constant 0 : index
    %c0_15 = arith.constant 0 : index
    %21 = vector.load %arg3[%c0_14, %c0_15] : memref<1x64xf32, #tpu.memory_space<vmem>>, vector<1x64xf32>
    %22 = vector.broadcast %21 : vector<1x64xf32> to vector<34x64xf32>
    %23 = arith.addf %20, %22 : vector<34x64xf32>
    %cst_16 = arith.constant 0.000000e+00 : f32
    %24 = vector.broadcast %cst_16 : f32 to vector<34x64xf32>
    %25 = arith.maximumf %23, %24 : vector<34x64xf32>
    %c0_17 = arith.constant 0 : index
    %c0_18 = arith.constant 0 : index
    %26 = vector.load %arg5[%c0_17, %c0_18] : memref<40x34xf32, #tpu.memory_space<vmem>>, vector<40x34xf32>
    %cst_19 = arith.constant dense<0.000000e+00> : vector<40x64xf32>
    %27 = tpu.matmul %26, %25, %cst_19 {dimension_numbers = #tpu.dot_dimension_numbers<[1], [0], [0], [1], [0, 0, 1, 1], [], []>} : vector<40x34xf32>, vector<34x64xf32>, vector<40x64xf32> -> vector<40x64xf32>
    %28 = vector.extract_strided_slice %27 {offsets = [0, 0], sizes = [20, 64], strides = [1, 1]} : vector<40x64xf32> to vector<20x64xf32>
    %29 = vector.extract_strided_slice %27 {offsets = [20, 0], sizes = [20, 64], strides = [1, 1]} : vector<40x64xf32> to vector<20x64xf32>
    %30 = arith.maximumf %28, %29 : vector<20x64xf32>
    %31 = vector.extract_strided_slice %30 {offsets = [0, 0], sizes = [18, 64], strides = [1, 1]} : vector<20x64xf32> to vector<18x64xf32>
    %c0_20 = arith.constant 0 : index
    %c0_21 = arith.constant 0 : index
    %c0_22 = arith.constant 0 : index
    %32 = vector.load %arg6[%c0_20, %c0_21, %c0_22] : memref<3x64x128xf32, #tpu.memory_space<vmem>>, vector<1x64x128xf32>
    %33 = vector.shape_cast %32 : vector<1x64x128xf32> to vector<64x128xf32>
    %cst_23 = arith.constant dense<0.000000e+00> : vector<18x128xf32>
    %34 = tpu.matmul %31, %33, %cst_23 {dimension_numbers = #tpu.dot_dimension_numbers<[1], [0], [0], [1], [0, 0, 1, 1], [], []>} : vector<18x64xf32>, vector<64x128xf32>, vector<18x128xf32> -> vector<18x128xf32>
    %35 = vector.extract_strided_slice %30 {offsets = [1, 0], sizes = [18, 64], strides = [1, 1]} : vector<20x64xf32> to vector<18x64xf32>
    %c1_24 = arith.constant 1 : index
    %c0_25 = arith.constant 0 : index
    %c0_26 = arith.constant 0 : index
    %36 = vector.load %arg6[%c1_24, %c0_25, %c0_26] : memref<3x64x128xf32, #tpu.memory_space<vmem>>, vector<1x64x128xf32>
    %37 = vector.shape_cast %36 : vector<1x64x128xf32> to vector<64x128xf32>
    %cst_27 = arith.constant dense<0.000000e+00> : vector<18x128xf32>
    %38 = tpu.matmul %35, %37, %cst_27 {dimension_numbers = #tpu.dot_dimension_numbers<[1], [0], [0], [1], [0, 0, 1, 1], [], []>} : vector<18x64xf32>, vector<64x128xf32>, vector<18x128xf32> -> vector<18x128xf32>
    %39 = arith.addf %34, %38 : vector<18x128xf32>
    %40 = vector.extract_strided_slice %30 {offsets = [2, 0], sizes = [18, 64], strides = [1, 1]} : vector<20x64xf32> to vector<18x64xf32>
    %c2_28 = arith.constant 2 : index
    %c0_29 = arith.constant 0 : index
    %c0_30 = arith.constant 0 : index
    %41 = vector.load %arg6[%c2_28, %c0_29, %c0_30] : memref<3x64x128xf32, #tpu.memory_space<vmem>>, vector<1x64x128xf32>
    %42 = vector.shape_cast %41 : vector<1x64x128xf32> to vector<64x128xf32>
    %cst_31 = arith.constant dense<0.000000e+00> : vector<18x128xf32>
    %43 = tpu.matmul %40, %42, %cst_31 {dimension_numbers = #tpu.dot_dimension_numbers<[1], [0], [0], [1], [0, 0, 1, 1], [], []>} : vector<18x64xf32>, vector<64x128xf32>, vector<18x128xf32> -> vector<18x128xf32>
    %44 = arith.addf %39, %43 : vector<18x128xf32>
    %c0_32 = arith.constant 0 : index
    %c0_33 = arith.constant 0 : index
    %45 = vector.load %arg8[%c0_32, %c0_33] : memref<128x128xf32, #tpu.memory_space<vmem>>, vector<128x128xf32>
    %cst_34 = arith.constant dense<0.000000e+00> : vector<18x128xf32>
    %46 = tpu.matmul %44, %45, %cst_34 {dimension_numbers = #tpu.dot_dimension_numbers<[1], [0], [0], [1], [0, 0, 1, 1], [], []>} : vector<18x128xf32>, vector<128x128xf32>, vector<18x128xf32> -> vector<18x128xf32>
    %47 = vector.extract_strided_slice %46 {offsets = [0, 0], sizes = [18, 64], strides = [1, 1]} : vector<18x128xf32> to vector<18x64xf32>
    %48 = vector.extract_strided_slice %46 {offsets = [0, 64], sizes = [18, 64], strides = [1, 1]} : vector<18x128xf32> to vector<18x64xf32>
    %49 = arith.maximumf %47, %48 : vector<18x64xf32>
    %c0_35 = arith.constant 0 : index
    %c0_36 = arith.constant 0 : index
    %50 = vector.load %arg7[%c0_35, %c0_36] : memref<1x64xf32, #tpu.memory_space<vmem>>, vector<1x64xf32>
    %51 = vector.broadcast %50 : vector<1x64xf32> to vector<18x64xf32>
    %52 = arith.addf %49, %51 : vector<18x64xf32>
    %cst_37 = arith.constant 0.000000e+00 : f32
    %53 = vector.broadcast %cst_37 : f32 to vector<18x64xf32>
    %54 = arith.maximumf %52, %53 : vector<18x64xf32>
    %c0_38 = arith.constant 0 : index
    %c0_39 = arith.constant 0 : index
    %55 = vector.load %arg9[%c0_38, %c0_39] : memref<24x18xf32, #tpu.memory_space<vmem>>, vector<24x18xf32>
    %cst_40 = arith.constant dense<0.000000e+00> : vector<24x64xf32>
    %56 = tpu.matmul %55, %54, %cst_40 {dimension_numbers = #tpu.dot_dimension_numbers<[1], [0], [0], [1], [0, 0, 1, 1], [], []>} : vector<24x18xf32>, vector<18x64xf32>, vector<24x64xf32> -> vector<24x64xf32>
    %57 = vector.extract_strided_slice %56 {offsets = [0, 0], sizes = [12, 64], strides = [1, 1]} : vector<24x64xf32> to vector<12x64xf32>
    %58 = vector.extract_strided_slice %56 {offsets = [12, 0], sizes = [12, 64], strides = [1, 1]} : vector<24x64xf32> to vector<12x64xf32>
    %59 = arith.maximumf %57, %58 : vector<12x64xf32>
    %60 = vector.extract_strided_slice %59 {offsets = [0, 0], sizes = [10, 64], strides = [1, 1]} : vector<12x64xf32> to vector<10x64xf32>
    %c0_41 = arith.constant 0 : index
    %c0_42 = arith.constant 0 : index
    %c0_43 = arith.constant 0 : index
    %61 = vector.load %arg10[%c0_41, %c0_42, %c0_43] : memref<3x64x128xf32, #tpu.memory_space<vmem>>, vector<1x64x128xf32>
    %62 = vector.shape_cast %61 : vector<1x64x128xf32> to vector<64x128xf32>
    %cst_44 = arith.constant dense<0.000000e+00> : vector<10x128xf32>
    %63 = tpu.matmul %60, %62, %cst_44 {dimension_numbers = #tpu.dot_dimension_numbers<[1], [0], [0], [1], [0, 0, 1, 1], [], []>} : vector<10x64xf32>, vector<64x128xf32>, vector<10x128xf32> -> vector<10x128xf32>
    %64 = vector.extract_strided_slice %59 {offsets = [1, 0], sizes = [10, 64], strides = [1, 1]} : vector<12x64xf32> to vector<10x64xf32>
    %c1_45 = arith.constant 1 : index
    %c0_46 = arith.constant 0 : index
    %c0_47 = arith.constant 0 : index
    %65 = vector.load %arg10[%c1_45, %c0_46, %c0_47] : memref<3x64x128xf32, #tpu.memory_space<vmem>>, vector<1x64x128xf32>
    %66 = vector.shape_cast %65 : vector<1x64x128xf32> to vector<64x128xf32>
    %cst_48 = arith.constant dense<0.000000e+00> : vector<10x128xf32>
    %67 = tpu.matmul %64, %66, %cst_48 {dimension_numbers = #tpu.dot_dimension_numbers<[1], [0], [0], [1], [0, 0, 1, 1], [], []>} : vector<10x64xf32>, vector<64x128xf32>, vector<10x128xf32> -> vector<10x128xf32>
    %68 = arith.addf %63, %67 : vector<10x128xf32>
    %69 = vector.extract_strided_slice %59 {offsets = [2, 0], sizes = [10, 64], strides = [1, 1]} : vector<12x64xf32> to vector<10x64xf32>
    %c2_49 = arith.constant 2 : index
    %c0_50 = arith.constant 0 : index
    %c0_51 = arith.constant 0 : index
    %70 = vector.load %arg10[%c2_49, %c0_50, %c0_51] : memref<3x64x128xf32, #tpu.memory_space<vmem>>, vector<1x64x128xf32>
    %71 = vector.shape_cast %70 : vector<1x64x128xf32> to vector<64x128xf32>
    %cst_52 = arith.constant dense<0.000000e+00> : vector<10x128xf32>
    %72 = tpu.matmul %69, %71, %cst_52 {dimension_numbers = #tpu.dot_dimension_numbers<[1], [0], [0], [1], [0, 0, 1, 1], [], []>} : vector<10x64xf32>, vector<64x128xf32>, vector<10x128xf32> -> vector<10x128xf32>
    %73 = arith.addf %68, %72 : vector<10x128xf32>
    %c0_53 = arith.constant 0 : index
    %c0_54 = arith.constant 0 : index
    %74 = vector.load %arg12[%c0_53, %c0_54] : memref<128x128xf32, #tpu.memory_space<vmem>>, vector<128x128xf32>
    %cst_55 = arith.constant dense<0.000000e+00> : vector<10x128xf32>
    %75 = tpu.matmul %73, %74, %cst_55 {dimension_numbers = #tpu.dot_dimension_numbers<[1], [0], [0], [1], [0, 0, 1, 1], [], []>} : vector<10x128xf32>, vector<128x128xf32>, vector<10x128xf32> -> vector<10x128xf32>
    %76 = vector.extract_strided_slice %75 {offsets = [0, 0], sizes = [10, 64], strides = [1, 1]} : vector<10x128xf32> to vector<10x64xf32>
    %77 = vector.extract_strided_slice %75 {offsets = [0, 64], sizes = [10, 64], strides = [1, 1]} : vector<10x128xf32> to vector<10x64xf32>
    %78 = arith.maximumf %76, %77 : vector<10x64xf32>
    %c0_56 = arith.constant 0 : index
    %c0_57 = arith.constant 0 : index
    %79 = vector.load %arg11[%c0_56, %c0_57] : memref<1x64xf32, #tpu.memory_space<vmem>>, vector<1x64xf32>
    %80 = vector.broadcast %79 : vector<1x64xf32> to vector<10x64xf32>
    %81 = arith.addf %78, %80 : vector<10x64xf32>
    %cst_58 = arith.constant 0.000000e+00 : f32
    %82 = vector.broadcast %cst_58 : f32 to vector<10x64xf32>
    %83 = arith.maximumf %81, %82 : vector<10x64xf32>
    %c0_59 = arith.constant 0 : index
    %c0_60 = arith.constant 0 : index
    %84 = vector.load %arg13[%c0_59, %c0_60] : memref<8x10xf32, #tpu.memory_space<vmem>>, vector<8x10xf32>
    %cst_61 = arith.constant dense<0.000000e+00> : vector<8x64xf32>
    %85 = tpu.matmul %84, %83, %cst_61 {dimension_numbers = #tpu.dot_dimension_numbers<[1], [0], [0], [1], [0, 0, 1, 1], [], []>} : vector<8x10xf32>, vector<10x64xf32>, vector<8x64xf32> -> vector<8x64xf32>
    %86 = vector.extract_strided_slice %85 {offsets = [0, 0], sizes = [4, 64], strides = [1, 1]} : vector<8x64xf32> to vector<4x64xf32>
    %87 = vector.extract_strided_slice %85 {offsets = [4, 0], sizes = [4, 64], strides = [1, 1]} : vector<8x64xf32> to vector<4x64xf32>
    %88 = arith.maximumf %86, %87 : vector<4x64xf32>
    %89 = vector.extract_strided_slice %88 {offsets = [0, 0], sizes = [2, 64], strides = [1, 1]} : vector<4x64xf32> to vector<2x64xf32>
    %90 = vector.extract_strided_slice %88 {offsets = [2, 0], sizes = [2, 64], strides = [1, 1]} : vector<4x64xf32> to vector<2x64xf32>
    %91 = tpu.concatenate %89, %90 in 1 : vector<2x64xf32>, vector<2x64xf32> -> vector<2x128xf32>
    %c0_62 = arith.constant 0 : index
    %c0_63 = arith.constant 0 : index
    %92 = vector.load %arg14[%c0_62, %c0_63] : memref<128x128xf32, #tpu.memory_space<vmem>>, vector<128x128xf32>
    %cst_64 = arith.constant dense<0.000000e+00> : vector<2x128xf32>
    %93 = tpu.matmul %91, %92, %cst_64 {dimension_numbers = #tpu.dot_dimension_numbers<[1], [0], [0], [1], [0, 0, 1, 1], [], []>} : vector<2x128xf32>, vector<128x128xf32>, vector<2x128xf32> -> vector<2x128xf32>
    %c0_65 = arith.constant 0 : index
    %c0_66 = arith.constant 0 : index
    %94 = vector.load %arg15[%c0_65, %c0_66] : memref<1x128xf32, #tpu.memory_space<vmem>>, vector<1x128xf32>
    %95 = vector.broadcast %94 : vector<1x128xf32> to vector<2x128xf32>
    %96 = arith.addf %93, %95 : vector<2x128xf32>
    %cst_67 = arith.constant 0.000000e+00 : f32
    %97 = vector.broadcast %cst_67 : f32 to vector<2x128xf32>
    %98 = arith.maximumf %96, %97 : vector<2x128xf32>
    %c0_68 = arith.constant 0 : index
    %c0_69 = arith.constant 0 : index
    %99 = vector.load %arg16[%c0_68, %c0_69] : memref<128x64xf32, #tpu.memory_space<vmem>>, vector<128x64xf32>
    %cst_70 = arith.constant dense<0.000000e+00> : vector<2x64xf32>
    %100 = tpu.matmul %98, %99, %cst_70 {dimension_numbers = #tpu.dot_dimension_numbers<[1], [0], [0], [1], [0, 0, 1, 1], [], []>} : vector<2x128xf32>, vector<128x64xf32>, vector<2x64xf32> -> vector<2x64xf32>
    %c0_71 = arith.constant 0 : index
    %c0_72 = arith.constant 0 : index
    %101 = vector.load %arg17[%c0_71, %c0_72] : memref<1x64xf32, #tpu.memory_space<vmem>>, vector<1x64xf32>
    %102 = vector.broadcast %101 : vector<1x64xf32> to vector<2x64xf32>
    %103 = arith.addf %100, %102 : vector<2x64xf32>
    %cst_73 = arith.constant 0.000000e+00 : f32
    %104 = vector.broadcast %cst_73 : f32 to vector<2x64xf32>
    %105 = arith.maximumf %103, %104 : vector<2x64xf32>
    %c0_74 = arith.constant 0 : index
    %c0_75 = arith.constant 0 : index
    %106 = vector.load %arg18[%c0_74, %c0_75] : memref<64x64xf32, #tpu.memory_space<vmem>>, vector<64x64xf32>
    %cst_76 = arith.constant dense<0.000000e+00> : vector<2x64xf32>
    %107 = tpu.matmul %105, %106, %cst_76 {dimension_numbers = #tpu.dot_dimension_numbers<[1], [0], [0], [1], [0, 0, 1, 1], [], []>} : vector<2x64xf32>, vector<64x64xf32>, vector<2x64xf32> -> vector<2x64xf32>
    %c0_77 = arith.constant 0 : index
    %c0_78 = arith.constant 0 : index
    %108 = vector.load %arg19[%c0_77, %c0_78] : memref<1x64xf32, #tpu.memory_space<vmem>>, vector<1x64xf32>
    %109 = vector.broadcast %108 : vector<1x64xf32> to vector<2x64xf32>
    %110 = arith.addf %107, %109 : vector<2x64xf32>
    %cst_79 = arith.constant 0.000000e+00 : f32
    %111 = vector.broadcast %cst_79 : f32 to vector<2x64xf32>
    %112 = arith.maximumf %110, %111 : vector<2x64xf32>
    %c0_80 = arith.constant 0 : index
    %c0_81 = arith.constant 0 : index
    %113 = vector.load %arg20[%c0_80, %c0_81] : memref<64x32xf32, #tpu.memory_space<vmem>>, vector<64x32xf32>
    %cst_82 = arith.constant dense<0.000000e+00> : vector<2x32xf32>
    %114 = tpu.matmul %112, %113, %cst_82 {dimension_numbers = #tpu.dot_dimension_numbers<[1], [0], [0], [1], [0, 0, 1, 1], [], []>} : vector<2x64xf32>, vector<64x32xf32>, vector<2x32xf32> -> vector<2x32xf32>
    %c0_83 = arith.constant 0 : index
    %c0_84 = arith.constant 0 : index
    %115 = vector.load %arg21[%c0_83, %c0_84] : memref<1x32xf32, #tpu.memory_space<vmem>>, vector<1x32xf32>
    %116 = vector.broadcast %115 : vector<1x32xf32> to vector<2x32xf32>
    %117 = arith.addf %114, %116 : vector<2x32xf32>
    %cst_85 = arith.constant 0.000000e+00 : f32
    %118 = vector.broadcast %cst_85 : f32 to vector<2x32xf32>
    %119 = arith.maximumf %117, %118 : vector<2x32xf32>
    %c0_86 = arith.constant 0 : index
    %c0_87 = arith.constant 0 : index
    %120 = vector.load %arg22[%c0_86, %c0_87] : memref<32x32xf32, #tpu.memory_space<vmem>>, vector<32x32xf32>
    %cst_88 = arith.constant dense<0.000000e+00> : vector<2x32xf32>
    %121 = tpu.matmul %119, %120, %cst_88 {dimension_numbers = #tpu.dot_dimension_numbers<[1], [0], [0], [1], [0, 0, 1, 1], [], []>} : vector<2x32xf32>, vector<32x32xf32>, vector<2x32xf32> -> vector<2x32xf32>
    %c0_89 = arith.constant 0 : index
    %c0_90 = arith.constant 0 : index
    %122 = vector.load %arg23[%c0_89, %c0_90] : memref<1x32xf32, #tpu.memory_space<vmem>>, vector<1x32xf32>
    %123 = vector.broadcast %122 : vector<1x32xf32> to vector<2x32xf32>
    %124 = arith.addf %121, %123 : vector<2x32xf32>
    %cst_91 = arith.constant 0.000000e+00 : f32
    %125 = vector.broadcast %cst_91 : f32 to vector<2x32xf32>
    %126 = arith.maximumf %124, %125 : vector<2x32xf32>
    %c0_92 = arith.constant 0 : index
    %c0_93 = arith.constant 0 : index
    %127 = vector.load %arg24[%c0_92, %c0_93] : memref<32x16xf32, #tpu.memory_space<vmem>>, vector<32x16xf32>
    %cst_94 = arith.constant dense<0.000000e+00> : vector<2x16xf32>
    %128 = tpu.matmul %126, %127, %cst_94 {dimension_numbers = #tpu.dot_dimension_numbers<[1], [0], [0], [1], [0, 0, 1, 1], [], []>} : vector<2x32xf32>, vector<32x16xf32>, vector<2x16xf32> -> vector<2x16xf32>
    %c0_95 = arith.constant 0 : index
    %c0_96 = arith.constant 0 : index
    %129 = vector.load %arg25[%c0_95, %c0_96] : memref<1x16xf32, #tpu.memory_space<vmem>>, vector<1x16xf32>
    %130 = vector.broadcast %129 : vector<1x16xf32> to vector<2x16xf32>
    %131 = arith.addf %128, %130 : vector<2x16xf32>
    %c0_97 = arith.constant 0 : index
    %c0_98 = arith.constant 0 : index
    %c0_99 = arith.constant 0 : index
    %132 = vector.load %arg26[%c0_97, %c0_98, %c0_99] : memref<1x2x16xf32, #tpu.memory_space<vmem>>, vector<1x2x16xf32>
    %133 = vector.shape_cast %132 : vector<1x2x16xf32> to vector<2x16xf32>
    %134 = vector.shape_cast %131 : vector<2x16xf32> to vector<1x2x16xf32>
    tpu.vector_store %arg26[%c0_97, %c0_98, %c0_99], %134 {strides = array<i32>} : memref<1x2x16xf32, #tpu.memory_space<vmem>>, vector<1x2x16xf32>,
    return
  }
  func.func @transform_0(%arg0: i32) -> (i32, i32, i32) {
    %c0_i32 = arith.constant 0 : i32
    %c0_i32_0 = arith.constant 0 : i32
    %c0_i32_1 = arith.constant 0 : i32
    return %arg0, %c0_i32, %c0_i32_0 : i32, i32, i32
  }
  func.func @transform_1(%arg0: i32) -> (i32, i32, i32) {
    %c0_i32 = arith.constant 0 : i32
    %c0_i32_0 = arith.constant 0 : i32
    %c0_i32_1 = arith.constant 0 : i32
    %c0_i32_2 = arith.constant 0 : i32
    return %c0_i32, %c0_i32_0, %c0_i32_1 : i32, i32, i32
  }
  func.func @transform_2(%arg0: i32) -> (i32, i32) {
    %c0_i32 = arith.constant 0 : i32
    %c0_i32_0 = arith.constant 0 : i32
    %c0_i32_1 = arith.constant 0 : i32
    return %c0_i32, %c0_i32_0 : i32, i32
  }
  func.func @transform_3(%arg0: i32) -> (i32, i32) {
    %c0_i32 = arith.constant 0 : i32
    %c0_i32_0 = arith.constant 0 : i32
    %c0_i32_1 = arith.constant 0 : i32
    return %c0_i32, %c0_i32_0 : i32, i32
  }
  func.func @transform_4(%arg0: i32) -> (i32, i32) {
    %c0_i32 = arith.constant 0 : i32
    %c0_i32_0 = arith.constant 0 : i32
    %c0_i32_1 = arith.constant 0 : i32
    return %c0_i32, %c0_i32_0 : i32, i32
  }
  func.func @transform_5(%arg0: i32) -> (i32, i32, i32) {
    %c0_i32 = arith.constant 0 : i32
    %c0_i32_0 = arith.constant 0 : i32
    %c0_i32_1 = arith.constant 0 : i32
    %c0_i32_2 = arith.constant 0 : i32
    return %c0_i32, %c0_i32_0, %c0_i32_1 : i32, i32, i32
  }
  func.func @transform_6(%arg0: i32) -> (i32, i32) {
    %c0_i32 = arith.constant 0 : i32
    %c0_i32_0 = arith.constant 0 : i32
    %c0_i32_1 = arith.constant 0 : i32
    return %c0_i32, %c0_i32_0 : i32, i32
  }
  func.func @transform_7(%arg0: i32) -> (i32, i32) {
    %c0_i32 = arith.constant 0 : i32
    %c0_i32_0 = arith.constant 0 : i32
    %c0_i32_1 = arith.constant 0 : i32
    return %c0_i32, %c0_i32_0 : i32, i32
  }
  func.func @transform_8(%arg0: i32) -> (i32, i32) {
    %c0_i32 = arith.constant 0 : i32
    %c0_i32_0 = arith.constant 0 : i32
    %c0_i32_1 = arith.constant 0 : i32
    return %c0_i32, %c0_i32_0 : i32, i32
  }
  func.func @transform_9(%arg0: i32) -> (i32, i32, i32) {
    %c0_i32 = arith.constant 0 : i32
    %c0_i32_0 = arith.constant 0 : i32
    %c0_i32_1 = arith.constant 0 : i32
    %c0_i32_2 = arith.constant 0 : i32
    return %c0_i32, %c0_i32_0, %c0_i32_1 : i32, i32, i32
  }
  func.func @transform_10(%arg0: i32) -> (i32, i32) {
    %c0_i32 = arith.constant 0 : i32
    %c0_i32_0 = arith.constant 0 : i32
    %c0_i32_1 = arith.constant 0 : i32
    return %c0_i32, %c0_i32_0 : i32, i32
  }
  func.func @transform_11(%arg0: i32) -> (i32, i32) {
    %c0_i32 = arith.constant 0 : i32
    %c0_i32_0 = arith.constant 0 : i32
    %c0_i32_1 = arith.constant 0 : i32
    return %c0_i32, %c0_i32_0 : i32, i32
  }
  func.func @transform_12(%arg0: i32) -> (i32, i32) {
    %c0_i32 = arith.constant 0 : i32
    %c0_i32_0 = arith.constant 0 : i32
    %c0_i32_1 = arith.constant 0 : i32
    return %c0_i32, %c0_i32_0 : i32, i32
  }
  func.func @transform_13(%arg0: i32) -> (i32, i32) {
    %c0_i32 = arith.constant 0 : i32
    %c0_i32_0 = arith.constant 0 : i32
    %c0_i32_1 = arith.constant 0 : i32
    return %c0_i32, %c0_i32_0 : i32, i32
  }
  func.func @transform_14(%arg0: i32) -> (i32, i32) {
    %c0_i32 = arith.constant 0 : i32
    %c0_i32_0 = arith.constant 0 : i32
    %c0_i32_1 = arith.constant 0 : i32
    return %c0_i32, %c0_i32_0 : i32, i32
  }
  func.func @transform_15(%arg0: i32) -> (i32, i32) {
    %c0_i32 = arith.constant 0 : i32
    %c0_i32_0 = arith.constant 0 : i32
    %c0_i32_1 = arith.constant 0 : i32
    return %c0_i32, %c0_i32_0 : i32, i32
  }
  func.func @transform_16(%arg0: i32) -> (i32, i32) {
    %c0_i32 = arith.constant 0 : i32
    %c0_i32_0 = arith.constant 0 : i32
    %c0_i32_1 = arith.constant 0 : i32
    return %c0_i32, %c0_i32_0 : i32, i32
  }
  func.func @transform_17(%arg0: i32) -> (i32, i32) {
    %c0_i32 = arith.constant 0 : i32
    %c0_i32_0 = arith.constant 0 : i32
    %c0_i32_1 = arith.constant 0 : i32
    return %c0_i32, %c0_i32_0 : i32, i32
  }
  func.func @transform_18(%arg0: i32) -> (i32, i32) {
    %c0_i32 = arith.constant 0 : i32
    %c0_i32_0 = arith.constant 0 : i32
    %c0_i32_1 = arith.constant 0 : i32
    return %c0_i32, %c0_i32_0 : i32, i32
  }
  func.func @transform_19(%arg0: i32) -> (i32, i32) {
    %c0_i32 = arith.constant 0 : i32
    %c0_i32_0 = arith.constant 0 : i32
    %c0_i32_1 = arith.constant 0 : i32
    return %c0_i32, %c0_i32_0 : i32, i32
  }
  func.func @transform_20(%arg0: i32) -> (i32, i32) {
    %c0_i32 = arith.constant 0 : i32
    %c0_i32_0 = arith.constant 0 : i32
    %c0_i32_1 = arith.constant 0 : i32
    return %c0_i32, %c0_i32_0 : i32, i32
  }
  func.func @transform_21(%arg0: i32) -> (i32, i32) {
    %c0_i32 = arith.constant 0 : i32
    %c0_i32_0 = arith.constant 0 : i32
    %c0_i32_1 = arith.constant 0 : i32
    return %c0_i32, %c0_i32_0 : i32, i32
  }
  func.func @transform_22(%arg0: i32) -> (i32, i32) {
    %c0_i32 = arith.constant 0 : i32
    %c0_i32_0 = arith.constant 0 : i32
    %c0_i32_1 = arith.constant 0 : i32
    return %c0_i32, %c0_i32_0 : i32, i32
  }
  func.func @transform_23(%arg0: i32) -> (i32, i32) {
    %c0_i32 = arith.constant 0 : i32
    %c0_i32_0 = arith.constant 0 : i32
    %c0_i32_1 = arith.constant 0 : i32
    return %c0_i32, %c0_i32_0 : i32, i32
  }
  func.func @transform_24(%arg0: i32) -> (i32, i32) {
    %c0_i32 = arith.constant 0 : i32
    %c0_i32_0 = arith.constant 0 : i32
    %c0_i32_1 = arith.constant 0 : i32
    return %c0_i32, %c0_i32_0 : i32, i32
  }
  func.func @transform_25(%arg0: i32) -> (i32, i32, i32) {
    %c0_i32 = arith.constant 0 : i32
    %c0_i32_0 = arith.constant 0 : i32
    %c0_i32_1 = arith.constant 0 : i32
    return %arg0, %c0_i32, %c0_i32_0 : i32, i32, i32
  }
}

</mosaic_0001>

<llo_original>
// kernel: circuit_frequency_response_forward.1
$region0: #{circuit_frequency_response_forward.1}
  #allocation0 [shape = 'u32[]', space=smem, size = 0x4, offset = 0x4, fixed_abs, tag = 'smem constant byte address 0x4 - core index']
  #allocation1 [shape = 'u32[144,128]{1,0:T(1,128)}', space=vmem, size = 0x12000, scoped, tag = 'internal scratch']
  %s0 = inlined_call_operand.vmem [shape: f32[1,36,64], index: 0, kind: input, shape index: {}]
  %s1 = inlined_call_operand.vmem [shape: f32[3,64,128], index: 1, kind: input, shape index: {}]
  %s2 = inlined_call_operand.vmem [shape: f32[1,64], index: 2, kind: input, shape index: {}]
  %s3 = inlined_call_operand.vmem [shape: f32[128,128], index: 3, kind: input, shape index: {}]
  %s4 = inlined_call_operand.hbm [shape: f32[40,34], index: 4, kind: input, shape index: {}]
  %s5 = inlined_call_operand.vmem [shape: f32[3,64,128], index: 5, kind: input, shape index: {}]
  %s6 = inlined_call_operand.vmem [shape: f32[1,64], index: 6, kind: input, shape index: {}]
  %s7 = inlined_call_operand.vmem [shape: f32[128,128], index: 7, kind: input, shape index: {}]
  %s8 = inlined_call_operand.hbm [shape: f32[24,18], index: 8, kind: input, shape index: {}]
  %s9 = inlined_call_operand.vmem [shape: f32[3,64,128], index: 9, kind: input, shape index: {}]
  %s10 = inlined_call_operand.vmem [shape: f32[1,64], index: 10, kind: input, shape index: {}]
  %s11 = inlined_call_operand.vmem [shape: f32[128,128], index: 11, kind: input, shape index: {}]
  %s12 = inlined_call_operand.hbm [shape: f32[8,10], index: 12, kind: input, shape index: {}]
  %s13 = inlined_call_operand.vmem [shape: f32[128,128], index: 13, kind: input, shape index: {}]
  %s14 = inlined_call_operand.vmem [shape: f32[1,128], index: 14, kind: input, shape index: {}]
  %s15 = inlined_call_operand.vmem [shape: f32[128,64], index: 15, kind: input, shape index: {}]
  %s16 = inlined_call_operand.vmem [shape: f32[1,64], index: 16, kind: input, shape index: {}]
  %s17 = inlined_call_operand.hbm [shape: f32[64,64], index: 17, kind: input, shape index: {}]
  %s18 = inlined_call_operand.hbm [shape: f32[1,64], index: 18, kind: input, shape index: {}]
  %s19 = inlined_call_operand.vmem [shape: f32[64,32], index: 19, kind: input, shape index: {}]
  %s20 = inlined_call_operand.hbm [shape: f32[1,32], index: 20, kind: input, shape index: {}]
  %s21 = inlined_call_operand.hbm [shape: f32[32,32], index: 21, kind: input, shape index: {}]
  %s22 = inlined_call_operand.hbm [shape: f32[1,32], index: 22, kind: input, shape index: {}]
  %s23 = inlined_call_operand.vmem [shape: f32[32,16], index: 23, kind: input, shape index: {}]
  %s24 = inlined_call_operand.hbm [shape: f32[1,16], index: 24, kind: input, shape index: {}]
  %s25 = inlined_call_operand.hbm [shape: f32[1,2,16], index: 25, kind: output, shape index: {}]
  %s26 = sld [smem:[#allocation0]]
  $region146: #{circuit_frequency_response_forward.1} parent=0
    _
  %s28 = ssub.s32 1, %s26
  %s29 = scalar_select 0, %s28, %s26
  $region1: #{circuit_frequency_response_forward.1} parent=0
    #allocation2 [shape = 'u8[20480]{0}', space=vmem, size = 0x5000, scoped, tag = 'input window, operand 4, single buffered']
    #allocation3 [shape = 's32[1]{0}', space=sflag, size = 0x4, scoped, tag = 'scoped memory for circuit_frequency_response_forward.1']
    #allocation4 [shape = 's32[1]{0}', space=sflag, size = 0x4, scoped, tag = 'scoped memory for circuit_frequency_response_forward.1']
    #allocation5 [shape = 'u8[12288]{0}', space=vmem, size = 0x3000, scoped, tag = 'input window, operand 8, single buffered']
    #allocation6 [shape = 's32[1]{0}', space=sflag, size = 0x4, scoped, tag = 'scoped memory for circuit_frequency_response_forward.1']
    #allocation7 [shape = 'u8[4096]{0}', space=vmem, size = 0x1000, scoped, tag = 'input window, operand 12, single buffered']
    #allocation8 [shape = 'u8[32768]{0}', space=vmem, size = 0x8000, scoped, tag = 'input window, operand 17, single buffered']
    #allocation9 [shape = 's32[1]{0}', space=sflag, size = 0x4, scoped, tag = 'scoped memory for circuit_frequency_response_forward.1']
    #allocation10 [shape = 'u8[512]{0}', space=vmem, size = 0x400, scoped, tag = 'input window, operand 18, single buffered']
    #allocation11 [shape = 'u8[512]{0}', space=vmem, size = 0x400, scoped, tag = 'input window, operand 20, single buffered']
    #allocation12 [shape = 's32[1]{0}', space=sflag, size = 0x4, scoped, tag = 'scoped memory for circuit_frequency_response_forward.1']
    #allocation13 [shape = 'u8[16384]{0}', space=vmem, size = 0x4000, scoped, tag = 'input window, operand 21, single buffered']
    #allocation14 [shape = 'u8[512]{0}', space=vmem, size = 0x400, scoped, tag = 'input window, operand 22, single buffered']
    #allocation15 [shape = 's32[1]{0}', space=sflag, size = 0x4, scoped, tag = 'scoped memory for circuit_frequency_response_forward.1']
    #allocation16 [shape = 'u8[512]{0}', space=vmem, size = 0x400, scoped, tag = 'input window, operand 24, single buffered']
    #allocation17 [shape = 'u8[1024]{0}', space=vmem, size = 0x400, scoped, tag = 'output window, operand 0, single buffered']
    %30 = vsyncpa [#allocation3], 0
    %31 = vsyncpa [#allocation6], 0
    %32 = vsyncpa [#allocation9], 0
    %33 = vsyncpa [#allocation12], 0
    %34 = vsyncpa [#allocation15], 0
    %35 = vsyncpa [#allocation4], 0
    // Predicated region
    $region2: #{circuit_frequency_response_forward.1} parent=1 // pred_check
      _
    $region3: #{circuit_frequency_response_forward.1} parent=1 // pred_check_branch
      %37 = sbr.rel (0) target = $region5
    $region4: #{circuit_frequency_response_forward.1} parent=1 // pred_region
      _
    $region5: #{circuit_frequency_response_forward.1} parent=1 // pred_fallthru
      _
    // Predicated region
    $region6: #{circuit_frequency_response_forward.1} parent=1 // pred_check
      _
    $region7: #{circuit_frequency_response_forward.1} parent=1 // pred_check_branch
      %39 = sbr.rel (0) target = $region9
    $region8: #{circuit_frequency_response_forward.1} parent=1 // pred_region
      _
    $region9: #{circuit_frequency_response_forward.1} parent=1 // pred_fallthru
      _
    // Predicated region
    $region10: #{circuit_frequency_response_forward.1} parent=1 // pred_check
      _
    $region11: #{circuit_frequency_response_forward.1} parent=1 // pred_check_branch
      %41 = sbr.rel (0) target = $region13
    $region12: #{circuit_frequency_response_forward.1} parent=1 // pred_region
      _
    $region13: #{circuit_frequency_response_forward.1} parent=1 // pred_fallthru
      _
    // Predicated region
    $region14: #{circuit_frequency_response_forward.1} parent=1 // pred_check
      _
    $region15: #{circuit_frequency_response_forward.1} parent=1 // pred_check_branch
      %43 = sbr.rel (0) target = $region17
    $region16: #{circuit_frequency_response_forward.1} parent=1 // pred_region
      _
    $region17: #{circuit_frequency_response_forward.1} parent=1 // pred_fallthru
      _
    // Predicated region
    $region18: #{circuit_frequency_response_forward.1} parent=1 // pred_check
      _
    $region19: #{circuit_frequency_response_forward.1} parent=1 // pred_check_branch
      %45 = sbr.rel (0) target = $region21
    $region20: #{circuit_frequency_response_forward.1} parent=1 // pred_region
      %s47 = ssub.s32 640, 640
      %48 = vsyncadd [#allocation3], %s47
      %s49 = sshll.u32 [#allocation2], 4
      %s50 = int_to_ptr.vmem [resolvable:$true] %s49
      %55 = dma.hbm_to_vmem [thread:$0]  %s4, 640, %s50, [#allocation3], 128, 128, 8
    $region21: #{circuit_frequency_response_forward.1} parent=1 // pred_fallthru
      _
    // Predicated region
    $region22: #{circuit_frequency_response_forward.1} parent=1 // pred_check
      _
    $region23: #{circuit_frequency_response_forward.1} parent=1 // pred_check_branch
      %57 = sbr.rel (0) target = $region25
    $region24: #{circuit_frequency_response_forward.1} parent=1 // pred_region
      _
    $region25: #{circuit_frequency_response_forward.1} parent=1 // pred_fallthru
      _
    // Predicated region
    $region26: #{circuit_frequency_response_forward.1} parent=1 // pred_check
      _
    $region27: #{circuit_frequency_response_forward.1} parent=1 // pred_check_branch
      %59 = sbr.rel (0) target = $region29
    $region28: #{circuit_frequency_response_forward.1} parent=1 // pred_region
      _
    $region29: #{circuit_frequency_response_forward.1} parent=1 // pred_fallthru
      _
    // Predicated region
    $region30: #{circuit_frequency_response_forward.1} parent=1 // pred_check
      _
    $region31: #{circuit_frequency_response_forward.1} parent=1 // pred_check_branch
      %61 = sbr.rel (0) target = $region33
    $region32: #{circuit_frequency_response_forward.1} parent=1 // pred_region
      _
    $region33: #{circuit_frequency_response_forward.1} parent=1 // pred_fallthru
      _
    // Predicated region
    $region34: #{circuit_frequency_response_forward.1} parent=1 // pred_check
      _
    $region35: #{circuit_frequency_response_forward.1} parent=1 // pred_check_branch
      %63 = sbr.rel (0) target = $region37
    $region36: #{circuit_frequency_response_forward.1} parent=1 // pred_region
      %s65 = ssub.s32 384, 384
      %66 = vsyncadd [#allocation6], %s65
      %s67 = sshll.u32 [#allocation5], 4
      %s68 = int_to_ptr.vmem [resolvable:$true] %s67
      %73 = dma.hbm_to_vmem [thread:$0]  %s8, 384, %s68, [#allocation6], 128, 128, 8
    $region37: #{circuit_frequency_response_forward.1} parent=1 // pred_fallthru
      _
    // Predicated region
    $region38: #{circuit_frequency_response_forward.1} parent=1 // pred_check
      _
    $region39: #{circuit_frequency_response_forward.1} parent=1 // pred_check_branch
      %75 = sbr.rel (0) target = $region41
    $region40: #{circuit_frequency_response_forward.1} parent=1 // pred_region
      _
    $region41: #{circuit_frequency_response_forward.1} parent=1 // pred_fallthru
      _
    // Predicated region
    $region42: #{circuit_frequency_response_forward.1} parent=1 // pred_check
      _
    $region43: #{circuit_frequency_response_forward.1} parent=1 // pred_check_branch
      %77 = sbr.rel (0) target = $region45
    $region44: #{circuit_frequency_response_forward.1} parent=1 // pred_region
      _
    $region45: #{circuit_frequency_response_forward.1} parent=1 // pred_fallthru
      _
    // Predicated region
    $region46: #{circuit_frequency_response_forward.1} parent=1 // pred_check
      _
    $region47: #{circuit_frequency_response_forward.1} parent=1 // pred_check_branch
      %79 = sbr.rel (0) target = $region49
    $region48: #{circuit_frequency_response_forward.1} parent=1 // pred_region
      _
    $region49: #{circuit_frequency_response_forward.1} parent=1 // pred_fallthru
      _
    // Predicated region
    $region50: #{circuit_frequency_response_forward.1} parent=1 // pred_check
      _
    $region51: #{circuit_frequency_response_forward.1} parent=1 // pred_check_branch
      %81 = sbr.rel (0) target = $region53
    $region52: #{circuit_frequency_response_forward.1} parent=1 // pred_region
      %s83 = ssub.s32 128, 128
      %84 = vsyncadd [#allocation6], %s83
      %s86 = sshll.u32 [#allocation7], 4
      %s87 = int_to_ptr.vmem [resolvable:$true] %s86
      %89 = dma.hbm_to_vmem [thread:$0]  %s12, 128, %s87, [#allocation6]
    $region53: #{circuit_frequency_response_forward.1} parent=1 // pred_fallthru
      _
    // Predicated region
    $region54: #{circuit_frequency_response_forward.1} parent=1 // pred_check
      _
    $region55: #{circuit_frequency_response_forward.1} parent=1 // pred_check_branch
      %91 = sbr.rel (0) target = $region57
    $region56: #{circuit_frequency_response_forward.1} parent=1 // pred_region
      _
    $region57: #{circuit_frequency_response_forward.1} parent=1 // pred_fallthru
      _
    // Predicated region
    $region58: #{circuit_frequency_response_forward.1} parent=1 // pred_check
      _
    $region59: #{circuit_frequency_response_forward.1} parent=1 // pred_check_branch
      %93 = sbr.rel (0) target = $region61
    $region60: #{circuit_frequency_response_forward.1} parent=1 // pred_region
      _
    $region61: #{circuit_frequency_response_forward.1} parent=1 // pred_fallthru
      _
    // Predicated region
    $region62: #{circuit_frequency_response_forward.1} parent=1 // pred_check
      _
    $region63: #{circuit_frequency_response_forward.1} parent=1 // pred_check_branch
      %95 = sbr.rel (0) target = $region65
    $region64: #{circuit_frequency_response_forward.1} parent=1 // pred_region
      _
    $region65: #{circuit_frequency_response_forward.1} parent=1 // pred_fallthru
      _
    // Predicated region
    $region66: #{circuit_frequency_response_forward.1} parent=1 // pred_check
      _
    $region67: #{circuit_frequency_response_forward.1} parent=1 // pred_check_branch
      %97 = sbr.rel (0) target = $region69
    $region68: #{circuit_frequency_response_forward.1} parent=1 // pred_region
      _
    $region69: #{circuit_frequency_response_forward.1} parent=1 // pred_fallthru
      _
    // Predicated region
    $region70: #{circuit_frequency_response_forward.1} parent=1 // pred_check
      _
    $region71: #{circuit_frequency_response_forward.1} parent=1 // pred_check_branch
      %99 = sbr.rel (0) target = $region73
    $region72: #{circuit_frequency_response_forward.1} parent=1 // pred_region
      %s101 = ssub.s32 1024, 1024
      %102 = vsyncadd [#allocation9], %s101
      %s103 = sshll.u32 [#allocation8], 4
      %s104 = int_to_ptr.vmem [resolvable:$true] %s103
      %109 = dma.hbm_to_vmem [thread:$0]  %s17, 1024, %s104, [#allocation9], 128, 128, 8
    $region73: #{circuit_frequency_response_forward.1} parent=1 // pred_fallthru
      _
    // Predicated region
    $region74: #{circuit_frequency_response_forward.1} parent=1 // pred_check
      _
    $region75: #{circuit_frequency_response_forward.1} parent=1 // pred_check_branch
      %111 = sbr.rel (0) target = $region77
    $region76: #{circuit_frequency_response_forward.1} parent=1 // pred_region
      %s113 = ssub.s32 16, 16
      %114 = vsyncadd [#allocation9], %s113
      %s116 = sshll.u32 [#allocation10], 4
      %s117 = int_to_ptr.vmem [resolvable:$true] %s116
      %119 = dma.hbm_to_vmem [thread:$0]  %s18, 16, %s117, [#allocation9]
    $region77: #{circuit_frequency_response_forward.1} parent=1 // pred_fallthru
      _
    // Predicated region
    $region78: #{circuit_frequency_response_forward.1} parent=1 // pred_check
      _
    $region79: #{circuit_frequency_response_forward.1} parent=1 // pred_check_branch
      %121 = sbr.rel (0) target = $region81
    $region80: #{circuit_frequency_response_forward.1} parent=1 // pred_region
      _
    $region81: #{circuit_frequency_response_forward.1} parent=1 // pred_fallthru
      _
    // Predicated region
    $region82: #{circuit_frequency_response_forward.1} parent=1 // pred_check
      _
    $region83: #{circuit_frequency_response_forward.1} parent=1 // pred_check_branch
      %123 = sbr.rel (0) target = $region85
    $region84: #{circuit_frequency_response_forward.1} parent=1 // pred_region
      %s125 = ssub.s32 16, 16
      %126 = vsyncadd [#allocation12], %s125
      %s128 = sshll.u32 [#allocation11], 4
      %s129 = int_to_ptr.vmem [resolvable:$true] %s128
      %131 = dma.hbm_to_vmem [thread:$0]  %s20, 16, %s129, [#allocation12]
    $region85: #{circuit_frequency_response_forward.1} parent=1 // pred_fallthru
      _
    // Predicated region
    $region86: #{circuit_frequency_response_forward.1} parent=1 // pred_check
      _
    $region87: #{circuit_frequency_response_forward.1} parent=1 // pred_check_branch
      %133 = sbr.rel (0) target = $region89
    $region88: #{circuit_frequency_response_forward.1} parent=1 // pred_region
      %s135 = ssub.s32 512, 512
      %136 = vsyncadd [#allocation12], %s135
      %s137 = sshll.u32 [#allocation13], 4
      %s138 = int_to_ptr.vmem [resolvable:$true] %s137
      %143 = dma.hbm_to_vmem [thread:$0]  %s21, 512, %s138, [#allocation12], 128, 128, 8
    $region89: #{circuit_frequency_response_forward.1} parent=1 // pred_fallthru
      _
    // Predicated region
    $region90: #{circuit_frequency_response_forward.1} parent=1 // pred_check
      _
    $region91: #{circuit_frequency_response_forward.1} parent=1 // pred_check_branch
      %145 = sbr.rel (0) target = $region93
    $region92: #{circuit_frequency_response_forward.1} parent=1 // pred_region
      %s147 = ssub.s32 16, 16
      %148 = vsyncadd [#allocation15], %s147
      %s150 = sshll.u32 [#allocation14], 4
      %s151 = int_to_ptr.vmem [resolvable:$true] %s150
      %153 = dma.hbm_to_vmem [thread:$0]  %s22, 16, %s151, [#allocation15]
    $region93: #{circuit_frequency_response_forward.1} parent=1 // pred_fallthru
      _
    // Predicated region
    $region94: #{circuit_frequency_response_forward.1} parent=1 // pred_check
      _
    $region95: #{circuit_frequency_response_forward.1} parent=1 // pred_check_branch
      %155 = sbr.rel (0) target = $region97
    $region96: #{circuit_frequency_response_forward.1} parent=1 // pred_region
      _
    $region97: #{circuit_frequency_response_forward.1} parent=1 // pred_fallthru
      _
    // Predicated region
    $region98: #{circuit_frequency_response_forward.1} parent=1 // pred_check
      _
    $region99: #{circuit_frequency_response_forward.1} parent=1 // pred_check_branch
      %157 = sbr.rel (0) target = $region101
    $region100: #{circuit_frequency_response_forward.1} parent=1 // pred_region
      %s159 = ssub.s32 16, 16
      %160 = vsyncadd [#allocation15], %s159
      %s162 = sshll.u32 [#allocation16], 4
      %s163 = int_to_ptr.vmem [resolvable:$true] %s162
      %165 = dma.hbm_to_vmem [thread:$0]  %s24, 16, %s163, [#allocation15]
    $region101: #{circuit_frequency_response_forward.1} parent=1 // pred_fallthru
      _
    // Predicated region
    $region102: #{circuit_frequency_response_forward.1} parent=1 // pred_check
      _
    $region103: #{circuit_frequency_response_forward.1} parent=1 // pred_check_branch
      %167 = sbr.rel (0) target = $region105
    $region104: #{circuit_frequency_response_forward.1} parent=1 // pred_region
      %168 = dma.done [#allocation3], 640
    $region105: #{circuit_frequency_response_forward.1} parent=1 // pred_fallthru
      _
    // Predicated region
    $region106: #{circuit_frequency_response_forward.1} parent=1 // pred_check
      _
    $region107: #{circuit_frequency_response_forward.1} parent=1 // pred_check_branch
      %170 = sbr.rel (0) target = $region109
    $region108: #{circuit_frequency_response_forward.1} parent=1 // pred_region
      %171 = dma.done [#allocation6], 384
    $region109: #{circuit_frequency_response_forward.1} parent=1 // pred_fallthru
      _
    // Predicated region
    $region110: #{circuit_frequency_response_forward.1} parent=1 // pred_check
      _
    $region111: #{circuit_frequency_response_forward.1} parent=1 // pred_check_branch
      %173 = sbr.rel (0) target = $region113
    $region112: #{circuit_frequency_response_forward.1} parent=1 // pred_region
      %174 = dma.done [#allocation6], 128
    $region113: #{circuit_frequency_response_forward.1} parent=1 // pred_fallthru
      _
    // Predicated region
    $region114: #{circuit_frequency_response_forward.1} parent=1 // pred_check
      _
    $region115: #{circuit_frequency_response_forward.1} parent=1 // pred_check_branch
      %176 = sbr.rel (0) target = $region117
    $region116: #{circuit_frequency_response_forward.1} parent=1 // pred_region
      %177 = dma.done [#allocation9], 1024
    $region117: #{circuit_frequency_response_forward.1} parent=1 // pred_fallthru
      _
    // Predicated region
    $region118: #{circuit_frequency_response_forward.1} parent=1 // pred_check
      _
    $region119: #{circuit_frequency_response_forward.1} parent=1 // pred_check_branch
      %179 = sbr.rel (0) target = $region121
    $region120: #{circuit_frequency_response_forward.1} parent=1 // pred_region
      %180 = dma.done [#allocation9], 16
    $region121: #{circuit_frequency_response_forward.1} parent=1 // pred_fallthru
      _
    // Predicated region
    $region122: #{circuit_frequency_response_forward.1} parent=1 // pred_check
      _
    $region123: #{circuit_frequency_response_forward.1} parent=1 // pred_check_branch
      %182 = sbr.rel (0) target = $region125
    $region124: #{circuit_frequency_response_forward.1} parent=1 // pred_region
      %183 = dma.done [#allocation12], 16
    $region125: #{circuit_frequency_response_forward.1} parent=1 // pred_fallthru
      _
    // Predicated region
    $region126: #{circuit_frequency_response_forward.1} parent=1 // pred_check
      _
    $region127: #{circuit_frequency_response_forward.1} parent=1 // pred_check_branch
      %185 = sbr.rel (0) target = $region129
    $region128: #{circuit_frequency_response_forward.1} parent=1 // pred_region
      %186 = dma.done [#allocation12], 512
    $region129: #{circuit_frequency_response_forward.1} parent=1 // pred_fallthru
      _
    // Predicated region
    $region130: #{circuit_frequency_response_forward.1} parent=1 // pred_check
      _
    $region131: #{circuit_frequency_response_forward.1} parent=1 // pred_check_branch
      %188 = sbr.rel (0) target = $region133
    $region132: #{circuit_frequency_response_forward.1} parent=1 // pred_region
      %189 = dma.done [#allocation15], 16
    $region133: #{circuit_frequency_response_forward.1} parent=1 // pred_fallthru
      _
    // Predicated region
    $region134: #{circuit_frequency_response_forward.1} parent=1 // pred_check
      _
    $region135: #{circuit_frequency_response_forward.1} parent=1 // pred_check_branch
      %191 = sbr.rel (0) target = $region137
    $region136: #{circuit_frequency_response_forward.1} parent=1 // pred_region
      %192 = dma.done [#allocation15], 16
    $region137: #{circuit_frequency_response_forward.1} parent=1 // pred_fallthru
      _
    %v193 = vld [vmem:[%s0] sm:$0xff]
    %v194 = vld [vmem:[%s0 + $0x8] sm:$0xff]
    %v195 = vld [vmem:[%s0 + $0x10] sm:$0xff]
    %v196 = vld [vmem:[%s0 + $0x18] sm:$0xff]
    %v197 = vld [vmem:[%s0 + $0x20] sm:$0xf]
    %v198 = vld [vmem:[%s1] sm:$0xff]
    %v199 = vld [vmem:[%s1 + $0x8] sm:$0xff]
    %v200 = vld [vmem:[%s1 + $0x10] sm:$0xff]
    %v201 = vld [vmem:[%s1 + $0x18] sm:$0xff]
    %v202 = vld [vmem:[%s1 + $0x20] sm:$0xff]
    %v203 = vld [vmem:[%s1 + $0x28] sm:$0xff]
    %v204 = vld [vmem:[%s1 + $0x30] sm:$0xff]
    %v205 = vld [vmem:[%s1 + $0x38] sm:$0xff]
    %s206 = scalar_lea.vmem %s1, 64
    %v207 = vld [vmem:[%s206] sm:$0xff]
    %v208 = vld [vmem:[%s206 + $0x8] sm:$0xff]
    %v209 = vld [vmem:[%s206 + $0x10] sm:$0xff]
    %v210 = vld [vmem:[%s206 + $0x18] sm:$0xff]
    %v211 = vld [vmem:[%s206 + $0x20] sm:$0xff]
    %v212 = vld [vmem:[%s206 + $0x28] sm:$0xff]
    %v213 = vld [vmem:[%s206 + $0x30] sm:$0xff]
    %v214 = vld [vmem:[%s206 + $0x38] sm:$0xff]
    %vm220 = vcmask 1046528
    %v221 = vrot.slane %v193, 1
    %v222 = vrot.slane %v194, 1
    %v223 = vsel %vm220, %v221, %v222
    %v224 = vrot.slane %v195, 1
    %v225 = vsel %vm220, %v222, %v224
    %v226 = vrot.slane %v196, 1
    %v227 = vsel %vm220, %v224, %v226
    %v228 = vrot.slane %v197, 1
    %v229 = vsel %vm220, %v226, %v228
    %vm230 = vcmask 523264
    %v231 = vsel %vm230, %v223, 0
    %v233 = vsel %vm230, %v225, 0
    %v235 = vsel %vm230, %v227, 0
    %v237 = vsel %vm230, %v229, 0
    %v239 = vsel %vm230, %v228, 0
    %241 = vmatprep.subr.mxu0 0.0
    %242 = vmatpush1.msra.mxu0 %v207
    %243 = vmatprep.subr.mxu0 0.0
    %244 = vmatpush1.msra.mxu0 %v208
    %245 = vmatprep.subr.mxu0 0.0
    %246 = vmatpush1.msra.mxu0 %v209
    %247 = vmatprep.subr.mxu0 0.0
    %248 = vmatpush1.msra.mxu0 %v210
    %249 = vmatprep.subr.mxu0 0.0
    %250 = vmatpush1.msra.mxu0 %v211
    %251 = vmatprep.subr.mxu0 0.0
    %252 = vmatpush1.msra.mxu0 %v212
    %253 = vmatprep.subr.mxu0 0.0
    %254 = vmatpush1.msra.mxu0 %v213
    %255 = vmatprep.subr.mxu0 0.0
    %256 = vmatpush1.msra.mxu0 %v214
    %257 = vmatprep.subr.mxu0 0.0
    %258 = vmatpush1.msra.mxu0 0.0
    %259 = vmatprep.subr.mxu0 0.0
    %260 = vmatpush1.msra.mxu0 0.0
    %261 = vmatprep.subr.mxu0 0.0
    %262 = vmatpush1.msra.mxu0 0.0
    %263 = vmatprep.subr.mxu0 0.0
    %264 = vmatpush1.msra.mxu0 0.0
    %265 = vmatprep.subr.mxu0 0.0
    %266 = vmatpush1.msra.mxu0 0.0
    %267 = vmatprep.subr.mxu0 0.0
    %268 = vmatpush1.msra.mxu0 0.0
    %269 = vmatprep.subr.mxu0 0.0
    %270 = vmatpush1.msra.mxu0 0.0
    %271 = vmatprep.subr.mxu0 0.0
    %272 = vmatpush1.msra.mxu0 0.0
    %273 = vmatprep.subr.mxu0 0.0
    %274 = vmatpush1.msra.mxu0 0.0
    %275 = vmatprep.subr.mxu0 0.0
    %276 = vmatpush1.msra.mxu0 0.0
    %277 = vmatprep.subr.mxu0 0.0
    %278 = vmatpush1.msra.mxu0 0.0
    %279 = vmatprep.subr.mxu0 0.0
    %280 = vmatpush1.msra.mxu0 0.0
    %281 = vmatprep.subr.mxu0 0.0
    %282 = vmatpush1.msra.mxu0 0.0
    %283 = vmatprep.subr.mxu0 0.0
    %284 = vmatpush1.msra.mxu0 0.0
    %285 = vmatprep.subr.mxu0 0.0
    %286 = vmatpush1.msra.mxu0 0.0
    %287 = vmatprep.subr.mxu0 0.0
    %288 = vmatpush1.msra.mxu0 0.0
    %289 = vmatprep.subr.mxu0 0.0
    %290 = vmatpush1.msra.mxu0 0.0
    %291 = vmatprep.subr.mxu0 0.0
    %292 = vmatpush1.msra.mxu0 0.0
    %293 = vmatprep.subr.mxu0 0.0
    %294 = vmatpush1.msra.mxu0 0.0
    %295 = vmatprep.subr.mxu0 0.0
    %296 = vmatpush1.msra.mxu0 0.0
    %297 = vmatprep.subr.mxu0 0.0
    %298 = vmatpush1.msra.mxu0 0.0
    %299 = vmatprep.subr.mxu0 0.0
    %300 = vmatpush1.msra.mxu0 0.0
    %301 = vmatprep.subr.mxu0 0.0
    %302 = vmatpush1.msra.mxu0 0.0
    %303 = vmatprep.subr.mxu0 0.0
    %304 = vmatpush1.msra.mxu0 0.0
    %305 = vmatprep.mubr.f32.mxu0 0.0
    %306 = vmatmul.mubr.f32.gmra.mrb[0].mxu0 %v231
    %v307 = vpop.f32.mrb[0].mxu0
    %v308 = vadd.f32 0.0, %v307
    %v309 = vpop.f32.mrb[0].mxu0
    %310 = vmatprep.mubr.f32.mxu0 0.0
    %311 = vmatmul.mubr.f32.gmra.mrb[0].mxu0 %v233
    %v312 = vpop.f32.mrb[0].mxu0
    %v313 = vadd.f32 0.0, %v312
    %v314 = vpop.f32.mrb[0].mxu0
    %315 = vmatprep.mubr.f32.mxu0 0.0
    %316 = vmatmul.mubr.f32.gmra.mrb[0].mxu0 %v235
    %v317 = vpop.f32.mrb[0].mxu0
    %v318 = vadd.f32 0.0, %v317
    %v319 = vpop.f32.mrb[0].mxu0
    %320 = vmatprep.mubr.f32.mxu0 0.0
    %321 = vmatmul.mubr.f32.gmra.mrb[0].mxu0 %v237
    %v322 = vpop.f32.mrb[0].mxu0
    %v323 = vadd.f32 0.0, %v322
    %v324 = vpop.f32.mrb[0].mxu0
    %325 = vmatprep.mubr.f32.mxu0 0.0
    %326 = vmatmul.mubr.f32.gmra.mrb[0].mxu0 %v239
    %v327 = vpop.f32.mrb[0].mxu0
    %v328 = vadd.f32 0.0, %v327
    %v329 = vpop.f32.mrb[0].mxu0
    %330 = vdwg.mxu0
    %v331 = vsel %vm230, %v193, 0
    %v333 = vsel %vm230, %v194, 0
    %v335 = vsel %vm230, %v195, 0
    %v337 = vsel %vm230, %v196, 0
    %v339 = vsel %vm230, %v197, 0
    %341 = vmatprep.subr.mxu0 0.0
    %342 = vmatpush1.msra.mxu0 %v198
    %343 = vmatprep.subr.mxu0 0.0
    %344 = vmatpush1.msra.mxu0 %v199
    %345 = vmatprep.subr.mxu0 0.0
    %346 = vmatpush1.msra.mxu0 %v200
    %347 = vmatprep.subr.mxu0 0.0
    %348 = vmatpush1.msra.mxu0 %v201
    %349 = vmatprep.subr.mxu0 0.0
    %350 = vmatpush1.msra.mxu0 %v202
    %351 = vmatprep.subr.mxu0 0.0
    %352 = vmatpush1.msra.mxu0 %v203
    %353 = vmatprep.subr.mxu0 0.0
    %354 = vmatpush1.msra.mxu0 %v204
    %355 = vmatprep.subr.mxu0 0.0
    %356 = vmatpush1.msra.mxu0 %v205
    %357 = vmatprep.subr.mxu0 0.0
    %358 = vmatpush1.msra.mxu0 0.0
    %359 = vmatprep.subr.mxu0 0.0
    %360 = vmatpush1.msra.mxu0 0.0
    %361 = vmatprep.subr.mxu0 0.0
    %362 = vmatpush1.msra.mxu0 0.0
    %363 = vmatprep.subr.mxu0 0.0
    %364 = vmatpush1.msra.mxu0 0.0
    %365 = vmatprep.subr.mxu0 0.0
    %366 = vmatpush1.msra.mxu0 0.0
    %367 = vmatprep.subr.mxu0 0.0
    %368 = vmatpush1.msra.mxu0 0.0
    %369 = vmatprep.subr.mxu0 0.0
    %370 = vmatpush1.msra.mxu0 0.0
    %371 = vmatprep.subr.mxu0 0.0
    %372 = vmatpush1.msra.mxu0 0.0
    %373 = vmatprep.subr.mxu0 0.0
    %374 = vmatpush1.msra.mxu0 0.0
    %375 = vmatprep.subr.mxu0 0.0
    %376 = vmatpush1.msra.mxu0 0.0
    %377 = vmatprep.subr.mxu0 0.0
    %378 = vmatpush1.msra.mxu0 0.0
    %379 = vmatprep.subr.mxu0 0.0
    %380 = vmatpush1.msra.mxu0 0.0
    %381 = vmatprep.subr.mxu0 0.0
    %382 = vmatpush1.msra.mxu0 0.0
    %383 = vmatprep.subr.mxu0 0.0
    %384 = vmatpush1.msra.mxu0 0.0
    %385 = vmatprep.subr.mxu0 0.0
    %386 = vmatpush1.msra.mxu0 0.0
    %387 = vmatprep.subr.mxu0 0.0
    %388 = vmatpush1.msra.mxu0 0.0
    %389 = vmatprep.subr.mxu0 0.0
    %390 = vmatpush1.msra.mxu0 0.0
    %391 = vmatprep.subr.mxu0 0.0
    %392 = vmatpush1.msra.mxu0 0.0
    %393 = vmatprep.subr.mxu0 0.0
    %394 = vmatpush1.msra.mxu0 0.0
    %395 = vmatprep.subr.mxu0 0.0
    %396 = vmatpush1.msra.mxu0 0.0
    %397 = vmatprep.subr.mxu0 0.0
    %398 = vmatpush1.msra.mxu0 0.0
    %399 = vmatprep.subr.mxu0 0.0
    %400 = vmatpush1.msra.mxu0 0.0
    %401 = vmatprep.subr.mxu0 0.0
    %402 = vmatpush1.msra.mxu0 0.0
    %403 = vmatprep.subr.mxu0 0.0
    %404 = vmatpush1.msra.mxu0 0.0
    %405 = vmatprep.mubr.f32.mxu0 0.0
    %406 = vmatmul.mubr.f32.gmra.mrb[0].mxu0 %v331
    %v407 = vpop.f32.mrb[0].mxu0
    %v408 = vadd.f32 %v308, %v407
    %v409 = vpop.f32.mrb[0].mxu0
    %410 = vmatprep.mubr.f32.mxu0 0.0
    %411 = vmatmul.mubr.f32.gmra.mrb[0].mxu0 %v333
    %v412 = vpop.f32.mrb[0].mxu0
    %v413 = vadd.f32 %v313, %v412
    %v414 = vpop.f32.mrb[0].mxu0
    %415 = vmatprep.mubr.f32.mxu0 0.0
    %416 = vmatmul.mubr.f32.gmra.mrb[0].mxu0 %v335
    %v417 = vpop.f32.mrb[0].mxu0
    %v418 = vadd.f32 %v318, %v417
    %v419 = vpop.f32.mrb[0].mxu0
    %420 = vmatprep.mubr.f32.mxu0 0.0
    %421 = vmatmul.mubr.f32.gmra.mrb[0].mxu0 %v337
    %v422 = vpop.f32.mrb[0].mxu0
    %v423 = vadd.f32 %v323, %v422
    %v424 = vpop.f32.mrb[0].mxu0
    %425 = vmatprep.mubr.f32.mxu0 0.0
    %426 = vmatmul.mubr.f32.gmra.mrb[0].mxu0 %v339
    %v427 = vpop.f32.mrb[0].mxu0
    %v428 = vadd.f32 %v328, %v427
    %v429 = vpop.f32.mrb[0].mxu0
    %430 = vdwg.mxu0
    %s431 = scalar_lea.vmem %s1, 128
    %v432 = vld [vmem:[%s431] sm:$0xff]
    %v433 = vld [vmem:[%s431 + $0x8] sm:$0xff]
    %v434 = vld [vmem:[%s431 + $0x10] sm:$0xff]
    %v435 = vld [vmem:[%s431 + $0x18] sm:$0xff]
    %v436 = vld [vmem:[%s431 + $0x20] sm:$0xff]
    %v437 = vld [vmem:[%s431 + $0x28] sm:$0xff]
    %v438 = vld [vmem:[%s431 + $0x30] sm:$0xff]
    %v439 = vld [vmem:[%s431 + $0x38] sm:$0xff]
    %vm440 = vcmask 1045504
    %v441 = vrot.slane %v193, 2
    %v442 = vrot.slane %v194, 2
    %v443 = vsel %vm440, %v441, %v442
    %v444 = vrot.slane %v195, 2
    %v445 = vsel %vm440, %v442, %v444
    %v446 = vrot.slane %v196, 2
    %v447 = vsel %vm440, %v444, %v446
    %v448 = vrot.slane %v197, 2
    %v449 = vsel %vm440, %v446, %v448
    %v450 = vsel %vm230, %v443, 0
    %v452 = vsel %vm230, %v445, 0
    %v454 = vsel %vm230, %v447, 0
    %v456 = vsel %vm230, %v449, 0
    %v458 = vsel %vm230, %v448, 0
    %460 = vmatprep.subr.mxu0 0.0
    %461 = vmatpush1.msra.mxu0 %v432
    %462 = vmatprep.subr.mxu0 0.0
    %463 = vmatpush1.msra.mxu0 %v433
    %464 = vmatprep.subr.mxu0 0.0
    %465 = vmatpush1.msra.mxu0 %v434
    %466 = vmatprep.subr.mxu0 0.0
    %467 = vmatpush1.msra.mxu0 %v435
    %468 = vmatprep.subr.mxu0 0.0
    %469 = vmatpush1.msra.mxu0 %v436
    %470 = vmatprep.subr.mxu0 0.0
    %471 = vmatpush1.msra.mxu0 %v437
    %472 = vmatprep.subr.mxu0 0.0
    %473 = vmatpush1.msra.mxu0 %v438
    %474 = vmatprep.subr.mxu0 0.0
    %475 = vmatpush1.msra.mxu0 %v439
    %476 = vmatprep.subr.mxu0 0.0
    %477 = vmatpush1.msra.mxu0 0.0
    %478 = vmatprep.subr.mxu0 0.0
    %479 = vmatpush1.msra.mxu0 0.0
    %480 = vmatprep.subr.mxu0 0.0
    %481 = vmatpush1.msra.mxu0 0.0
    %482 = vmatprep.subr.mxu0 0.0
    %483 = vmatpush1.msra.mxu0 0.0
    %484 = vmatprep.subr.mxu0 0.0
    %485 = vmatpush1.msra.mxu0 0.0
    %486 = vmatprep.subr.mxu0 0.0
    %487 = vmatpush1.msra.mxu0 0.0
    %488 = vmatprep.subr.mxu0 0.0
    %489 = vmatpush1.msra.mxu0 0.0
    %490 = vmatprep.subr.mxu0 0.0
    %491 = vmatpush1.msra.mxu0 0.0
    %492 = vmatprep.subr.mxu0 0.0
    %493 = vmatpush1.msra.mxu0 0.0
    %494 = vmatprep.subr.mxu0 0.0
    %495 = vmatpush1.msra.mxu0 0.0
    %496 = vmatprep.subr.mxu0 0.0
    %497 = vmatpush1.msra.mxu0 0.0
    %498 = vmatprep.subr.mxu0 0.0
    %499 = vmatpush1.msra.mxu0 0.0
    %500 = vmatprep.subr.mxu0 0.0
    %501 = vmatpush1.msra.mxu0 0.0
    %502 = vmatprep.subr.mxu0 0.0
    %503 = vmatpush1.msra.mxu0 0.0
    %504 = vmatprep.subr.mxu0 0.0
    %505 = vmatpush1.msra.mxu0 0.0
    %506 = vmatprep.subr.mxu0 0.0
    %507 = vmatpush1.msra.mxu0 0.0
    %508 = vmatprep.subr.mxu0 0.0
    %509 = vmatpush1.msra.mxu0 0.0
    %510 = vmatprep.subr.mxu0 0.0
    %511 = vmatpush1.msra.mxu0 0.0
    %512 = vmatprep.subr.mxu0 0.0
    %513 = vmatpush1.msra.mxu0 0.0
    %514 = vmatprep.subr.mxu0 0.0
    %515 = vmatpush1.msra.mxu0 0.0
    %516 = vmatprep.subr.mxu0 0.0
    %517 = vmatpush1.msra.mxu0 0.0
    %518 = vmatprep.subr.mxu0 0.0
    %519 = vmatpush1.msra.mxu0 0.0
    %520 = vmatprep.subr.mxu0 0.0
    %521 = vmatpush1.msra.mxu0 0.0
    %522 = vmatprep.subr.mxu0 0.0
    %523 = vmatpush1.msra.mxu0 0.0
    %524 = vmatprep.mubr.f32.mxu0 0.0
    %525 = vmatmul.mubr.f32.gmra.mrb[0].mxu0 %v450
    %v526 = vpop.f32.mrb[0].mxu0
    %v527 = vadd.f32 0.0, %v526
    %v528 = vpop.f32.mrb[0].mxu0
    %529 = vmatprep.mubr.f32.mxu0 0.0
    %530 = vmatmul.mubr.f32.gmra.mrb[0].mxu0 %v452
    %v531 = vpop.f32.mrb[0].mxu0
    %v532 = vadd.f32 0.0, %v531
    %v533 = vpop.f32.mrb[0].mxu0
    %534 = vmatprep.mubr.f32.mxu0 0.0
    %535 = vmatmul.mubr.f32.gmra.mrb[0].mxu0 %v454
    %v536 = vpop.f32.mrb[0].mxu0
    %v537 = vadd.f32 0.0, %v536
    %v538 = vpop.f32.mrb[0].mxu0
    %539 = vmatprep.mubr.f32.mxu0 0.0
    %540 = vmatmul.mubr.f32.gmra.mrb[0].mxu0 %v456
    %v541 = vpop.f32.mrb[0].mxu0
    %v542 = vadd.f32 0.0, %v541
    %v543 = vpop.f32.mrb[0].mxu0
    %544 = vmatprep.mubr.f32.mxu0 0.0
    %545 = vmatmul.mubr.f32.gmra.mrb[0].mxu0 %v458
    %v546 = vpop.f32.mrb[0].mxu0
    %v547 = vadd.f32 0.0, %v546
    %v548 = vpop.f32.mrb[0].mxu0
    %549 = vdwg.mxu0
    %v550 = vadd.f32 %v408, %v527
    %v551 = vadd.f32 %v413, %v532
    %v552 = vadd.f32 %v418, %v537
    %v553 = vadd.f32 %v423, %v542
    %v554 = vadd.f32 %v428, %v547
    %v555 = vld [vmem:[%s3] sm:$0xff]
    %v556 = vld [vmem:[%s3 + $0x8] sm:$0xff]
    %v557 = vld [vmem:[%s3 + $0x10] sm:$0xff]
    %v558 = vld [vmem:[%s3 + $0x18] sm:$0xff]
    %v559 = vld [vmem:[%s3 + $0x20] sm:$0xff]
    %v560 = vld [vmem:[%s3 + $0x28] sm:$0xff]
    %v561 = vld [vmem:[%s3 + $0x30] sm:$0xff]
    %v562 = vld [vmem:[%s3 + $0x38] sm:$0xff]
    %v563 = vld [vmem:[%s3 + $0x40] sm:$0xff]
    %v564 = vld [vmem:[%s3 + $0x48] sm:$0xff]
    %v565 = vld [vmem:[%s3 + $0x50] sm:$0xff]
    %v566 = vld [vmem:[%s3 + $0x58] sm:$0xff]
    %v567 = vld [vmem:[%s3 + $0x60] sm:$0xff]
    %v568 = vld [vmem:[%s3 + $0x68] sm:$0xff]
    %v569 = vld [vmem:[%s3 + $0x70] sm:$0xff]
    %v570 = vld [vmem:[%s3 + $0x78] sm:$0xff]
    %571 = vmatprep.subr.mxu0 0.0
    %572 = vmatpush1.msra.mxu0 %v555
    %573 = vmatprep.subr.mxu0 0.0
    %574 = vmatpush1.msra.mxu0 %v556
    %575 = vmatprep.subr.mxu0 0.0
    %576 = vmatpush1.msra.mxu0 %v557
    %577 = vmatprep.subr.mxu0 0.0
    %578 = vmatpush1.msra.mxu0 %v558
    %579 = vmatprep.subr.mxu0 0.0
    %580 = vmatpush1.msra.mxu0 %v559
    %581 = vmatprep.subr.mxu0 0.0
    %582 = vmatpush1.msra.mxu0 %v560
    %583 = vmatprep.subr.mxu0 0.0
    %584 = vmatpush1.msra.mxu0 %v561
    %585 = vmatprep.subr.mxu0 0.0
    %586 = vmatpush1.msra.mxu0 %v562
    %587 = vmatprep.subr.mxu0 0.0
    %588 = vmatpush1.msra.mxu0 %v563
    %589 = vmatprep.subr.mxu0 0.0
    %590 = vmatpush1.msra.mxu0 %v564
    %591 = vmatprep.subr.mxu0 0.0
    %592 = vmatpush1.msra.mxu0 %v565
    %593 = vmatprep.subr.mxu0 0.0
    %594 = vmatpush1.msra.mxu0 %v566
    %595 = vmatprep.subr.mxu0 0.0
    %596 = vmatpush1.msra.mxu0 %v567
    %597 = vmatprep.subr.mxu0 0.0
    %598 = vmatpush1.msra.mxu0 %v568
    %599 = vmatprep.subr.mxu0 0.0
    %600 = vmatpush1.msra.mxu0 %v569
    %601 = vmatprep.subr.mxu0 0.0
    %602 = vmatpush1.msra.mxu0 %v570
    %603 = vmatprep.subr.mxu0 0.0
    %604 = vmatpush1.msra.mxu0 0.0
    %605 = vmatprep.subr.mxu0 0.0
    %606 = vmatpush1.msra.mxu0 0.0
    %607 = vmatprep.subr.mxu0 0.0
    %608 = vmatpush1.msra.mxu0 0.0
    %609 = vmatprep.subr.mxu0 0.0
    %610 = vmatpush1.msra.mxu0 0.0
    %611 = vmatprep.subr.mxu0 0.0
    %612 = vmatpush1.msra.mxu0 0.0
    %613 = vmatprep.subr.mxu0 0.0
    %614 = vmatpush1.msra.mxu0 0.0
    %615 = vmatprep.subr.mxu0 0.0
    %616 = vmatpush1.msra.mxu0 0.0
    %617 = vmatprep.subr.mxu0 0.0
    %618 = vmatpush1.msra.mxu0 0.0
    %619 = vmatprep.subr.mxu0 0.0
    %620 = vmatpush1.msra.mxu0 0.0
    %621 = vmatprep.subr.mxu0 0.0
    %622 = vmatpush1.msra.mxu0 0.0
    %623 = vmatprep.subr.mxu0 0.0
    %624 = vmatpush1.msra.mxu0 0.0
    %625 = vmatprep.subr.mxu0 0.0
    %626 = vmatpush1.msra.mxu0 0.0
    %627 = vmatprep.subr.mxu0 0.0
    %628 = vmatpush1.msra.mxu0 0.0
    %629 = vmatprep.subr.mxu0 0.0
    %630 = vmatpush1.msra.mxu0 0.0
    %631 = vmatprep.subr.mxu0 0.0
    %632 = vmatpush1.msra.mxu0 0.0
    %633 = vmatprep.subr.mxu0 0.0
    %634 = vmatpush1.msra.mxu0 0.0
    %635 = vmatprep.mubr.f32.mxu0 0.0
    %636 = vmatmul.mubr.f32.gmra.mrb[0].mxu0 %v550
    %v637 = vpop.f32.mrb[0].mxu0
    %v638 = vadd.f32 0.0, %v637
    %v639 = vpop.f32.mrb[0].mxu0
    %640 = vmatprep.mubr.f32.mxu0 0.0
    %641 = vmatmul.mubr.f32.gmra.mrb[0].mxu0 %v551
    %v642 = vpop.f32.mrb[0].mxu0
    %v643 = vadd.f32 0.0, %v642
    %v644 = vpop.f32.mrb[0].mxu0
    %645 = vmatprep.mubr.f32.mxu0 0.0
    %646 = vmatmul.mubr.f32.gmra.mrb[0].mxu0 %v552
    %v647 = vpop.f32.mrb[0].mxu0
    %v648 = vadd.f32 0.0, %v647
    %v649 = vpop.f32.mrb[0].mxu0
    %650 = vmatprep.mubr.f32.mxu0 0.0
    %651 = vmatmul.mubr.f32.gmra.mrb[0].mxu0 %v553
    %v652 = vpop.f32.mrb[0].mxu0
    %v653 = vadd.f32 0.0, %v652
    %v654 = vpop.f32.mrb[0].mxu0
    %655 = vmatprep.mubr.f32.mxu0 0.0
    %656 = vmatmul.mubr.f32.gmra.mrb[0].mxu0 %v554
    %v657 = vpop.f32.mrb[0].mxu0
    %v658 = vadd.f32 0.0, %v657
    %v659 = vpop.f32.mrb[0].mxu0
    %660 = vdwg.mxu0
    %666 = vrot.lane.b32.xlu0 %v638, 64
    %v667 = vpop.permute.xlu0 %666
    %668 = vrot.lane.b32.xlu0 %v643, 64
    %v669 = vpop.permute.xlu0 %668
    %670 = vrot.lane.b32.xlu0 %v648, 64
    %v671 = vpop.permute.xlu0 %670
    %672 = vrot.lane.b32.xlu0 %v653, 64
    %v673 = vpop.permute.xlu0 %672
    %674 = vrot.lane.b32.xlu0 %v658, 64
    %v675 = vpop.permute.xlu0 %674
    %v681 = vmax.f32 %v638, %v667
    %v682 = vmax.f32 %v643, %v669
    %v683 = vmax.f32 %v648, %v671
    %v684 = vmax.f32 %v653, %v673
    %v685 = vmax.f32 %v658, %v675
    %v686 = vld [vmem:[%s2] sm:$0x1]
    %v688 = vlaneseq
    %v689 = vshrl.u32 %v688, 7
    %v690 = vsub.s32 0, %v689
    %v691 = vrot.slane %v686, %v690
    %v693 = vadd.f32 %v681, %v691
    %v694 = vadd.f32 %v682, %v691
    %v695 = vadd.f32 %v683, %v691
    %v696 = vadd.f32 %v684, %v691
    %v697 = vadd.f32 %v685, %v691
    %v698 = vmax.f32 %v693, 0.0
    %v699 = vmax.f32 %v694, 0.0
    %v700 = vmax.f32 %v695, 0.0
    %v701 = vmax.f32 %v696, 0.0
    %v702 = vmax.f32 %v697, 0.0
    %v703 = vld [vmem:[#allocation2] sm:$0xff]
    %v704 = vld [vmem:[#allocation2 + $0x8] sm:$0xff]
    %v705 = vld [vmem:[#allocation2 + $0x10] sm:$0xff]
    %v706 = vld [vmem:[#allocation2 + $0x18] sm:$0xff]
    %v707 = vld [vmem:[#allocation2 + $0x20] sm:$0xff]
    %vm708 = vcmask 277504
    %v710 = vsel %vm708, %v703, 0
    %v713 = vsel %vm708, %v704, 0
    %v716 = vsel %vm708, %v705, 0
    %v719 = vsel %vm708, %v706, 0
    %v722 = vsel %vm708, %v707, 0
    %vm724 = vcmask 1041408
    %v726 = vsel %vm724, %v702, 0
    %728 = vmatprep.subr.mxu0 0.0
    %729 = vmatpush1.msra.mxu0 %v698
    %730 = vmatprep.subr.mxu0 0.0
    %731 = vmatpush1.msra.mxu0 %v699
    %732 = vmatprep.subr.mxu0 0.0
    %733 = vmatpush1.msra.mxu0 %v700
    %734 = vmatprep.subr.mxu0 0.0
    %735 = vmatpush1.msra.mxu0 %v701
    %736 = vmatprep.subr.mxu0 0.0
    %737 = vmatpush1.msra.mxu0 %v726
    %738 = vmatprep.subr.mxu0 0.0
    %739 = vmatpush1.msra.mxu0 0.0
    %740 = vmatprep.subr.mxu0 0.0
    %741 = vmatpush1.msra.mxu0 0.0
    %742 = vmatprep.subr.mxu0 0.0
    %743 = vmatpush1.msra.mxu0 0.0
    %744 = vmatprep.subr.mxu0 0.0
    %745 = vmatpush1.msra.mxu0 0.0
    %746 = vmatprep.subr.mxu0 0.0
    %747 = vmatpush1.msra.mxu0 0.0
    %748 = vmatprep.subr.mxu0 0.0
    %749 = vmatpush1.msra.mxu0 0.0
    %750 = vmatprep.subr.mxu0 0.0
    %751 = vmatpush1.msra.mxu0 0.0
    %752 = vmatprep.subr.mxu0 0.0
    %753 = vmatpush1.msra.mxu0 0.0
    %754 = vmatprep.subr.mxu0 0.0
    %755 = vmatpush1.msra.mxu0 0.0
    %756 = vmatprep.subr.mxu0 0.0
    %757 = vmatpush1.msra.mxu0 0.0
    %758 = vmatprep.subr.mxu0 0.0
    %759 = vmatpush1.msra.mxu0 0.0
    %760 = vmatprep.subr.mxu0 0.0
    %761 = vmatpush1.msra.mxu0 0.0
    %762 = vmatprep.subr.mxu0 0.0
    %763 = vmatpush1.msra.mxu0 0.0
    %764 = vmatprep.subr.mxu0 0.0
    %765 = vmatpush1.msra.mxu0 0.0
    %766 = vmatprep.subr.mxu0 0.0
    %767 = vmatpush1.msra.mxu0 0.0
    %768 = vmatprep.subr.mxu0 0.0
    %769 = vmatpush1.msra.mxu0 0.0
    %770 = vmatprep.subr.mxu0 0.0
    %771 = vmatpush1.msra.mxu0 0.0
    %772 = vmatprep.subr.mxu0 0.0
    %773 = vmatpush1.msra.mxu0 0.0
    %774 = vmatprep.subr.mxu0 0.0
    %775 = vmatpush1.msra.mxu0 0.0
    %776 = vmatprep.subr.mxu0 0.0
    %777 = vmatpush1.msra.mxu0 0.0
    %778 = vmatprep.subr.mxu0 0.0
    %779 = vmatpush1.msra.mxu0 0.0
    %780 = vmatprep.subr.mxu0 0.0
    %781 = vmatpush1.msra.mxu0 0.0
    %782 = vmatprep.subr.mxu0 0.0
    %783 = vmatpush1.msra.mxu0 0.0
    %784 = vmatprep.subr.mxu0 0.0
    %785 = vmatpush1.msra.mxu0 0.0
    %786 = vmatprep.subr.mxu0 0.0
    %787 = vmatpush1.msra.mxu0 0.0
    %788 = vmatprep.subr.mxu0 0.0
    %789 = vmatpush1.msra.mxu0 0.0
    %790 = vmatprep.subr.mxu0 0.0
    %791 = vmatpush1.msra.mxu0 0.0
    %792 = vmatprep.mubr.f32.mxu0 0.0
    %793 = vmatmul.mubr.f32.gmra.mrb[0].mxu0 %v710
    %v794 = vpop.f32.mrb[0].mxu0
    %v795 = vadd.f32 0.0, %v794
    %v796 = vpop.f32.mrb[0].mxu0
    %797 = vmatprep.mubr.f32.mxu0 0.0
    %798 = vmatmul.mubr.f32.gmra.mrb[0].mxu0 %v713
    %v799 = vpop.f32.mrb[0].mxu0
    %v800 = vadd.f32 0.0, %v799
    %v801 = vpop.f32.mrb[0].mxu0
    %802 = vmatprep.mubr.f32.mxu0 0.0
    %803 = vmatmul.mubr.f32.gmra.mrb[0].mxu0 %v716
    %v804 = vpop.f32.mrb[0].mxu0
    %v805 = vadd.f32 0.0, %v804
    %v806 = vpop.f32.mrb[0].mxu0
    %807 = vmatprep.mubr.f32.mxu0 0.0
    %808 = vmatmul.mubr.f32.gmra.mrb[0].mxu0 %v719
    %v809 = vpop.f32.mrb[0].mxu0
    %v810 = vadd.f32 0.0, %v809
    %v811 = vpop.f32.mrb[0].mxu0
    %812 = vmatprep.mubr.f32.mxu0 0.0
    %813 = vmatmul.mubr.f32.gmra.mrb[0].mxu0 %v722
    %v814 = vpop.f32.mrb[0].mxu0
    %v815 = vadd.f32 0.0, %v814
    %v816 = vpop.f32.mrb[0].mxu0
    %817 = vdwg.mxu0
    %vm821 = vcmask 1043456
    %v822 = vrot.slane %v805, 4
    %v823 = vrot.slane %v810, 4
    %v824 = vsel %vm821, %v822, %v823
    %v825 = vrot.slane %v815, 4
    %v826 = vsel %vm821, %v823, %v825
    %v830 = vmax.f32 %v795, %v824
    %v831 = vmax.f32 %v800, %v826
    %v832 = vmax.f32 %v805, %v825
    %v833 = vld [vmem:[%s5] sm:$0xff]
    %v834 = vld [vmem:[%s5 + $0x8] sm:$0xff]
    %v835 = vld [vmem:[%s5 + $0x10] sm:$0xff]
    %v836 = vld [vmem:[%s5 + $0x18] sm:$0xff]
    %v837 = vld [vmem:[%s5 + $0x20] sm:$0xff]
    %v838 = vld [vmem:[%s5 + $0x28] sm:$0xff]
    %v839 = vld [vmem:[%s5 + $0x30] sm:$0xff]
    %v840 = vld [vmem:[%s5 + $0x38] sm:$0xff]
    %s841 = scalar_lea.vmem %s5, 64
    %v842 = vld [vmem:[%s841] sm:$0xff]
    %v843 = vld [vmem:[%s841 + $0x8] sm:$0xff]
    %v844 = vld [vmem:[%s841 + $0x10] sm:$0xff]
    %v845 = vld [vmem:[%s841 + $0x18] sm:$0xff]
    %v846 = vld [vmem:[%s841 + $0x20] sm:$0xff]
    %v847 = vld [vmem:[%s841 + $0x28] sm:$0xff]
    %v848 = vld [vmem:[%s841 + $0x30] sm:$0xff]
    %v849 = vld [vmem:[%s841 + $0x38] sm:$0xff]
    %v853 = vrot.slane %v830, 1
    %v854 = vrot.slane %v831, 1
    %v855 = vsel %vm220, %v853, %v854
    %v856 = vrot.slane %v832, 1
    %v857 = vsel %vm220, %v854, %v856
    %v858 = vsel %vm230, %v855, 0
    %v860 = vsel %vm230, %v857, 0
    %v862 = vsel %vm230, %v856, 0
    %864 = vmatprep.subr.mxu0 0.0
    %865 = vmatpush1.msra.mxu0 %v842
    %866 = vmatprep.subr.mxu0 0.0
    %867 = vmatpush1.msra.mxu0 %v843
    %868 = vmatprep.subr.mxu0 0.0
    %869 = vmatpush1.msra.mxu0 %v844
    %870 = vmatprep.subr.mxu0 0.0
    %871 = vmatpush1.msra.mxu0 %v845
    %872 = vmatprep.subr.mxu0 0.0
    %873 = vmatpush1.msra.mxu0 %v846
    %874 = vmatprep.subr.mxu0 0.0
    %875 = vmatpush1.msra.mxu0 %v847
    %876 = vmatprep.subr.mxu0 0.0
    %877 = vmatpush1.msra.mxu0 %v848
    %878 = vmatprep.subr.mxu0 0.0
    %879 = vmatpush1.msra.mxu0 %v849
    %880 = vmatprep.subr.mxu0 0.0
    %881 = vmatpush1.msra.mxu0 0.0
    %882 = vmatprep.subr.mxu0 0.0
    %883 = vmatpush1.msra.mxu0 0.0
    %884 = vmatprep.subr.mxu0 0.0
    %885 = vmatpush1.msra.mxu0 0.0
    %886 = vmatprep.subr.mxu0 0.0
    %887 = vmatpush1.msra.mxu0 0.0
    %888 = vmatprep.subr.mxu0 0.0
    %889 = vmatpush1.msra.mxu0 0.0
    %890 = vmatprep.subr.mxu0 0.0
    %891 = vmatpush1.msra.mxu0 0.0
    %892 = vmatprep.subr.mxu0 0.0
    %893 = vmatpush1.msra.mxu0 0.0
    %894 = vmatprep.subr.mxu0 0.0
    %895 = vmatpush1.msra.mxu0 0.0
    %896 = vmatprep.subr.mxu0 0.0
    %897 = vmatpush1.msra.mxu0 0.0
    %898 = vmatprep.subr.mxu0 0.0
    %899 = vmatpush1.msra.mxu0 0.0
    %900 = vmatprep.subr.mxu0 0.0
    %901 = vmatpush1.msra.mxu0 0.0
    %902 = vmatprep.subr.mxu0 0.0
    %903 = vmatpush1.msra.mxu0 0.0
    %904 = vmatprep.subr.mxu0 0.0
    %905 = vmatpush1.msra.mxu0 0.0
    %906 = vmatprep.subr.mxu0 0.0
    %907 = vmatpush1.msra.mxu0 0.0
    %908 = vmatprep.subr.mxu0 0.0
    %909 = vmatpush1.msra.mxu0 0.0
    %910 = vmatprep.subr.mxu0 0.0
    %911 = vmatpush1.msra.mxu0 0.0
    %912 = vmatprep.subr.mxu0 0.0
    %913 = vmatpush1.msra.mxu0 0.0
    %914 = vmatprep.subr.mxu0 0.0
    %915 = vmatpush1.msra.mxu0 0.0
    %916 = vmatprep.subr.mxu0 0.0
    %917 = vmatpush1.msra.mxu0 0.0
    %918 = vmatprep.subr.mxu0 0.0
    %919 = vmatpush1.msra.mxu0 0.0
    %920 = vmatprep.subr.mxu0 0.0
    %921 = vmatpush1.msra.mxu0 0.0
    %922 = vmatprep.subr.mxu0 0.0
    %923 = vmatpush1.msra.mxu0 0.0
    %924 = vmatprep.subr.mxu0 0.0
    %925 = vmatpush1.msra.mxu0 0.0
    %926 = vmatprep.subr.mxu0 0.0
    %927 = vmatpush1.msra.mxu0 0.0
    %928 = vmatprep.mubr.f32.mxu0 0.0
    %929 = vmatmul.mubr.f32.gmra.mrb[0].mxu0 %v858
    %v930 = vpop.f32.mrb[0].mxu0
    %v931 = vadd.f32 0.0, %v930
    %v932 = vpop.f32.mrb[0].mxu0
    %933 = vmatprep.mubr.f32.mxu0 0.0
    %934 = vmatmul.mubr.f32.gmra.mrb[0].mxu0 %v860
    %v935 = vpop.f32.mrb[0].mxu0
    %v936 = vadd.f32 0.0, %v935
    %v937 = vpop.f32.mrb[0].mxu0
    %938 = vmatprep.mubr.f32.mxu0 0.0
    %939 = vmatmul.mubr.f32.gmra.mrb[0].mxu0 %v862
    %v940 = vpop.f32.mrb[0].mxu0
    %v941 = vadd.f32 0.0, %v940
    %v942 = vpop.f32.mrb[0].mxu0
    %943 = vdwg.mxu0
    %v944 = vsel %vm230, %v830, 0
    %v946 = vsel %vm230, %v831, 0
    %v948 = vsel %vm230, %v832, 0
    %950 = vmatprep.subr.mxu0 0.0
    %951 = vmatpush1.msra.mxu0 %v833
    %952 = vmatprep.subr.mxu0 0.0
    %953 = vmatpush1.msra.mxu0 %v834
    %954 = vmatprep.subr.mxu0 0.0
    %955 = vmatpush1.msra.mxu0 %v835
    %956 = vmatprep.subr.mxu0 0.0
    %957 = vmatpush1.msra.mxu0 %v836
    %958 = vmatprep.subr.mxu0 0.0
    %959 = vmatpush1.msra.mxu0 %v837
    %960 = vmatprep.subr.mxu0 0.0
    %961 = vmatpush1.msra.mxu0 %v838
    %962 = vmatprep.subr.mxu0 0.0
    %963 = vmatpush1.msra.mxu0 %v839
    %964 = vmatprep.subr.mxu0 0.0
    %965 = vmatpush1.msra.mxu0 %v840
    %966 = vmatprep.subr.mxu0 0.0
    %967 = vmatpush1.msra.mxu0 0.0
    %968 = vmatprep.subr.mxu0 0.0
    %969 = vmatpush1.msra.mxu0 0.0
    %970 = vmatprep.subr.mxu0 0.0
    %971 = vmatpush1.msra.mxu0 0.0
    %972 = vmatprep.subr.mxu0 0.0
    %973 = vmatpush1.msra.mxu0 0.0
    %974 = vmatprep.subr.mxu0 0.0
    %975 = vmatpush1.msra.mxu0 0.0
    %976 = vmatprep.subr.mxu0 0.0
    %977 = vmatpush1.msra.mxu0 0.0
    %978 = vmatprep.subr.mxu0 0.0
    %979 = vmatpush1.msra.mxu0 0.0
    %980 = vmatprep.subr.mxu0 0.0
    %981 = vmatpush1.msra.mxu0 0.0
    %982 = vmatprep.subr.mxu0 0.0
    %983 = vmatpush1.msra.mxu0 0.0
    %984 = vmatprep.subr.mxu0 0.0
    %985 = vmatpush1.msra.mxu0 0.0
    %986 = vmatprep.subr.mxu0 0.0
    %987 = vmatpush1.msra.mxu0 0.0
    %988 = vmatprep.subr.mxu0 0.0
    %989 = vmatpush1.msra.mxu0 0.0
    %990 = vmatprep.subr.mxu0 0.0
    %991 = vmatpush1.msra.mxu0 0.0
    %992 = vmatprep.subr.mxu0 0.0
    %993 = vmatpush1.msra.mxu0 0.0
    %994 = vmatprep.subr.mxu0 0.0
    %995 = vmatpush1.msra.mxu0 0.0
    %996 = vmatprep.subr.mxu0 0.0
    %997 = vmatpush1.msra.mxu0 0.0
    %998 = vmatprep.subr.mxu0 0.0
    %999 = vmatpush1.msra.mxu0 0.0
    %1000 = vmatprep.subr.mxu0 0.0
    %1001 = vmatpush1.msra.mxu0 0.0
    %1002 = vmatprep.subr.mxu0 0.0
    %1003 = vmatpush1.msra.mxu0 0.0
    %1004 = vmatprep.subr.mxu0 0.0
    %1005 = vmatpush1.msra.mxu0 0.0
    %1006 = vmatprep.subr.mxu0 0.0
    %1007 = vmatpush1.msra.mxu0 0.0
    %1008 = vmatprep.subr.mxu0 0.0
    %1009 = vmatpush1.msra.mxu0 0.0
    %1010 = vmatprep.subr.mxu0 0.0
    %1011 = vmatpush1.msra.mxu0 0.0
    %1012 = vmatprep.subr.mxu0 0.0
    %1013 = vmatpush1.msra.mxu0 0.0
    %1014 = vmatprep.mubr.f32.mxu0 0.0
    %1015 = vmatmul.mubr.f32.gmra.mrb[0].mxu0 %v944
    %v1016 = vpop.f32.mrb[0].mxu0
    %v1017 = vadd.f32 %v931, %v1016
    %v1018 = vpop.f32.mrb[0].mxu0
    %1019 = vmatprep.mubr.f32.mxu0 0.0
    %1020 = vmatmul.mubr.f32.gmra.mrb[0].mxu0 %v946
    %v1021 = vpop.f32.mrb[0].mxu0
    %v1022 = vadd.f32 %v936, %v1021
    %v1023 = vpop.f32.mrb[0].mxu0
    %1024 = vmatprep.mubr.f32.mxu0 0.0
    %1025 = vmatmul.mubr.f32.gmra.mrb[0].mxu0 %v948
    %v1026 = vpop.f32.mrb[0].mxu0
    %v1027 = vadd.f32 %v941, %v1026
    %v1028 = vpop.f32.mrb[0].mxu0
    %1029 = vdwg.mxu0
    %s1030 = scalar_lea.vmem %s5, 128
    %v1031 = vld [vmem:[%s1030] sm:$0xff]
    %v1032 = vld [vmem:[%s1030 + $0x8] sm:$0xff]
    %v1033 = vld [vmem:[%s1030 + $0x10] sm:$0xff]
    %v1034 = vld [vmem:[%s1030 + $0x18] sm:$0xff]
    %v1035 = vld [vmem:[%s1030 + $0x20] sm:$0xff]
    %v1036 = vld [vmem:[%s1030 + $0x28] sm:$0xff]
    %v1037 = vld [vmem:[%s1030 + $0x30] sm:$0xff]
    %v1038 = vld [vmem:[%s1030 + $0x38] sm:$0xff]
    %v1039 = vrot.slane %v830, 2
    %v1040 = vrot.slane %v831, 2
    %v1041 = vsel %vm440, %v1039, %v1040
    %v1042 = vrot.slane %v832, 2
    %v1043 = vsel %vm440, %v1040, %v1042
    %v1044 = vsel %vm230, %v1041, 0
    %v1046 = vsel %vm230, %v1043, 0
    %v1048 = vsel %vm230, %v1042, 0
    %1050 = vmatprep.subr.mxu0 0.0
    %1051 = vmatpush1.msra.mxu0 %v1031
    %1052 = vmatprep.subr.mxu0 0.0
    %1053 = vmatpush1.msra.mxu0 %v1032
    %1054 = vmatprep.subr.mxu0 0.0
    %1055 = vmatpush1.msra.mxu0 %v1033
    %1056 = vmatprep.subr.mxu0 0.0
    %1057 = vmatpush1.msra.mxu0 %v1034
    %1058 = vmatprep.subr.mxu0 0.0
    %1059 = vmatpush1.msra.mxu0 %v1035
    %1060 = vmatprep.subr.mxu0 0.0
    %1061 = vmatpush1.msra.mxu0 %v1036
    %1062 = vmatprep.subr.mxu0 0.0
    %1063 = vmatpush1.msra.mxu0 %v1037
    %1064 = vmatprep.subr.mxu0 0.0
    %1065 = vmatpush1.msra.mxu0 %v1038
    %1066 = vmatprep.subr.mxu0 0.0
    %1067 = vmatpush1.msra.mxu0 0.0
    %1068 = vmatprep.subr.mxu0 0.0
    %1069 = vmatpush1.msra.mxu0 0.0
    %1070 = vmatprep.subr.mxu0 0.0
    %1071 = vmatpush1.msra.mxu0 0.0
    %1072 = vmatprep.subr.mxu0 0.0
    %1073 = vmatpush1.msra.mxu0 0.0
    %1074 = vmatprep.subr.mxu0 0.0
    %1075 = vmatpush1.msra.mxu0 0.0
    %1076 = vmatprep.subr.mxu0 0.0
    %1077 = vmatpush1.msra.mxu0 0.0
    %1078 = vmatprep.subr.mxu0 0.0
    %1079 = vmatpush1.msra.mxu0 0.0
    %1080 = vmatprep.subr.mxu0 0.0
    %1081 = vmatpush1.msra.mxu0 0.0
    %1082 = vmatprep.subr.mxu0 0.0
    %1083 = vmatpush1.msra.mxu0 0.0
    %1084 = vmatprep.subr.mxu0 0.0
    %1085 = vmatpush1.msra.mxu0 0.0
    %1086 = vmatprep.subr.mxu0 0.0
    %1087 = vmatpush1.msra.mxu0 0.0
    %1088 = vmatprep.subr.mxu0 0.0
    %1089 = vmatpush1.msra.mxu0 0.0
    %1090 = vmatprep.subr.mxu0 0.0
    %1091 = vmatpush1.msra.mxu0 0.0
    %1092 = vmatprep.subr.mxu0 0.0
    %1093 = vmatpush1.msra.mxu0 0.0
    %1094 = vmatprep.subr.mxu0 0.0
    %1095 = vmatpush1.msra.mxu0 0.0
    %1096 = vmatprep.subr.mxu0 0.0
    %1097 = vmatpush1.msra.mxu0 0.0
    %1098 = vmatprep.subr.mxu0 0.0
    %1099 = vmatpush1.msra.mxu0 0.0
    %1100 = vmatprep.subr.mxu0 0.0
    %1101 = vmatpush1.msra.mxu0 0.0
    %1102 = vmatprep.subr.mxu0 0.0
    %1103 = vmatpush1.msra.mxu0 0.0
    %1104 = vmatprep.subr.mxu0 0.0
    %1105 = vmatpush1.msra.mxu0 0.0
    %1106 = vmatprep.subr.mxu0 0.0
    %1107 = vmatpush1.msra.mxu0 0.0
    %1108 = vmatprep.subr.mxu0 0.0
    %1109 = vmatpush1.msra.mxu0 0.0
    %1110 = vmatprep.subr.mxu0 0.0
    %1111 = vmatpush1.msra.mxu0 0.0
    %1112 = vmatprep.subr.mxu0 0.0
    %1113 = vmatpush1.msra.mxu0 0.0
    %1114 = vmatprep.mubr.f32.mxu0 0.0
    %1115 = vmatmul.mubr.f32.gmra.mrb[0].mxu0 %v1044
    %v1116 = vpop.f32.mrb[0].mxu0
    %v1117 = vadd.f32 0.0, %v1116
    %v1118 = vpop.f32.mrb[0].mxu0
    %1119 = vmatprep.mubr.f32.mxu0 0.0
    %1120 = vmatmul.mubr.f32.gmra.mrb[0].mxu0 %v1046
    %v1121 = vpop.f32.mrb[0].mxu0
    %v1122 = vadd.f32 0.0, %v1121
    %v1123 = vpop.f32.mrb[0].mxu0
    %1124 = vmatprep.mubr.f32.mxu0 0.0
    %1125 = vmatmul.mubr.f32.gmra.mrb[0].mxu0 %v1048
    %v1126 = vpop.f32.mrb[0].mxu0
    %v1127 = vadd.f32 0.0, %v1126
    %v1128 = vpop.f32.mrb[0].mxu0
    %1129 = vdwg.mxu0
    %v1130 = vadd.f32 %v1017, %v1117
    %v1131 = vadd.f32 %v1022, %v1122
    %v1132 = vadd.f32 %v1027, %v1127
    %v1133 = vld [vmem:[%s7] sm:$0xff]
    %v1134 = vld [vmem:[%s7 + $0x8] sm:$0xff]
    %v1135 = vld [vmem:[%s7 + $0x10] sm:$0xff]
    %v1136 = vld [vmem:[%s7 + $0x18] sm:$0xff]
    %v1137 = vld [vmem:[%s7 + $0x20] sm:$0xff]
    %v1138 = vld [vmem:[%s7 + $0x28] sm:$0xff]
    %v1139 = vld [vmem:[%s7 + $0x30] sm:$0xff]
    %v1140 = vld [vmem:[%s7 + $0x38] sm:$0xff]
    %v1141 = vld [vmem:[%s7 + $0x40] sm:$0xff]
    %v1142 = vld [vmem:[%s7 + $0x48] sm:$0xff]
    %v1143 = vld [vmem:[%s7 + $0x50] sm:$0xff]
    %v1144 = vld [vmem:[%s7 + $0x58] sm:$0xff]
    %v1145 = vld [vmem:[%s7 + $0x60] sm:$0xff]
    %v1146 = vld [vmem:[%s7 + $0x68] sm:$0xff]
    %v1147 = vld [vmem:[%s7 + $0x70] sm:$0xff]
    %v1148 = vld [vmem:[%s7 + $0x78] sm:$0xff]
    %1149 = vmatprep.subr.mxu0 0.0
    %1150 = vmatpush1.msra.mxu0 %v1133
    %1151 = vmatprep.subr.mxu0 0.0
    %1152 = vmatpush1.msra.mxu0 %v1134
    %1153 = vmatprep.subr.mxu0 0.0
    %1154 = vmatpush1.msra.mxu0 %v1135
    %1155 = vmatprep.subr.mxu0 0.0
    %1156 = vmatpush1.msra.mxu0 %v1136
    %1157 = vmatprep.subr.mxu0 0.0
    %1158 = vmatpush1.msra.mxu0 %v1137
    %1159 = vmatprep.subr.mxu0 0.0
    %1160 = vmatpush1.msra.mxu0 %v1138
    %1161 = vmatprep.subr.mxu0 0.0
    %1162 = vmatpush1.msra.mxu0 %v1139
    %1163 = vmatprep.subr.mxu0 0.0
    %1164 = vmatpush1.msra.mxu0 %v1140
    %1165 = vmatprep.subr.mxu0 0.0
    %1166 = vmatpush1.msra.mxu0 %v1141
    %1167 = vmatprep.subr.mxu0 0.0
    %1168 = vmatpush1.msra.mxu0 %v1142
    %1169 = vmatprep.subr.mxu0 0.0
    %1170 = vmatpush1.msra.mxu0 %v1143
    %1171 = vmatprep.subr.mxu0 0.0
    %1172 = vmatpush1.msra.mxu0 %v1144
    %1173 = vmatprep.subr.mxu0 0.0
    %1174 = vmatpush1.msra.mxu0 %v1145
    %1175 = vmatprep.subr.mxu0 0.0
    %1176 = vmatpush1.msra.mxu0 %v1146
    %1177 = vmatprep.subr.mxu0 0.0
    %1178 = vmatpush1.msra.mxu0 %v1147
    %1179 = vmatprep.subr.mxu0 0.0
    %1180 = vmatpush1.msra.mxu0 %v1148
    %1181 = vmatprep.subr.mxu0 0.0
    %1182 = vmatpush1.msra.mxu0 0.0
    %1183 = vmatprep.subr.mxu0 0.0
    %1184 = vmatpush1.msra.mxu0 0.0
    %1185 = vmatprep.subr.mxu0 0.0
    %1186 = vmatpush1.msra.mxu0 0.0
    %1187 = vmatprep.subr.mxu0 0.0
    %1188 = vmatpush1.msra.mxu0 0.0
    %1189 = vmatprep.subr.mxu0 0.0
    %1190 = vmatpush1.msra.mxu0 0.0
    %1191 = vmatprep.subr.mxu0 0.0
    %1192 = vmatpush1.msra.mxu0 0.0
    %1193 = vmatprep.subr.mxu0 0.0
    %1194 = vmatpush1.msra.mxu0 0.0
    %1195 = vmatprep.subr.mxu0 0.0
    %1196 = vmatpush1.msra.mxu0 0.0
    %1197 = vmatprep.subr.mxu0 0.0
    %1198 = vmatpush1.msra.mxu0 0.0
    %1199 = vmatprep.subr.mxu0 0.0
    %1200 = vmatpush1.msra.mxu0 0.0
    %1201 = vmatprep.subr.mxu0 0.0
    %1202 = vmatpush1.msra.mxu0 0.0
    %1203 = vmatprep.subr.mxu0 0.0
    %1204 = vmatpush1.msra.mxu0 0.0
    %1205 = vmatprep.subr.mxu0 0.0
    %1206 = vmatpush1.msra.mxu0 0.0
    %1207 = vmatprep.subr.mxu0 0.0
    %1208 = vmatpush1.msra.mxu0 0.0
    %1209 = vmatprep.subr.mxu0 0.0
    %1210 = vmatpush1.msra.mxu0 0.0
    %1211 = vmatprep.subr.mxu0 0.0
    %1212 = vmatpush1.msra.mxu0 0.0
    %1213 = vmatprep.mubr.f32.mxu0 0.0
    %1214 = vmatmul.mubr.f32.gmra.mrb[0].mxu0 %v1130
    %v1215 = vpop.f32.mrb[0].mxu0
    %v1216 = vadd.f32 0.0, %v1215
    %v1217 = vpop.f32.mrb[0].mxu0
    %1218 = vmatprep.mubr.f32.mxu0 0.0
    %1219 = vmatmul.mubr.f32.gmra.mrb[0].mxu0 %v1131
    %v1220 = vpop.f32.mrb[0].mxu0
    %v1221 = vadd.f32 0.0, %v1220
    %v1222 = vpop.f32.mrb[0].mxu0
    %1223 = vmatprep.mubr.f32.mxu0 0.0
    %1224 = vmatmul.mubr.f32.gmra.mrb[0].mxu0 %v1132
    %v1225 = vpop.f32.mrb[0].mxu0
    %v1226 = vadd.f32 0.0, %v1225
    %v1227 = vpop.f32.mrb[0].mxu0
    %1228 = vdwg.mxu0
    %1232 = vrot.lane.b32.xlu0 %v1216, 64
    %v1233 = vpop.permute.xlu0 %1232
    %1234 = vrot.lane.b32.xlu0 %v1221, 64
    %v1235 = vpop.permute.xlu0 %1234
    %1236 = vrot.lane.b32.xlu0 %v1226, 64
    %v1237 = vpop.permute.xlu0 %1236
    %v1241 = vmax.f32 %v1216, %v1233
    %v1242 = vmax.f32 %v1221, %v1235
    %v1243 = vmax.f32 %v1226, %v1237
    %v1244 = vld [vmem:[%s6] sm:$0x1]
    %v1246 = vlaneseq
    %v1247 = vshrl.u32 %v1246, 7
    %v1248 = vsub.s32 0, %v1247
    %v1249 = vrot.slane %v1244, %v1248
    %v1251 = vadd.f32 %v1241, %v1249
    %v1252 = vadd.f32 %v1242, %v1249
    %v1253 = vadd.f32 %v1243, %v1249
    %v1254 = vmax.f32 %v1251, 0.0
    %v1255 = vmax.f32 %v1252, 0.0
    %v1256 = vmax.f32 %v1253, 0.0
    %v1257 = vld [vmem:[#allocation5] sm:$0xff]
    %v1258 = vld [vmem:[#allocation5 + $0x8] sm:$0xff]
    %v1259 = vld [vmem:[#allocation5 + $0x10] sm:$0xff]
    %vm1260 = vcmask 146432
    %v1262 = vsel %vm1260, %v1257, 0
    %v1265 = vsel %vm1260, %v1258, 0
    %v1268 = vsel %vm1260, %v1259, 0
    %v1271 = vsel %vm724, %v1256, 0
    %1273 = vmatprep.subr.mxu0 0.0
    %1274 = vmatpush1.msra.mxu0 %v1254
    %1275 = vmatprep.subr.mxu0 0.0
    %1276 = vmatpush1.msra.mxu0 %v1255
    %1277 = vmatprep.subr.mxu0 0.0
    %1278 = vmatpush1.msra.mxu0 %v1271
    %1279 = vmatprep.subr.mxu0 0.0
    %1280 = vmatpush1.msra.mxu0 0.0
    %1281 = vmatprep.subr.mxu0 0.0
    %1282 = vmatpush1.msra.mxu0 0.0
    %1283 = vmatprep.subr.mxu0 0.0
    %1284 = vmatpush1.msra.mxu0 0.0
    %1285 = vmatprep.subr.mxu0 0.0
    %1286 = vmatpush1.msra.mxu0 0.0
    %1287 = vmatprep.subr.mxu0 0.0
    %1288 = vmatpush1.msra.mxu0 0.0
    %1289 = vmatprep.subr.mxu0 0.0
    %1290 = vmatpush1.msra.mxu0 0.0
    %1291 = vmatprep.subr.mxu0 0.0
    %1292 = vmatpush1.msra.mxu0 0.0
    %1293 = vmatprep.subr.mxu0 0.0
    %1294 = vmatpush1.msra.mxu0 0.0
    %1295 = vmatprep.subr.mxu0 0.0
    %1296 = vmatpush1.msra.mxu0 0.0
    %1297 = vmatprep.subr.mxu0 0.0
    %1298 = vmatpush1.msra.mxu0 0.0
    %1299 = vmatprep.subr.mxu0 0.0
    %1300 = vmatpush1.msra.mxu0 0.0
    %1301 = vmatprep.subr.mxu0 0.0
    %1302 = vmatpush1.msra.mxu0 0.0
    %1303 = vmatprep.subr.mxu0 0.0
    %1304 = vmatpush1.msra.mxu0 0.0
    %1305 = vmatprep.subr.mxu0 0.0
    %1306 = vmatpush1.msra.mxu0 0.0
    %1307 = vmatprep.subr.mxu0 0.0
    %1308 = vmatpush1.msra.mxu0 0.0
    %1309 = vmatprep.subr.mxu0 0.0
    %1310 = vmatpush1.msra.mxu0 0.0
    %1311 = vmatprep.subr.mxu0 0.0
    %1312 = vmatpush1.msra.mxu0 0.0
    %1313 = vmatprep.subr.mxu0 0.0
    %1314 = vmatpush1.msra.mxu0 0.0
    %1315 = vmatprep.subr.mxu0 0.0
    %1316 = vmatpush1.msra.mxu0 0.0
    %1317 = vmatprep.subr.mxu0 0.0
    %1318 = vmatpush1.msra.mxu0 0.0
    %1319 = vmatprep.subr.mxu0 0.0
    %1320 = vmatpush1.msra.mxu0 0.0
    %1321 = vmatprep.subr.mxu0 0.0
    %1322 = vmatpush1.msra.mxu0 0.0
    %1323 = vmatprep.subr.mxu0 0.0
    %1324 = vmatpush1.msra.mxu0 0.0
    %1325 = vmatprep.subr.mxu0 0.0
    %1326 = vmatpush1.msra.mxu0 0.0
    %1327 = vmatprep.subr.mxu0 0.0
    %1328 = vmatpush1.msra.mxu0 0.0
    %1329 = vmatprep.subr.mxu0 0.0
    %1330 = vmatpush1.msra.mxu0 0.0
    %1331 = vmatprep.subr.mxu0 0.0
    %1332 = vmatpush1.msra.mxu0 0.0
    %1333 = vmatprep.subr.mxu0 0.0
    %1334 = vmatpush1.msra.mxu0 0.0
    %1335 = vmatprep.subr.mxu0 0.0
    %1336 = vmatpush1.msra.mxu0 0.0
    %1337 = vmatprep.mubr.f32.mxu0 0.0
    %1338 = vmatmul.mubr.f32.gmra.mrb[0].mxu0 %v1262
    %v1339 = vpop.f32.mrb[0].mxu0
    %v1340 = vadd.f32 0.0, %v1339
    %v1341 = vpop.f32.mrb[0].mxu0
    %1342 = vmatprep.mubr.f32.mxu0 0.0
    %1343 = vmatmul.mubr.f32.gmra.mrb[0].mxu0 %v1265
    %v1344 = vpop.f32.mrb[0].mxu0
    %v1345 = vadd.f32 0.0, %v1344
    %v1346 = vpop.f32.mrb[0].mxu0
    %1347 = vmatprep.mubr.f32.mxu0 0.0
    %1348 = vmatmul.mubr.f32.gmra.mrb[0].mxu0 %v1268
    %v1349 = vpop.f32.mrb[0].mxu0
    %v1350 = vadd.f32 0.0, %v1349
    %v1351 = vpop.f32.mrb[0].mxu0
    %1352 = vdwg.mxu0
    %v1355 = vrot.slane %v1345, 4
    %v1356 = vrot.slane %v1350, 4
    %v1357 = vsel %vm821, %v1355, %v1356
    %v1360 = vmax.f32 %v1340, %v1357
    %v1361 = vmax.f32 %v1345, %v1356
    %v1362 = vld [vmem:[%s9] sm:$0xff]
    %v1363 = vld [vmem:[%s9 + $0x8] sm:$0xff]
    %v1364 = vld [vmem:[%s9 + $0x10] sm:$0xff]
    %v1365 = vld [vmem:[%s9 + $0x18] sm:$0xff]
    %v1366 = vld [vmem:[%s9 + $0x20] sm:$0xff]
    %v1367 = vld [vmem:[%s9 + $0x28] sm:$0xff]
    %v1368 = vld [vmem:[%s9 + $0x30] sm:$0xff]
    %v1369 = vld [vmem:[%s9 + $0x38] sm:$0xff]
    %s1370 = scalar_lea.vmem %s9, 64
    %v1371 = vld [vmem:[%s1370] sm:$0xff]
    %v1372 = vld [vmem:[%s1370 + $0x8] sm:$0xff]
    %v1373 = vld [vmem:[%s1370 + $0x10] sm:$0xff]
    %v1374 = vld [vmem:[%s1370 + $0x18] sm:$0xff]
    %v1375 = vld [vmem:[%s1370 + $0x20] sm:$0xff]
    %v1376 = vld [vmem:[%s1370 + $0x28] sm:$0xff]
    %v1377 = vld [vmem:[%s1370 + $0x30] sm:$0xff]
    %v1378 = vld [vmem:[%s1370 + $0x38] sm:$0xff]
    %v1381 = vrot.slane %v1360, 1
    %v1382 = vrot.slane %v1361, 1
    %v1383 = vsel %vm220, %v1381, %v1382
    %v1384 = vsel %vm230, %v1383, 0
    %v1386 = vsel %vm230, %v1382, 0
    %1388 = vmatprep.subr.mxu0 0.0
    %1389 = vmatpush1.msra.mxu0 %v1371
    %1390 = vmatprep.subr.mxu0 0.0
    %1391 = vmatpush1.msra.mxu0 %v1372
    %1392 = vmatprep.subr.mxu0 0.0
    %1393 = vmatpush1.msra.mxu0 %v1373
    %1394 = vmatprep.subr.mxu0 0.0
    %1395 = vmatpush1.msra.mxu0 %v1374
    %1396 = vmatprep.subr.mxu0 0.0
    %1397 = vmatpush1.msra.mxu0 %v1375
    %1398 = vmatprep.subr.mxu0 0.0
    %1399 = vmatpush1.msra.mxu0 %v1376
    %1400 = vmatprep.subr.mxu0 0.0
    %1401 = vmatpush1.msra.mxu0 %v1377
    %1402 = vmatprep.subr.mxu0 0.0
    %1403 = vmatpush1.msra.mxu0 %v1378
    %1404 = vmatprep.subr.mxu0 0.0
    %1405 = vmatpush1.msra.mxu0 0.0
    %1406 = vmatprep.subr.mxu0 0.0
    %1407 = vmatpush1.msra.mxu0 0.0
    %1408 = vmatprep.subr.mxu0 0.0
    %1409 = vmatpush1.msra.mxu0 0.0
    %1410 = vmatprep.subr.mxu0 0.0
    %1411 = vmatpush1.msra.mxu0 0.0
    %1412 = vmatprep.subr.mxu0 0.0
    %1413 = vmatpush1.msra.mxu0 0.0
    %1414 = vmatprep.subr.mxu0 0.0
    %1415 = vmatpush1.msra.mxu0 0.0
    %1416 = vmatprep.subr.mxu0 0.0
    %1417 = vmatpush1.msra.mxu0 0.0
    %1418 = vmatprep.subr.mxu0 0.0
    %1419 = vmatpush1.msra.mxu0 0.0
    %1420 = vmatprep.subr.mxu0 0.0
    %1421 = vmatpush1.msra.mxu0 0.0
    %1422 = vmatprep.subr.mxu0 0.0
    %1423 = vmatpush1.msra.mxu0 0.0
    %1424 = vmatprep.subr.mxu0 0.0
    %1425 = vmatpush1.msra.mxu0 0.0
    %1426 = vmatprep.subr.mxu0 0.0
    %1427 = vmatpush1.msra.mxu0 0.0
    %1428 = vmatprep.subr.mxu0 0.0
    %1429 = vmatpush1.msra.mxu0 0.0
    %1430 = vmatprep.subr.mxu0 0.0
    %1431 = vmatpush1.msra.mxu0 0.0
    %1432 = vmatprep.subr.mxu0 0.0
    %1433 = vmatpush1.msra.mxu0 0.0
    %1434 = vmatprep.subr.mxu0 0.0
    %1435 = vmatpush1.msra.mxu0 0.0
    %1436 = vmatprep.subr.mxu0 0.0
    %1437 = vmatpush1.msra.mxu0 0.0
    %1438 = vmatprep.subr.mxu0 0.0
    %1439 = vmatpush1.msra.mxu0 0.0
    %1440 = vmatprep.subr.mxu0 0.0
    %1441 = vmatpush1.msra.mxu0 0.0
    %1442 = vmatprep.subr.mxu0 0.0
    %1443 = vmatpush1.msra.mxu0 0.0
    %1444 = vmatprep.subr.mxu0 0.0
    %1445 = vmatpush1.msra.mxu0 0.0
    %1446 = vmatprep.subr.mxu0 0.0
    %1447 = vmatpush1.msra.mxu0 0.0
    %1448 = vmatprep.subr.mxu0 0.0
    %1449 = vmatpush1.msra.mxu0 0.0
    %1450 = vmatprep.subr.mxu0 0.0
    %1451 = vmatpush1.msra.mxu0 0.0
    %1452 = vmatprep.mubr.f32.mxu0 0.0
    %1453 = vmatmul.mubr.f32.gmra.mrb[0].mxu0 %v1384
    %v1454 = vpop.f32.mrb[0].mxu0
    %v1455 = vadd.f32 0.0, %v1454
    %v1456 = vpop.f32.mrb[0].mxu0
    %1457 = vmatprep.mubr.f32.mxu0 0.0
    %1458 = vmatmul.mubr.f32.gmra.mrb[0].mxu0 %v1386
    %v1459 = vpop.f32.mrb[0].mxu0
    %v1460 = vadd.f32 0.0, %v1459
    %v1461 = vpop.f32.mrb[0].mxu0
    %1462 = vdwg.mxu0
    %v1463 = vsel %vm230, %v1360, 0
    %v1465 = vsel %vm230, %v1361, 0
    %1467 = vmatprep.subr.mxu0 0.0
    %1468 = vmatpush1.msra.mxu0 %v1362
    %1469 = vmatprep.subr.mxu0 0.0
    %1470 = vmatpush1.msra.mxu0 %v1363
    %1471 = vmatprep.subr.mxu0 0.0
    %1472 = vmatpush1.msra.mxu0 %v1364
    %1473 = vmatprep.subr.mxu0 0.0
    %1474 = vmatpush1.msra.mxu0 %v1365
    %1475 = vmatprep.subr.mxu0 0.0
    %1476 = vmatpush1.msra.mxu0 %v1366
    %1477 = vmatprep.subr.mxu0 0.0
    %1478 = vmatpush1.msra.mxu0 %v1367
    %1479 = vmatprep.subr.mxu0 0.0
    %1480 = vmatpush1.msra.mxu0 %v1368
    %1481 = vmatprep.subr.mxu0 0.0
    %1482 = vmatpush1.msra.mxu0 %v1369
    %1483 = vmatprep.subr.mxu0 0.0
    %1484 = vmatpush1.msra.mxu0 0.0
    %1485 = vmatprep.subr.mxu0 0.0
    %1486 = vmatpush1.msra.mxu0 0.0
    %1487 = vmatprep.subr.mxu0 0.0
    %1488 = vmatpush1.msra.mxu0 0.0
    %1489 = vmatprep.subr.mxu0 0.0
    %1490 = vmatpush1.msra.mxu0 0.0
    %1491 = vmatprep.subr.mxu0 0.0
    %1492 = vmatpush1.msra.mxu0 0.0
    %1493 = vmatprep.subr.mxu0 0.0
    %1494 = vmatpush1.msra.mxu0 0.0
    %1495 = vmatprep.subr.mxu0 0.0
    %1496 = vmatpush1.msra.mxu0 0.0
    %1497 = vmatprep.subr.mxu0 0.0
    %1498 = vmatpush1.msra.mxu0 0.0
    %1499 = vmatprep.subr.mxu0 0.0
    %1500 = vmatpush1.msra.mxu0 0.0
    %1501 = vmatprep.subr.mxu0 0.0
    %1502 = vmatpush1.msra.mxu0 0.0
    %1503 = vmatprep.subr.mxu0 0.0
    %1504 = vmatpush1.msra.mxu0 0.0
    %1505 = vmatprep.subr.mxu0 0.0
    %1506 = vmatpush1.msra.mxu0 0.0
    %1507 = vmatprep.subr.mxu0 0.0
    %1508 = vmatpush1.msra.mxu0 0.0
    %1509 = vmatprep.subr.mxu0 0.0
    %1510 = vmatpush1.msra.mxu0 0.0
    %1511 = vmatprep.subr.mxu0 0.0
    %1512 = vmatpush1.msra.mxu0 0.0
    %1513 = vmatprep.subr.mxu0 0.0
    %1514 = vmatpush1.msra.mxu0 0.0
    %1515 = vmatprep.subr.mxu0 0.0
    %1516 = vmatpush1.msra.mxu0 0.0
    %1517 = vmatprep.subr.mxu0 0.0
    %1518 = vmatpush1.msra.mxu0 0.0
    %1519 = vmatprep.subr.mxu0 0.0
    %1520 = vmatpush1.msra.mxu0 0.0
    %1521 = vmatprep.subr.mxu0 0.0
    %1522 = vmatpush1.msra.mxu0 0.0
    %1523 = vmatprep.subr.mxu0 0.0
    %1524 = vmatpush1.msra.mxu0 0.0
    %1525 = vmatprep.subr.mxu0 0.0
    %1526 = vmatpush1.msra.mxu0 0.0
    %1527 = vmatprep.subr.mxu0 0.0
    %1528 = vmatpush1.msra.mxu0 0.0
    %1529 = vmatprep.subr.mxu0 0.0
    %1530 = vmatpush1.msra.mxu0 0.0
    %1531 = vmatprep.mubr.f32.mxu0 0.0
    %1532 = vmatmul.mubr.f32.gmra.mrb[0].mxu0 %v1463
    %v1533 = vpop.f32.mrb[0].mxu0
    %v1534 = vadd.f32 %v1455, %v1533
    %v1535 = vpop.f32.mrb[0].mxu0
    %1536 = vmatprep.mubr.f32.mxu0 0.0
    %1537 = vmatmul.mubr.f32.gmra.mrb[0].mxu0 %v1465
    %v1538 = vpop.f32.mrb[0].mxu0
    %v1539 = vadd.f32 %v1460, %v1538
    %v1540 = vpop.f32.mrb[0].mxu0
    %1541 = vdwg.mxu0
    %s1542 = scalar_lea.vmem %s9, 128
    %v1543 = vld [vmem:[%s1542] sm:$0xff]
    %v1544 = vld [vmem:[%s1542 + $0x8] sm:$0xff]
    %v1545 = vld [vmem:[%s1542 + $0x10] sm:$0xff]
    %v1546 = vld [vmem:[%s1542 + $0x18] sm:$0xff]
    %v1547 = vld [vmem:[%s1542 + $0x20] sm:$0xff]
    %v1548 = vld [vmem:[%s1542 + $0x28] sm:$0xff]
    %v1549 = vld [vmem:[%s1542 + $0x30] sm:$0xff]
    %v1550 = vld [vmem:[%s1542 + $0x38] sm:$0xff]
    %v1551 = vrot.slane %v1360, 2
    %v1552 = vrot.slane %v1361, 2
    %v1553 = vsel %vm440, %v1551, %v1552
    %v1554 = vsel %vm230, %v1553, 0
    %v1556 = vsel %vm230, %v1552, 0
    %1558 = vmatprep.subr.mxu0 0.0
    %1559 = vmatpush1.msra.mxu0 %v1543
    %1560 = vmatprep.subr.mxu0 0.0
    %1561 = vmatpush1.msra.mxu0 %v1544
    %1562 = vmatprep.subr.mxu0 0.0
    %1563 = vmatpush1.msra.mxu0 %v1545
    %1564 = vmatprep.subr.mxu0 0.0
    %1565 = vmatpush1.msra.mxu0 %v1546
    %1566 = vmatprep.subr.mxu0 0.0
    %1567 = vmatpush1.msra.mxu0 %v1547
    %1568 = vmatprep.subr.mxu0 0.0
    %1569 = vmatpush1.msra.mxu0 %v1548
    %1570 = vmatprep.subr.mxu0 0.0
    %1571 = vmatpush1.msra.mxu0 %v1549
    %1572 = vmatprep.subr.mxu0 0.0
    %1573 = vmatpush1.msra.mxu0 %v1550
    %1574 = vmatprep.subr.mxu0 0.0
    %1575 = vmatpush1.msra.mxu0 0.0
    %1576 = vmatprep.subr.mxu0 0.0
    %1577 = vmatpush1.msra.mxu0 0.0
    %1578 = vmatprep.subr.mxu0 0.0
    %1579 = vmatpush1.msra.mxu0 0.0
    %1580 = vmatprep.subr.mxu0 0.0
    %1581 = vmatpush1.msra.mxu0 0.0
    %1582 = vmatprep.subr.mxu0 0.0
    %1583 = vmatpush1.msra.mxu0 0.0
    %1584 = vmatprep.subr.mxu0 0.0
    %1585 = vmatpush1.msra.mxu0 0.0
    %1586 = vmatprep.subr.mxu0 0.0
    %1587 = vmatpush1.msra.mxu0 0.0
    %1588 = vmatprep.subr.mxu0 0.0
    %1589 = vmatpush1.msra.mxu0 0.0
    %1590 = vmatprep.subr.mxu0 0.0
    %1591 = vmatpush1.msra.mxu0 0.0
    %1592 = vmatprep.subr.mxu0 0.0
    %1593 = vmatpush1.msra.mxu0 0.0
    %1594 = vmatprep.subr.mxu0 0.0
    %1595 = vmatpush1.msra.mxu0 0.0
    %1596 = vmatprep.subr.mxu0 0.0
    %1597 = vmatpush1.msra.mxu0 0.0
    %1598 = vmatprep.subr.mxu0 0.0
    %1599 = vmatpush1.msra.mxu0 0.0
    %1600 = vmatprep.subr.mxu0 0.0
    %1601 = vmatpush1.msra.mxu0 0.0
    %1602 = vmatprep.subr.mxu0 0.0
    %1603 = vmatpush1.msra.mxu0 0.0
    %1604 = vmatprep.subr.mxu0 0.0
    %1605 = vmatpush1.msra.mxu0 0.0
    %1606 = vmatprep.subr.mxu0 0.0
    %1607 = vmatpush1.msra.mxu0 0.0
    %1608 = vmatprep.subr.mxu0 0.0
    %1609 = vmatpush1.msra.mxu0 0.0
    %1610 = vmatprep.subr.mxu0 0.0
    %1611 = vmatpush1.msra.mxu0 0.0
    %1612 = vmatprep.subr.mxu0 0.0
    %1613 = vmatpush1.msra.mxu0 0.0
    %1614 = vmatprep.subr.mxu0 0.0
    %1615 = vmatpush1.msra.mxu0 0.0
    %1616 = vmatprep.subr.mxu0 0.0
    %1617 = vmatpush1.msra.mxu0 0.0
    %1618 = vmatprep.subr.mxu0 0.0
    %1619 = vmatpush1.msra.mxu0 0.0
    %1620 = vmatprep.subr.mxu0 0.0
    %1621 = vmatpush1.msra.mxu0 0.0
    %1622 = vmatprep.mubr.f32.mxu0 0.0
    %1623 = vmatmul.mubr.f32.gmra.mrb[0].mxu0 %v1554
    %v1624 = vpop.f32.mrb[0].mxu0
    %v1625 = vadd.f32 0.0, %v1624
    %v1626 = vpop.f32.mrb[0].mxu0
    %1627 = vmatprep.mubr.f32.mxu0 0.0
    %1628 = vmatmul.mubr.f32.gmra.mrb[0].mxu0 %v1556
    %v1629 = vpop.f32.mrb[0].mxu0
    %v1630 = vadd.f32 0.0, %v1629
    %v1631 = vpop.f32.mrb[0].mxu0
    %1632 = vdwg.mxu0
    %v1633 = vadd.f32 %v1534, %v1625
    %v1634 = vadd.f32 %v1539, %v1630
    %v1635 = vld [vmem:[%s11] sm:$0xff]
    %v1636 = vld [vmem:[%s11 + $0x8] sm:$0xff]
    %v1637 = vld [vmem:[%s11 + $0x10] sm:$0xff]
    %v1638 = vld [vmem:[%s11 + $0x18] sm:$0xff]
    %v1639 = vld [vmem:[%s11 + $0x20] sm:$0xff]
    %v1640 = vld [vmem:[%s11 + $0x28] sm:$0xff]
    %v1641 = vld [vmem:[%s11 + $0x30] sm:$0xff]
    %v1642 = vld [vmem:[%s11 + $0x38] sm:$0xff]
    %v1643 = vld [vmem:[%s11 + $0x40] sm:$0xff]
    %v1644 = vld [vmem:[%s11 + $0x48] sm:$0xff]
    %v1645 = vld [vmem:[%s11 + $0x50] sm:$0xff]
    %v1646 = vld [vmem:[%s11 + $0x58] sm:$0xff]
    %v1647 = vld [vmem:[%s11 + $0x60] sm:$0xff]
    %v1648 = vld [vmem:[%s11 + $0x68] sm:$0xff]
    %v1649 = vld [vmem:[%s11 + $0x70] sm:$0xff]
    %v1650 = vld [vmem:[%s11 + $0x78] sm:$0xff]
    %1651 = vmatprep.subr.mxu0 0.0
    %1652 = vmatpush1.msra.mxu0 %v1635
    %1653 = vmatprep.subr.mxu0 0.0
    %1654 = vmatpush1.msra.mxu0 %v1636
    %1655 = vmatprep.subr.mxu0 0.0
    %1656 = vmatpush1.msra.mxu0 %v1637
    %1657 = vmatprep.subr.mxu0 0.0
    %1658 = vmatpush1.msra.mxu0 %v1638
    %1659 = vmatprep.subr.mxu0 0.0
    %1660 = vmatpush1.msra.mxu0 %v1639
    %1661 = vmatprep.subr.mxu0 0.0
    %1662 = vmatpush1.msra.mxu0 %v1640
    %1663 = vmatprep.subr.mxu0 0.0
    %1664 = vmatpush1.msra.mxu0 %v1641
    %1665 = vmatprep.subr.mxu0 0.0
    %1666 = vmatpush1.msra.mxu0 %v1642
    %1667 = vmatprep.subr.mxu0 0.0
    %1668 = vmatpush1.msra.mxu0 %v1643
    %1669 = vmatprep.subr.mxu0 0.0
    %1670 = vmatpush1.msra.mxu0 %v1644
    %1671 = vmatprep.subr.mxu0 0.0
    %1672 = vmatpush1.msra.mxu0 %v1645
    %1673 = vmatprep.subr.mxu0 0.0
    %1674 = vmatpush1.msra.mxu0 %v1646
    %1675 = vmatprep.subr.mxu0 0.0
    %1676 = vmatpush1.msra.mxu0 %v1647
    %1677 = vmatprep.subr.mxu0 0.0
    %1678 = vmatpush1.msra.mxu0 %v1648
    %1679 = vmatprep.subr.mxu0 0.0
    %1680 = vmatpush1.msra.mxu0 %v1649
    %1681 = vmatprep.subr.mxu0 0.0
    %1682 = vmatpush1.msra.mxu0 %v1650
    %1683 = vmatprep.subr.mxu0 0.0
    %1684 = vmatpush1.msra.mxu0 0.0
    %1685 = vmatprep.subr.mxu0 0.0
    %1686 = vmatpush1.msra.mxu0 0.0
    %1687 = vmatprep.subr.mxu0 0.0
    %1688 = vmatpush1.msra.mxu0 0.0
    %1689 = vmatprep.subr.mxu0 0.0
    %1690 = vmatpush1.msra.mxu0 0.0
    %1691 = vmatprep.subr.mxu0 0.0
    %1692 = vmatpush1.msra.mxu0 0.0
    %1693 = vmatprep.subr.mxu0 0.0
    %1694 = vmatpush1.msra.mxu0 0.0
    %1695 = vmatprep.subr.mxu0 0.0
    %1696 = vmatpush1.msra.mxu0 0.0
    %1697 = vmatprep.subr.mxu0 0.0
    %1698 = vmatpush1.msra.mxu0 0.0
    %1699 = vmatprep.subr.mxu0 0.0
    %1700 = vmatpush1.msra.mxu0 0.0
    %1701 = vmatprep.subr.mxu0 0.0
    %1702 = vmatpush1.msra.mxu0 0.0
    %1703 = vmatprep.subr.mxu0 0.0
    %1704 = vmatpush1.msra.mxu0 0.0
    %1705 = vmatprep.subr.mxu0 0.0
    %1706 = vmatpush1.msra.mxu0 0.0
    %1707 = vmatprep.subr.mxu0 0.0
    %1708 = vmatpush1.msra.mxu0 0.0
    %1709 = vmatprep.subr.mxu0 0.0
    %1710 = vmatpush1.msra.mxu0 0.0
    %1711 = vmatprep.subr.mxu0 0.0
    %1712 = vmatpush1.msra.mxu0 0.0
    %1713 = vmatprep.subr.mxu0 0.0
    %1714 = vmatpush1.msra.mxu0 0.0
    %1715 = vmatprep.mubr.f32.mxu0 0.0
    %1716 = vmatmul.mubr.f32.gmra.mrb[0].mxu0 %v1633
    %v1717 = vpop.f32.mrb[0].mxu0
    %v1718 = vadd.f32 0.0, %v1717
    %v1719 = vpop.f32.mrb[0].mxu0
    %1720 = vmatprep.mubr.f32.mxu0 0.0
    %1721 = vmatmul.mubr.f32.gmra.mrb[0].mxu0 %v1634
    %v1722 = vpop.f32.mrb[0].mxu0
    %v1723 = vadd.f32 0.0, %v1722
    %v1724 = vpop.f32.mrb[0].mxu0
    %1725 = vdwg.mxu0
    %1728 = vrot.lane.b32.xlu0 %v1718, 64
    %v1729 = vpop.permute.xlu0 %1728
    %1730 = vrot.lane.b32.xlu0 %v1723, 64
    %v1731 = vpop.permute.xlu0 %1730
    %v1734 = vmax.f32 %v1718, %v1729
    %v1735 = vmax.f32 %v1723, %v1731
    %v1736 = vld [vmem:[%s10] sm:$0x1]
    %v1738 = vlaneseq
    %v1739 = vshrl.u32 %v1738, 7
    %v1740 = vsub.s32 0, %v1739
    %v1741 = vrot.slane %v1736, %v1740
    %v1743 = vadd.f32 %v1734, %v1741
    %v1744 = vadd.f32 %v1735, %v1741
    %v1745 = vmax.f32 %v1743, 0.0
    %v1746 = vmax.f32 %v1744, 0.0
    %v1747 = vld [vmem:[#allocation7] sm:$0xff]
    %vm1748 = vcmask 80896
    %v1750 = vsel %vm1748, %v1747, 0
    %v1753 = vsel %vm724, %v1746, 0
    %1755 = vmatprep.subr.mxu0 0.0
    %1756 = vmatpush1.msra.mxu0 %v1745
    %1757 = vmatprep.subr.mxu0 0.0
    %1758 = vmatpush1.msra.mxu0 %v1753
    %1759 = vmatprep.subr.mxu0 0.0
    %1760 = vmatpush1.msra.mxu0 0.0
    %1761 = vmatprep.subr.mxu0 0.0
    %1762 = vmatpush1.msra.mxu0 0.0
    %1763 = vmatprep.subr.mxu0 0.0
    %1764 = vmatpush1.msra.mxu0 0.0
    %1765 = vmatprep.subr.mxu0 0.0
    %1766 = vmatpush1.msra.mxu0 0.0
    %1767 = vmatprep.subr.mxu0 0.0
    %1768 = vmatpush1.msra.mxu0 0.0
    %1769 = vmatprep.subr.mxu0 0.0
    %1770 = vmatpush1.msra.mxu0 0.0
    %1771 = vmatprep.subr.mxu0 0.0
    %1772 = vmatpush1.msra.mxu0 0.0
    %1773 = vmatprep.subr.mxu0 0.0
    %1774 = vmatpush1.msra.mxu0 0.0
    %1775 = vmatprep.subr.mxu0 0.0
    %1776 = vmatpush1.msra.mxu0 0.0
    %1777 = vmatprep.subr.mxu0 0.0
    %1778 = vmatpush1.msra.mxu0 0.0
    %1779 = vmatprep.subr.mxu0 0.0
    %1780 = vmatpush1.msra.mxu0 0.0
    %1781 = vmatprep.subr.mxu0 0.0
    %1782 = vmatpush1.msra.mxu0 0.0
    %1783 = vmatprep.subr.mxu0 0.0
    %1784 = vmatpush1.msra.mxu0 0.0
    %1785 = vmatprep.subr.mxu0 0.0
    %1786 = vmatpush1.msra.mxu0 0.0
    %1787 = vmatprep.subr.mxu0 0.0
    %1788 = vmatpush1.msra.mxu0 0.0
    %1789 = vmatprep.subr.mxu0 0.0
    %1790 = vmatpush1.msra.mxu0 0.0
    %1791 = vmatprep.subr.mxu0 0.0
    %1792 = vmatpush1.msra.mxu0 0.0
    %1793 = vmatprep.subr.mxu0 0.0
    %1794 = vmatpush1.msra.mxu0 0.0
    %1795 = vmatprep.subr.mxu0 0.0
    %1796 = vmatpush1.msra.mxu0 0.0
    %1797 = vmatprep.subr.mxu0 0.0
    %1798 = vmatpush1.msra.mxu0 0.0
    %1799 = vmatprep.subr.mxu0 0.0
    %1800 = vmatpush1.msra.mxu0 0.0
    %1801 = vmatprep.subr.mxu0 0.0
    %1802 = vmatpush1.msra.mxu0 0.0
    %1803 = vmatprep.subr.mxu0 0.0
    %1804 = vmatpush1.msra.mxu0 0.0
    %1805 = vmatprep.subr.mxu0 0.0
    %1806 = vmatpush1.msra.mxu0 0.0
    %1807 = vmatprep.subr.mxu0 0.0
    %1808 = vmatpush1.msra.mxu0 0.0
    %1809 = vmatprep.subr.mxu0 0.0
    %1810 = vmatpush1.msra.mxu0 0.0
    %1811 = vmatprep.subr.mxu0 0.0
    %1812 = vmatpush1.msra.mxu0 0.0
    %1813 = vmatprep.subr.mxu0 0.0
    %1814 = vmatpush1.msra.mxu0 0.0
    %1815 = vmatprep.subr.mxu0 0.0
    %1816 = vmatpush1.msra.mxu0 0.0
    %1817 = vmatprep.subr.mxu0 0.0
    %1818 = vmatpush1.msra.mxu0 0.0
    %1819 = vmatprep.mubr.f32.mxu0 0.0
    %1820 = vmatmul.mubr.f32.gmra.mrb[0].mxu0 %v1750
    %v1821 = vpop.f32.mrb[0].mxu0
    %v1822 = vadd.f32 0.0, %v1821
    %v1823 = vpop.f32.mrb[0].mxu0
    %1824 = vdwg.mxu0
    %v1826 = vrot.slane %v1822, 4
    %v1828 = vmax.f32 %v1822, %v1826
    %v1830 = vrot.slane %v1828, 2
    %1831 = vrot.lane.b32.xlu0 %v1830, 64
    %v1832 = vpop.permute.xlu0 %1831
    %v1834 = vsel %vm230, %v1828, %v1832
    %v1835 = vld [vmem:[%s13] sm:$0xff]
    %v1836 = vld [vmem:[%s13 + $0x8] sm:$0xff]
    %v1837 = vld [vmem:[%s13 + $0x10] sm:$0xff]
    %v1838 = vld [vmem:[%s13 + $0x18] sm:$0xff]
    %v1839 = vld [vmem:[%s13 + $0x20] sm:$0xff]
    %v1840 = vld [vmem:[%s13 + $0x28] sm:$0xff]
    %v1841 = vld [vmem:[%s13 + $0x30] sm:$0xff]
    %v1842 = vld [vmem:[%s13 + $0x38] sm:$0xff]
    %v1843 = vld [vmem:[%s13 + $0x40] sm:$0xff]
    %v1844 = vld [vmem:[%s13 + $0x48] sm:$0xff]
    %v1845 = vld [vmem:[%s13 + $0x50] sm:$0xff]
    %v1846 = vld [vmem:[%s13 + $0x58] sm:$0xff]
    %v1847 = vld [vmem:[%s13 + $0x60] sm:$0xff]
    %v1848 = vld [vmem:[%s13 + $0x68] sm:$0xff]
    %v1849 = vld [vmem:[%s13 + $0x70] sm:$0xff]
    %v1850 = vld [vmem:[%s13 + $0x78] sm:$0xff]
    %v1851 = vld [vmem:[%s14] sm:$0x1]
    %v1853 = vlaneseq
    %v1854 = vshrl.u32 %v1853, 7
    %v1855 = vsub.s32 0, %v1854
    %v1856 = vrot.slane %v1851, %v1855
    %1858 = vmatprep.subr.mxu0 0.0
    %1859 = vmatpush1.msra.mxu0 %v1835
    %1860 = vmatprep.subr.mxu0 0.0
    %1861 = vmatpush1.msra.mxu0 %v1836
    %1862 = vmatprep.subr.mxu0 0.0
    %1863 = vmatpush1.msra.mxu0 %v1837
    %1864 = vmatprep.subr.mxu0 0.0
    %1865 = vmatpush1.msra.mxu0 %v1838
    %1866 = vmatprep.subr.mxu0 0.0
    %1867 = vmatpush1.msra.mxu0 %v1839
    %1868 = vmatprep.subr.mxu0 0.0
    %1869 = vmatpush1.msra.mxu0 %v1840
    %1870 = vmatprep.subr.mxu0 0.0
    %1871 = vmatpush1.msra.mxu0 %v1841
    %1872 = vmatprep.subr.mxu0 0.0
    %1873 = vmatpush1.msra.mxu0 %v1842
    %1874 = vmatprep.subr.mxu0 0.0
    %1875 = vmatpush1.msra.mxu0 %v1843
    %1876 = vmatprep.subr.mxu0 0.0
    %1877 = vmatpush1.msra.mxu0 %v1844
    %1878 = vmatprep.subr.mxu0 0.0
    %1879 = vmatpush1.msra.mxu0 %v1845
    %1880 = vmatprep.subr.mxu0 0.0
    %1881 = vmatpush1.msra.mxu0 %v1846
    %1882 = vmatprep.subr.mxu0 0.0
    %1883 = vmatpush1.msra.mxu0 %v1847
    %1884 = vmatprep.subr.mxu0 0.0
    %1885 = vmatpush1.msra.mxu0 %v1848
    %1886 = vmatprep.subr.mxu0 0.0
    %1887 = vmatpush1.msra.mxu0 %v1849
    %1888 = vmatprep.subr.mxu0 0.0
    %1889 = vmatpush1.msra.mxu0 %v1850
    %1890 = vmatprep.subr.mxu0 0.0
    %1891 = vmatpush1.msra.mxu0 0.0
    %1892 = vmatprep.subr.mxu0 0.0
    %1893 = vmatpush1.msra.mxu0 0.0
    %1894 = vmatprep.subr.mxu0 0.0
    %1895 = vmatpush1.msra.mxu0 0.0
    %1896 = vmatprep.subr.mxu0 0.0
    %1897 = vmatpush1.msra.mxu0 0.0
    %1898 = vmatprep.subr.mxu0 0.0
    %1899 = vmatpush1.msra.mxu0 0.0
    %1900 = vmatprep.subr.mxu0 0.0
    %1901 = vmatpush1.msra.mxu0 0.0
    %1902 = vmatprep.subr.mxu0 0.0
    %1903 = vmatpush1.msra.mxu0 0.0
    %1904 = vmatprep.subr.mxu0 0.0
    %1905 = vmatpush1.msra.mxu0 0.0
    %1906 = vmatprep.subr.mxu0 0.0
    %1907 = vmatpush1.msra.mxu0 0.0
    %1908 = vmatprep.subr.mxu0 0.0
    %1909 = vmatpush1.msra.mxu0 0.0
    %1910 = vmatprep.subr.mxu0 0.0
    %1911 = vmatpush1.msra.mxu0 0.0
    %1912 = vmatprep.subr.mxu0 0.0
    %1913 = vmatpush1.msra.mxu0 0.0
    %1914 = vmatprep.subr.mxu0 0.0
    %1915 = vmatpush1.msra.mxu0 0.0
    %1916 = vmatprep.subr.mxu0 0.0
    %1917 = vmatpush1.msra.mxu0 0.0
    %1918 = vmatprep.subr.mxu0 0.0
    %1919 = vmatpush1.msra.mxu0 0.0
    %1920 = vmatprep.subr.mxu0 0.0
    %1921 = vmatpush1.msra.mxu0 0.0
    %1922 = vmatprep.mubr.f32.mxu0 0.0
    %1923 = vmatmul.mubr.f32.gmra.mrb[0].mxu0 %v1834
    %v1924 = vpop.f32.mrb[0].mxu0
    %v1925 = vadd.f32 %v1856, %v1924
    %v1926 = vpop.f32.mrb[0].mxu0
    %1927 = vdwg.mxu0
    %v1928 = vmax.f32 %v1925, 0.0
    %v1929 = vld [vmem:[%s15] sm:$0xff]
    %v1930 = vld [vmem:[%s15 + $0x8] sm:$0xff]
    %v1931 = vld [vmem:[%s15 + $0x10] sm:$0xff]
    %v1932 = vld [vmem:[%s15 + $0x18] sm:$0xff]
    %v1933 = vld [vmem:[%s15 + $0x20] sm:$0xff]
    %v1934 = vld [vmem:[%s15 + $0x28] sm:$0xff]
    %v1935 = vld [vmem:[%s15 + $0x30] sm:$0xff]
    %v1936 = vld [vmem:[%s15 + $0x38] sm:$0xff]
    %v1937 = vld [vmem:[%s15 + $0x40] sm:$0xff]
    %v1938 = vld [vmem:[%s15 + $0x48] sm:$0xff]
    %v1939 = vld [vmem:[%s15 + $0x50] sm:$0xff]
    %v1940 = vld [vmem:[%s15 + $0x58] sm:$0xff]
    %v1941 = vld [vmem:[%s15 + $0x60] sm:$0xff]
    %v1942 = vld [vmem:[%s15 + $0x68] sm:$0xff]
    %v1943 = vld [vmem:[%s15 + $0x70] sm:$0xff]
    %v1944 = vld [vmem:[%s15 + $0x78] sm:$0xff]
    %v1945 = vld [vmem:[%s16] sm:$0x1]
    %v1947 = vlaneseq
    %v1948 = vshrl.u32 %v1947, 7
    %v1949 = vsub.s32 0, %v1948
    %v1950 = vrot.slane %v1945, %v1949
    %1952 = vmatprep.subr.mxu0 0.0
    %1953 = vmatpush1.msra.mxu0 %v1929
    %1954 = vmatprep.subr.mxu0 0.0
    %1955 = vmatpush1.msra.mxu0 %v1930
    %1956 = vmatprep.subr.mxu0 0.0
    %1957 = vmatpush1.msra.mxu0 %v1931
    %1958 = vmatprep.subr.mxu0 0.0
    %1959 = vmatpush1.msra.mxu0 %v1932
    %1960 = vmatprep.subr.mxu0 0.0
    %1961 = vmatpush1.msra.mxu0 %v1933
    %1962 = vmatprep.subr.mxu0 0.0
    %1963 = vmatpush1.msra.mxu0 %v1934
    %1964 = vmatprep.subr.mxu0 0.0
    %1965 = vmatpush1.msra.mxu0 %v1935
    %1966 = vmatprep.subr.mxu0 0.0
    %1967 = vmatpush1.msra.mxu0 %v1936
    %1968 = vmatprep.subr.mxu0 0.0
    %1969 = vmatpush1.msra.mxu0 %v1937
    %1970 = vmatprep.subr.mxu0 0.0
    %1971 = vmatpush1.msra.mxu0 %v1938
    %1972 = vmatprep.subr.mxu0 0.0
    %1973 = vmatpush1.msra.mxu0 %v1939
    %1974 = vmatprep.subr.mxu0 0.0
    %1975 = vmatpush1.msra.mxu0 %v1940
    %1976 = vmatprep.subr.mxu0 0.0
    %1977 = vmatpush1.msra.mxu0 %v1941
    %1978 = vmatprep.subr.mxu0 0.0
    %1979 = vmatpush1.msra.mxu0 %v1942
    %1980 = vmatprep.subr.mxu0 0.0
    %1981 = vmatpush1.msra.mxu0 %v1943
    %1982 = vmatprep.subr.mxu0 0.0
    %1983 = vmatpush1.msra.mxu0 %v1944
    %1984 = vmatprep.subr.mxu0 0.0
    %1985 = vmatpush1.msra.mxu0 0.0
    %1986 = vmatprep.subr.mxu0 0.0
    %1987 = vmatpush1.msra.mxu0 0.0
    %1988 = vmatprep.subr.mxu0 0.0
    %1989 = vmatpush1.msra.mxu0 0.0
    %1990 = vmatprep.subr.mxu0 0.0
    %1991 = vmatpush1.msra.mxu0 0.0
    %1992 = vmatprep.subr.mxu0 0.0
    %1993 = vmatpush1.msra.mxu0 0.0
    %1994 = vmatprep.subr.mxu0 0.0
    %1995 = vmatpush1.msra.mxu0 0.0
    %1996 = vmatprep.subr.mxu0 0.0
    %1997 = vmatpush1.msra.mxu0 0.0
    %1998 = vmatprep.subr.mxu0 0.0
    %1999 = vmatpush1.msra.mxu0 0.0
    %2000 = vmatprep.subr.mxu0 0.0
    %2001 = vmatpush1.msra.mxu0 0.0
    %2002 = vmatprep.subr.mxu0 0.0
    %2003 = vmatpush1.msra.mxu0 0.0
    %2004 = vmatprep.subr.mxu0 0.0
    %2005 = vmatpush1.msra.mxu0 0.0
    %2006 = vmatprep.subr.mxu0 0.0
    %2007 = vmatpush1.msra.mxu0 0.0
    %2008 = vmatprep.subr.mxu0 0.0
    %2009 = vmatpush1.msra.mxu0 0.0
    %2010 = vmatprep.subr.mxu0 0.0
    %2011 = vmatpush1.msra.mxu0 0.0
    %2012 = vmatprep.subr.mxu0 0.0
    %2013 = vmatpush1.msra.mxu0 0.0
    %2014 = vmatprep.subr.mxu0 0.0
    %2015 = vmatpush1.msra.mxu0 0.0
    %2016 = vmatprep.mubr.f32.mxu0 0.0
    %2017 = vmatmul.mubr.f32.gmra.mrb[0].mxu0 %v1928
    %v2018 = vpop.f32.mrb[0].mxu0
    %v2019 = vadd.f32 %v1950, %v2018
    %v2020 = vpop.f32.mrb[0].mxu0
    %2021 = vdwg.mxu0
    %v2022 = vmax.f32 %v2019, 0.0
    %v2023 = vld [vmem:[#allocation8] sm:$0xff]
    %v2024 = vld [vmem:[#allocation8 + $0x8] sm:$0xff]
    %v2025 = vld [vmem:[#allocation8 + $0x10] sm:$0xff]
    %v2026 = vld [vmem:[#allocation8 + $0x18] sm:$0xff]
    %v2027 = vld [vmem:[#allocation8 + $0x20] sm:$0xff]
    %v2028 = vld [vmem:[#allocation8 + $0x28] sm:$0xff]
    %v2029 = vld [vmem:[#allocation8 + $0x30] sm:$0xff]
    %v2030 = vld [vmem:[#allocation8 + $0x38] sm:$0xff]
    %v2031 = vld [vmem:[#allocation10] sm:$0x1]
    %v2033 = vlaneseq
    %v2034 = vshrl.u32 %v2033, 7
    %v2035 = vsub.s32 0, %v2034
    %v2036 = vrot.slane %v2031, %v2035
    %v2039 = vsel %vm230, %v2022, 0
    %2041 = vmatprep.subr.mxu0 0.0
    %2042 = vmatpush1.msra.mxu0 %v2023
    %2043 = vmatprep.subr.mxu0 0.0
    %2044 = vmatpush1.msra.mxu0 %v2024
    %2045 = vmatprep.subr.mxu0 0.0
    %2046 = vmatpush1.msra.mxu0 %v2025
    %2047 = vmatprep.subr.mxu0 0.0
    %2048 = vmatpush1.msra.mxu0 %v2026
    %2049 = vmatprep.subr.mxu0 0.0
    %2050 = vmatpush1.msra.mxu0 %v2027
    %2051 = vmatprep.subr.mxu0 0.0
    %2052 = vmatpush1.msra.mxu0 %v2028
    %2053 = vmatprep.subr.mxu0 0.0
    %2054 = vmatpush1.msra.mxu0 %v2029
    %2055 = vmatprep.subr.mxu0 0.0
    %2056 = vmatpush1.msra.mxu0 %v2030
    %2057 = vmatprep.subr.mxu0 0.0
    %2058 = vmatpush1.msra.mxu0 0.0
    %2059 = vmatprep.subr.mxu0 0.0
    %2060 = vmatpush1.msra.mxu0 0.0
    %2061 = vmatprep.subr.mxu0 0.0
    %2062 = vmatpush1.msra.mxu0 0.0
    %2063 = vmatprep.subr.mxu0 0.0
    %2064 = vmatpush1.msra.mxu0 0.0
    %2065 = vmatprep.subr.mxu0 0.0
    %2066 = vmatpush1.msra.mxu0 0.0
    %2067 = vmatprep.subr.mxu0 0.0
    %2068 = vmatpush1.msra.mxu0 0.0
    %2069 = vmatprep.subr.mxu0 0.0
    %2070 = vmatpush1.msra.mxu0 0.0
    %2071 = vmatprep.subr.mxu0 0.0
    %2072 = vmatpush1.msra.mxu0 0.0
    %2073 = vmatprep.subr.mxu0 0.0
    %2074 = vmatpush1.msra.mxu0 0.0
    %2075 = vmatprep.subr.mxu0 0.0
    %2076 = vmatpush1.msra.mxu0 0.0
    %2077 = vmatprep.subr.mxu0 0.0
    %2078 = vmatpush1.msra.mxu0 0.0
    %2079 = vmatprep.subr.mxu0 0.0
    %2080 = vmatpush1.msra.mxu0 0.0
    %2081 = vmatprep.subr.mxu0 0.0
    %2082 = vmatpush1.msra.mxu0 0.0
    %2083 = vmatprep.subr.mxu0 0.0
    %2084 = vmatpush1.msra.mxu0 0.0
    %2085 = vmatprep.subr.mxu0 0.0
    %2086 = vmatpush1.msra.mxu0 0.0
    %2087 = vmatprep.subr.mxu0 0.0
    %2088 = vmatpush1.msra.mxu0 0.0
    %2089 = vmatprep.subr.mxu0 0.0
    %2090 = vmatpush1.msra.mxu0 0.0
    %2091 = vmatprep.subr.mxu0 0.0
    %2092 = vmatpush1.msra.mxu0 0.0
    %2093 = vmatprep.subr.mxu0 0.0
    %2094 = vmatpush1.msra.mxu0 0.0
    %2095 = vmatprep.subr.mxu0 0.0
    %2096 = vmatpush1.msra.mxu0 0.0
    %2097 = vmatprep.subr.mxu0 0.0
    %2098 = vmatpush1.msra.mxu0 0.0
    %2099 = vmatprep.subr.mxu0 0.0
    %2100 = vmatpush1.msra.mxu0 0.0
    %2101 = vmatprep.subr.mxu0 0.0
    %2102 = vmatpush1.msra.mxu0 0.0
    %2103 = vmatprep.subr.mxu0 0.0
    %2104 = vmatpush1.msra.mxu0 0.0
    %2105 = vmatprep.mubr.f32.mxu0 0.0
    %2106 = vmatmul.mubr.f32.gmra.mrb[0].mxu0 %v2039
    %v2107 = vpop.f32.mrb[0].mxu0
    %v2108 = vadd.f32 %v2036, %v2107
    %v2109 = vpop.f32.mrb[0].mxu0
    %2110 = vdwg.mxu0
    %v2111 = vmax.f32 %v2108, 0.0
    %v2112 = vld [vmem:[%s19] sm:$0xff]
    %v2113 = vld [vmem:[%s19 + $0x8] sm:$0xff]
    %v2114 = vld [vmem:[%s19 + $0x10] sm:$0xff]
    %v2115 = vld [vmem:[%s19 + $0x18] sm:$0xff]
    %v2116 = vld [vmem:[%s19 + $0x20] sm:$0xff]
    %v2117 = vld [vmem:[%s19 + $0x28] sm:$0xff]
    %v2118 = vld [vmem:[%s19 + $0x30] sm:$0xff]
    %v2119 = vld [vmem:[%s19 + $0x38] sm:$0xff]
    %v2120 = vld [vmem:[#allocation11] sm:$0x1]
    %v2122 = vlaneseq
    %v2123 = vshrl.u32 %v2122, 7
    %v2124 = vsub.s32 0, %v2123
    %v2125 = vrot.slane %v2120, %v2124
    %v2128 = vsel %vm230, %v2111, 0
    %2130 = vmatprep.subr.mxu0 0.0
    %2131 = vmatpush1.msra.mxu0 %v2112
    %2132 = vmatprep.subr.mxu0 0.0
    %2133 = vmatpush1.msra.mxu0 %v2113
    %2134 = vmatprep.subr.mxu0 0.0
    %2135 = vmatpush1.msra.mxu0 %v2114
    %2136 = vmatprep.subr.mxu0 0.0
    %2137 = vmatpush1.msra.mxu0 %v2115
    %2138 = vmatprep.subr.mxu0 0.0
    %2139 = vmatpush1.msra.mxu0 %v2116
    %2140 = vmatprep.subr.mxu0 0.0
    %2141 = vmatpush1.msra.mxu0 %v2117
    %2142 = vmatprep.subr.mxu0 0.0
    %2143 = vmatpush1.msra.mxu0 %v2118
    %2144 = vmatprep.subr.mxu0 0.0
    %2145 = vmatpush1.msra.mxu0 %v2119
    %2146 = vmatprep.subr.mxu0 0.0
    %2147 = vmatpush1.msra.mxu0 0.0
    %2148 = vmatprep.subr.mxu0 0.0
    %2149 = vmatpush1.msra.mxu0 0.0
    %2150 = vmatprep.subr.mxu0 0.0
    %2151 = vmatpush1.msra.mxu0 0.0
    %2152 = vmatprep.subr.mxu0 0.0
    %2153 = vmatpush1.msra.mxu0 0.0
    %2154 = vmatprep.subr.mxu0 0.0
    %2155 = vmatpush1.msra.mxu0 0.0
    %2156 = vmatprep.subr.mxu0 0.0
    %2157 = vmatpush1.msra.mxu0 0.0
    %2158 = vmatprep.subr.mxu0 0.0
    %2159 = vmatpush1.msra.mxu0 0.0
    %2160 = vmatprep.subr.mxu0 0.0
    %2161 = vmatpush1.msra.mxu0 0.0
    %2162 = vmatprep.subr.mxu0 0.0
    %2163 = vmatpush1.msra.mxu0 0.0
    %2164 = vmatprep.subr.mxu0 0.0
    %2165 = vmatpush1.msra.mxu0 0.0
    %2166 = vmatprep.subr.mxu0 0.0
    %2167 = vmatpush1.msra.mxu0 0.0
    %2168 = vmatprep.subr.mxu0 0.0
    %2169 = vmatpush1.msra.mxu0 0.0
    %2170 = vmatprep.subr.mxu0 0.0
    %2171 = vmatpush1.msra.mxu0 0.0
    %2172 = vmatprep.subr.mxu0 0.0
    %2173 = vmatpush1.msra.mxu0 0.0
    %2174 = vmatprep.subr.mxu0 0.0
    %2175 = vmatpush1.msra.mxu0 0.0
    %2176 = vmatprep.subr.mxu0 0.0
    %2177 = vmatpush1.msra.mxu0 0.0
    %2178 = vmatprep.subr.mxu0 0.0
    %2179 = vmatpush1.msra.mxu0 0.0
    %2180 = vmatprep.subr.mxu0 0.0
    %2181 = vmatpush1.msra.mxu0 0.0
    %2182 = vmatprep.subr.mxu0 0.0
    %2183 = vmatpush1.msra.mxu0 0.0
    %2184 = vmatprep.subr.mxu0 0.0
    %2185 = vmatpush1.msra.mxu0 0.0
    %2186 = vmatprep.subr.mxu0 0.0
    %2187 = vmatpush1.msra.mxu0 0.0
    %2188 = vmatprep.subr.mxu0 0.0
    %2189 = vmatpush1.msra.mxu0 0.0
    %2190 = vmatprep.subr.mxu0 0.0
    %2191 = vmatpush1.msra.mxu0 0.0
    %2192 = vmatprep.subr.mxu0 0.0
    %2193 = vmatpush1.msra.mxu0 0.0
    %2194 = vmatprep.mubr.f32.mxu0 0.0
    %2195 = vmatmul.mubr.f32.gmra.mrb[0].mxu0 %v2128
    %v2196 = vpop.f32.mrb[0].mxu0
    %v2197 = vadd.f32 %v2125, %v2196
    %v2198 = vpop.f32.mrb[0].mxu0
    %2199 = vdwg.mxu0
    %v2200 = vmax.f32 %v2197, 0.0
    %v2201 = vld [vmem:[#allocation13] sm:$0xff]
    %v2202 = vld [vmem:[#allocation13 + $0x8] sm:$0xff]
    %v2203 = vld [vmem:[#allocation13 + $0x10] sm:$0xff]
    %v2204 = vld [vmem:[#allocation13 + $0x18] sm:$0xff]
    %v2205 = vld [vmem:[#allocation14] sm:$0x1]
    %v2207 = vlaneseq
    %v2208 = vshrl.u32 %v2207, 7
    %v2209 = vsub.s32 0, %v2208
    %v2210 = vrot.slane %v2205, %v2209
    %vm2212 = vcmask 261120
    %v2214 = vsel %vm2212, %v2200, 0
    %2216 = vmatprep.subr.mxu0 0.0
    %2217 = vmatpush1.msra.mxu0 %v2201
    %2218 = vmatprep.subr.mxu0 0.0
    %2219 = vmatpush1.msra.mxu0 %v2202
    %2220 = vmatprep.subr.mxu0 0.0
    %2221 = vmatpush1.msra.mxu0 %v2203
    %2222 = vmatprep.subr.mxu0 0.0
    %2223 = vmatpush1.msra.mxu0 %v2204
    %2224 = vmatprep.subr.mxu0 0.0
    %2225 = vmatpush1.msra.mxu0 0.0
    %2226 = vmatprep.subr.mxu0 0.0
    %2227 = vmatpush1.msra.mxu0 0.0
    %2228 = vmatprep.subr.mxu0 0.0
    %2229 = vmatpush1.msra.mxu0 0.0
    %2230 = vmatprep.subr.mxu0 0.0
    %2231 = vmatpush1.msra.mxu0 0.0
    %2232 = vmatprep.subr.mxu0 0.0
    %2233 = vmatpush1.msra.mxu0 0.0
    %2234 = vmatprep.subr.mxu0 0.0
    %2235 = vmatpush1.msra.mxu0 0.0
    %2236 = vmatprep.subr.mxu0 0.0
    %2237 = vmatpush1.msra.mxu0 0.0
    %2238 = vmatprep.subr.mxu0 0.0
    %2239 = vmatpush1.msra.mxu0 0.0
    %2240 = vmatprep.subr.mxu0 0.0
    %2241 = vmatpush1.msra.mxu0 0.0
    %2242 = vmatprep.subr.mxu0 0.0
    %2243 = vmatpush1.msra.mxu0 0.0
    %2244 = vmatprep.subr.mxu0 0.0
    %2245 = vmatpush1.msra.mxu0 0.0
    %2246 = vmatprep.subr.mxu0 0.0
    %2247 = vmatpush1.msra.mxu0 0.0
    %2248 = vmatprep.subr.mxu0 0.0
    %2249 = vmatpush1.msra.mxu0 0.0
    %2250 = vmatprep.subr.mxu0 0.0
    %2251 = vmatpush1.msra.mxu0 0.0
    %2252 = vmatprep.subr.mxu0 0.0
    %2253 = vmatpush1.msra.mxu0 0.0
    %2254 = vmatprep.subr.mxu0 0.0
    %2255 = vmatpush1.msra.mxu0 0.0
    %2256 = vmatprep.subr.mxu0 0.0
    %2257 = vmatpush1.msra.mxu0 0.0
    %2258 = vmatprep.subr.mxu0 0.0
    %2259 = vmatpush1.msra.mxu0 0.0
    %2260 = vmatprep.subr.mxu0 0.0
    %2261 = vmatpush1.msra.mxu0 0.0
    %2262 = vmatprep.subr.mxu0 0.0
    %2263 = vmatpush1.msra.mxu0 0.0
    %2264 = vmatprep.subr.mxu0 0.0
    %2265 = vmatpush1.msra.mxu0 0.0
    %2266 = vmatprep.subr.mxu0 0.0
    %2267 = vmatpush1.msra.mxu0 0.0
    %2268 = vmatprep.subr.mxu0 0.0
    %2269 = vmatpush1.msra.mxu0 0.0
    %2270 = vmatprep.subr.mxu0 0.0
    %2271 = vmatpush1.msra.mxu0 0.0
    %2272 = vmatprep.subr.mxu0 0.0
    %2273 = vmatpush1.msra.mxu0 0.0
    %2274 = vmatprep.subr.mxu0 0.0
    %2275 = vmatpush1.msra.mxu0 0.0
    %2276 = vmatprep.subr.mxu0 0.0
    %2277 = vmatpush1.msra.mxu0 0.0
    %2278 = vmatprep.subr.mxu0 0.0
    %2279 = vmatpush1.msra.mxu0 0.0
    %2280 = vmatprep.mubr.f32.mxu0 0.0
    %2281 = vmatmul.mubr.f32.gmra.mrb[0].mxu0 %v2214
    %v2282 = vpop.f32.mrb[0].mxu0
    %v2283 = vadd.f32 %v2210, %v2282
    %v2284 = vpop.f32.mrb[0].mxu0
    %2285 = vdwg.mxu0
    %v2286 = vmax.f32 %v2283, 0.0
    %v2287 = vld [vmem:[%s23] sm:$0xff]
    %v2288 = vld [vmem:[%s23 + $0x8] sm:$0xff]
    %v2289 = vld [vmem:[%s23 + $0x10] sm:$0xff]
    %v2290 = vld [vmem:[%s23 + $0x18] sm:$0xff]
    %v2291 = vld [vmem:[#allocation16] sm:$0x1]
    %v2293 = vlaneseq
    %v2294 = vshrl.u32 %v2293, 7
    %v2295 = vsub.s32 0, %v2294
    %v2296 = vrot.slane %v2291, %v2295
    %v2299 = vsel %vm2212, %v2286, 0
    %2301 = vmatprep.subr.mxu0 0.0
    %2302 = vmatpush1.msra.mxu0 %v2287
    %2303 = vmatprep.subr.mxu0 0.0
    %2304 = vmatpush1.msra.mxu0 %v2288
    %2305 = vmatprep.subr.mxu0 0.0
    %2306 = vmatpush1.msra.mxu0 %v2289
    %2307 = vmatprep.subr.mxu0 0.0
    %2308 = vmatpush1.msra.mxu0 %v2290
    %2309 = vmatprep.subr.mxu0 0.0
    %2310 = vmatpush1.msra.mxu0 0.0
    %2311 = vmatprep.subr.mxu0 0.0
    %2312 = vmatpush1.msra.mxu0 0.0
    %2313 = vmatprep.subr.mxu0 0.0
    %2314 = vmatpush1.msra.mxu0 0.0
    %2315 = vmatprep.subr.mxu0 0.0
    %2316 = vmatpush1.msra.mxu0 0.0
    %2317 = vmatprep.subr.mxu0 0.0
    %2318 = vmatpush1.msra.mxu0 0.0
    %2319 = vmatprep.subr.mxu0 0.0
    %2320 = vmatpush1.msra.mxu0 0.0
    %2321 = vmatprep.subr.mxu0 0.0
    %2322 = vmatpush1.msra.mxu0 0.0
    %2323 = vmatprep.subr.mxu0 0.0
    %2324 = vmatpush1.msra.mxu0 0.0
    %2325 = vmatprep.subr.mxu0 0.0
    %2326 = vmatpush1.msra.mxu0 0.0
    %2327 = vmatprep.subr.mxu0 0.0
    %2328 = vmatpush1.msra.mxu0 0.0
    %2329 = vmatprep.subr.mxu0 0.0
    %2330 = vmatpush1.msra.mxu0 0.0
    %2331 = vmatprep.subr.mxu0 0.0
    %2332 = vmatpush1.msra.mxu0 0.0
    %2333 = vmatprep.subr.mxu0 0.0
    %2334 = vmatpush1.msra.mxu0 0.0
    %2335 = vmatprep.subr.mxu0 0.0
    %2336 = vmatpush1.msra.mxu0 0.0
    %2337 = vmatprep.subr.mxu0 0.0
    %2338 = vmatpush1.msra.mxu0 0.0
    %2339 = vmatprep.subr.mxu0 0.0
    %2340 = vmatpush1.msra.mxu0 0.0
    %2341 = vmatprep.subr.mxu0 0.0
    %2342 = vmatpush1.msra.mxu0 0.0
    %2343 = vmatprep.subr.mxu0 0.0
    %2344 = vmatpush1.msra.mxu0 0.0
    %2345 = vmatprep.subr.mxu0 0.0
    %2346 = vmatpush1.msra.mxu0 0.0
    %2347 = vmatprep.subr.mxu0 0.0
    %2348 = vmatpush1.msra.mxu0 0.0
    %2349 = vmatprep.subr.mxu0 0.0
    %2350 = vmatpush1.msra.mxu0 0.0
    %2351 = vmatprep.subr.mxu0 0.0
    %2352 = vmatpush1.msra.mxu0 0.0
    %2353 = vmatprep.subr.mxu0 0.0
    %2354 = vmatpush1.msra.mxu0 0.0
    %2355 = vmatprep.subr.mxu0 0.0
    %2356 = vmatpush1.msra.mxu0 0.0
    %2357 = vmatprep.subr.mxu0 0.0
    %2358 = vmatpush1.msra.mxu0 0.0
    %2359 = vmatprep.subr.mxu0 0.0
    %2360 = vmatpush1.msra.mxu0 0.0
    %2361 = vmatprep.subr.mxu0 0.0
    %2362 = vmatpush1.msra.mxu0 0.0
    %2363 = vmatprep.subr.mxu0 0.0
    %2364 = vmatpush1.msra.mxu0 0.0
    %2365 = vmatprep.mubr.f32.mxu0 0.0
    %2366 = vmatmul.mubr.f32.gmra.mrb[0].mxu0 %v2299
    %v2367 = vpop.f32.mrb[0].mxu0
    %v2368 = vadd.f32 %v2296, %v2367
    %v2369 = vpop.f32.mrb[0].mxu0
    %2370 = vdwg.mxu0
    %vm2371 = vcmask 123904
    %2372 = vst.msk [vmem:[#allocation17] sm:$0x3] %vm2371, %v2368
    // Predicated region
    $region138: #{circuit_frequency_response_forward.1} parent=1 // pred_check
      _
    $region139: #{circuit_frequency_response_forward.1} parent=1 // pred_check_branch
      %2374 = sbr.rel (0) target = $region141
    $region140: #{circuit_frequency_response_forward.1} parent=1 // pred_region
      %s2376 = ssub.s32 32, 32
      %2377 = vsyncadd [#allocation4], %s2376
      %s2379 = sshll.u32 [#allocation17], 4
      %s2380 = int_to_ptr.vmem [resolvable:$true] %s2379
      %2382 = dma.vmem_to_hbm [thread:$0]  %s2380, 32, %s25, [#allocation4]
    $region141: #{circuit_frequency_response_forward.1} parent=1 // pred_fallthru
      _
    // Predicated region
    $region142: #{circuit_frequency_response_forward.1} parent=1 // pred_check
      _
    $region143: #{circuit_frequency_response_forward.1} parent=1 // pred_check_branch
      %2384 = sbr.rel (0) target = $region145
    $region144: #{circuit_frequency_response_forward.1} parent=1 // pred_region
      %2385 = dma.done [#allocation4], 32
    $region145: #{circuit_frequency_response_forward.1} parent=1 // pred_fallthru
      _
    %2386 = vsyncpa [#allocation3], 1
    %2387 = vsyncpa [#allocation6], 1
    %2388 = vsyncpa [#allocation9], 1
    %2389 = vsyncpa [#allocation12], 1
    %2390 = vsyncpa [#allocation15], 1
    %2391 = vsyncpa [#allocation4], 1

</llo_original>
